<compile_context>
chip_gen: v6e
topology: v6e:2x2x1
jax: 0.10.0
libtpu: 0.0.40
codegen_flags: <defaults>
</compile_context>

<pallas_src>
import math

import jax
import jax.numpy as jnp
from jax import lax
from jax.experimental import pallas as pl
from jax.experimental.pallas import tpu as pltpu


def rnn_attn_kernel(emb_ref, wih_ref, whh_ref, b_ref, w1_ref, w2_ref,
                    fcw_ref, fcb_ref, out_ref,
                    gx_scr, outs_scr, sc_scr):
    SB, _E = emb_ref.shape
    H = whh_ref.shape[0]                 # whh_ref is (H, 4H)
    B, labels = out_ref.shape
    S = SB // B
    D2 = fcw_ref.shape[0]                # fcw_ref is (D2, H, labels)
    f32 = jnp.float32

    # ------------------------------------------------------------------
    # Pass 1: input projection for every timestep in ONE lane-dense matmul.
    #   gx[t*B:(t+1)*B, :] = x_t @ W_ih + b        (gate order i, f, g, o)
    # ------------------------------------------------------------------
    gx_scr[...] = (jnp.dot(emb_ref[...], wih_ref[...],
                           preferred_element_type=f32) + b_ref[...])

    # ------------------------------------------------------------------
    # Pass 2: serial LSTM recurrence.  One (B,H)@(H,4H=128) MXU push per
    # step, one sigmoid + one tanh over the full (B,128) gate vector, then
    # static 32-lane gate slices.  (h, c) carried as values.
    # ------------------------------------------------------------------
    whh = whh_ref[...]                   # (H, 4H) -- hoisted load
    h = jnp.zeros((B, H), f32)
    c = jnp.zeros((B, H), f32)
    for t in range(S):                   # S small & static
        g4 = gx_scr[t * B:(t + 1) * B, :] + jnp.dot(
            h, whh, preferred_element_type=f32)            # (B, 4H)
        sig = jax.nn.sigmoid(g4)
        th = jnp.tanh(g4)
        i_g = sig[:, 0 * H:1 * H]
        f_g = sig[:, 1 * H:2 * H]
        g_g = th[:, 2 * H:3 * H]
        o_g = sig[:, 3 * H:4 * H]
        c = f_g * c + i_g * g_g
        h = o_g * jnp.tanh(c)
        outs_scr[t * B:(t + 1) * B, :] = h

    # ------------------------------------------------------------------
    # Pass 3: attention projections fused across ALL timesteps.
    #   scores = tanh(outs @ W1) @ W2p   (W2 lane-padded to 128 cols)
    # ------------------------------------------------------------------
    hs = outs_scr[...]                                        # (S*B, H)
    t1 = jnp.tanh(jnp.dot(hs, w1_ref[...], preferred_element_type=f32))
    sc_scr[...] = jnp.dot(t1, w2_ref[...], preferred_element_type=f32)

    # ------------------------------------------------------------------
    # Softmax over the sequence axis (== torch.softmax(..., dim=1) on
    # (B, S, D2)), computed on per-timestep (B, D2p) blocks.
    # Padded score lanes >= D2 are never read in the epilogue.
    # ------------------------------------------------------------------
    sc_s = [sc_scr[s * B:(s + 1) * B, :] for s in range(S)]   # S x (B, D2p)
    mx = sc_s[0]
    for s in range(1, S):
        mx = jnp.maximum(mx, sc_s[s])
    ex_s = [jnp.exp(sc_s[s] - mx) for s in range(S)]
    den = ex_s[0]
    for s in range(1, S):
        den = den + ex_s[s]
    inv_den = 1.0 / den                                       # (B, D2p)

    # ------------------------------------------------------------------
    # Attention-weighted pooling + final FC.
    #   result[b, e, h] = sum_s outs[s, b, h] * attn[s, b, e]
    #   logits          = result.reshape(B, D2*H) @ fcw + fcb
    # ------------------------------------------------------------------
    outs_s = [outs_scr[s * B:(s + 1) * B, :] for s in range(S)]
    acc = jnp.zeros((B, labels), f32)
    for e in range(D2):                                       # D2 small & static
        u_e = outs_s[0] * ex_s[0][:, e:e + 1]
        for s in range(1, S):
            u_e = u_e + outs_s[s] * ex_s[s][:, e:e + 1]
        r_e = u_e * inv_den[:, e:e + 1]                       # (B, H)
        acc = acc + jnp.dot(r_e, fcw_ref[e], preferred_element_type=f32)
    # TODO(synk): torch.nn.Dropout(0.5) is treated as eval-mode identity (no stochastic mask).
    out_ref[...] = acc + fcb_ref[...]


def init_params(key, vocab, emb_dim, hidden, dim1, dim2, labels):
    ks = jax.random.split(key, 9)
    f32 = jnp.float32
    klstm = 1.0 / math.sqrt(hidden)
    kfc = 1.0 / math.sqrt(hidden * dim2)
    embedding = jax.random.normal(ks[0], (vocab, emb_dim), f32)
    wih = jax.random.uniform(ks[1], (emb_dim, 4 * hidden), f32, -klstm, klstm)
    whh = jax.random.uniform(ks[2], (hidden, 4 * hidden), f32, -klstm, klstm)
    b_ih = jax.random.uniform(ks[3], (4 * hidden,), f32, -klstm, klstm)
    b_hh = jax.random.uniform(ks[4], (4 * hidden,), f32, -klstm, klstm)
    b = (b_ih + b_hh).reshape(1, 4 * hidden)
    w1 = jax.random.normal(ks[5], (hidden, dim1), f32)
    w2 = jax.random.normal(ks[6], (dim1, dim2), f32)
    fcw = jax.random.uniform(ks[7], (hidden * dim2, labels), f32, -kfc, kfc)
    fcb = jax.random.uniform(ks[8], (1, labels), f32, -kfc, kfc)
    return dict(embedding=embedding, wih=wih, whh=whh, b=b,
                w1=w1, w2=w2, fcw=fcw, fcb=fcb)


@jax.jit
def forward(x_ids, params):
    # TODO(synk): embedding gather kept as plain-JAX glue (in-kernel SMEM-id gather not fused).
    emb = jnp.take(params["embedding"], x_ids, axis=0)        # (S, B, E)
    S, B, E = emb.shape
    H = params["whh"].shape[0]
    D1 = params["w1"].shape[1]
    D2 = params["w2"].shape[1]
    labels = params["fcb"].shape[1]
    D2p = ((D2 + 127) // 128) * 128                           # lane-dense score width

    # Wrapper-side layout plumbing (cheap, outside the kernel):
    #   time-major flatten of the embedded input, zero-pad W2's output columns
    #   to a full lane width, and put the fc weight's e-axis on the leading dim.
    emb_flat = emb.reshape(S * B, E)                          # row s*B + b
    w2p = jnp.zeros((D1, D2p), jnp.float32).at[:, :D2].set(params["w2"])
    fcw_g = params["fcw"].reshape(D2, H, labels)

    def vmem_spec():
        return pl.BlockSpec(memory_space=pltpu.MemorySpace.VMEM)

    return pl.pallas_call(
        rnn_attn_kernel,
        out_shape=jax.ShapeDtypeStruct((B, labels), jnp.float32),
        in_specs=[vmem_spec() for _ in range(8)],
        out_specs=vmem_spec(),
        scratch_shapes=[
            pltpu.VMEM((S * B, 4 * H), jnp.float32),          # fused input gates
            pltpu.VMEM((S * B, H), jnp.float32),              # all LSTM outputs
            pltpu.VMEM((S * B, D2p), jnp.float32),            # attention scores (lane-dense)
        ],
    )(emb_flat, params["wih"], params["whh"], params["b"],
      params["w1"], w2p, fcw_g, params["fcb"])


def reference(x_ids, params):
    """Pure-JAX re-implementation of the torch forward (eval-mode dropout)."""
    with jax.default_matmul_precision("float32"):
        emb = jnp.take(params["embedding"], x_ids, axis=0)     # (S, B, E)
        S, B, _E = emb.shape
        H = params["whh"].shape[0]

        def step(carry, x_t):
            h, c = carry
            gates = x_t @ params["wih"] + h @ params["whh"] + params["b"]
            i = jax.nn.sigmoid(gates[:, 0 * H:1 * H])
            f = jax.nn.sigmoid(gates[:, 1 * H:2 * H])
            g = jnp.tanh(gates[:, 2 * H:3 * H])
            o = jax.nn.sigmoid(gates[:, 3 * H:4 * H])
            c = f * c + i * g
            h = o * jnp.tanh(c)
            return (h, c), h

        init = (jnp.zeros((B, H), jnp.float32), jnp.zeros((B, H), jnp.float32))
        _, outs = lax.scan(step, init, emb)                    # (S, B, H)
        output = jnp.transpose(outs, (1, 0, 2))                # (B, S, H)
        t1 = jnp.tanh(jnp.einsum("bsh,hk->bsk", output, params["w1"]))
        scores = jnp.einsum("bsk,kd->bsd", t1, params["w2"])   # (B, S, D2)
        attn = jax.nn.softmax(scores, axis=1)
        result_T = jnp.einsum("bsh,bsd->bhd", output, attn)    # (B, H, D2)
        result = jnp.transpose(result_T, (0, 2, 1)).reshape(B, -1)
        return result @ params["fcw"] + params["fcb"]


if __name__ == "__main__":
    key = jax.random.PRNGKey(0)
    seq_len, batch = 8, 2
    emb_dim, vocab, hidden = 16, 50, 32
    dim1, dim2, labels = 150, 10, 5

    params = init_params(key, vocab, emb_dim, hidden, dim1, dim2, labels)
    x_ids = jax.random.randint(jax.random.fold_in(key, 123),
                               (seq_len, batch), 0, vocab, dtype=jnp.int32)

    out = forward(x_ids, params)
    out = jax.block_until_ready(out)
    assert out.shape == (batch, labels)

    ref = reference(x_ids, params)
    if not bool(jnp.allclose(out, ref, rtol=2e-2, atol=2e-2)):
        raise AssertionError(f"kernel/reference mismatch, max abs diff = "
                             f"{float(jnp.max(jnp.abs(out - ref)))}")
    print("KERNEL_OK")
</pallas_src>

<mosaic_0001>
module attributes {stable_mosaic.version = 11 : i64} {
  func.func @rnn_attn_kernel(%arg0: memref<16x16xf32, #tpu.memory_space<vmem>>, %arg1: memref<16x128xf32, #tpu.memory_space<vmem>>, %arg2: memref<32x128xf32, #tpu.memory_space<vmem>>, %arg3: memref<1x128xf32, #tpu.memory_space<vmem>>, %arg4: memref<32x150xf32, #tpu.memory_space<vmem>>, %arg5: memref<150x128xf32, #tpu.memory_space<vmem>>, %arg6: memref<10x32x5xf32, #tpu.memory_space<vmem>>, %arg7: memref<1x5xf32, #tpu.memory_space<vmem>>, %arg8: memref<2x5xf32, #tpu.memory_space<vmem>>, %arg9: memref<16x128xf32, #tpu.memory_space<vmem>>, %arg10: memref<16x32xf32, #tpu.memory_space<vmem>>, %arg11: memref<16x128xf32, #tpu.memory_space<vmem>>) attributes {dimension_semantics = [], scalar_prefetch = 0 : i64, scratch_operands = 3 : i64, tpu.core_type = #tpu.core_type<tc>} {
    %c0 = arith.constant 0 : index
    %c0_0 = arith.constant 0 : index
    %0 = vector.load %arg0[%c0, %c0_0] : memref<16x16xf32, #tpu.memory_space<vmem>>, vector<16x16xf32>
    %c0_1 = arith.constant 0 : index
    %c0_2 = arith.constant 0 : index
    %1 = vector.load %arg1[%c0_1, %c0_2] : memref<16x128xf32, #tpu.memory_space<vmem>>, vector<16x128xf32>
    %cst = arith.constant dense<0.000000e+00> : vector<16x128xf32>
    %2 = tpu.matmul %0, %1, %cst {dimension_numbers = #tpu.dot_dimension_numbers<[1], [0], [0], [1], [0, 0, 1, 1], [], []>} : vector<16x16xf32>, vector<16x128xf32>, vector<16x128xf32> -> vector<16x128xf32>
    %c0_3 = arith.constant 0 : index
    %c0_4 = arith.constant 0 : index
    %3 = vector.load %arg3[%c0_3, %c0_4] : memref<1x128xf32, #tpu.memory_space<vmem>>, vector<1x128xf32>
    %4 = vector.broadcast %3 : vector<1x128xf32> to vector<16x128xf32>
    %5 = arith.addf %2, %4 : vector<16x128xf32>
    %c0_5 = arith.constant 0 : index
    %c0_6 = arith.constant 0 : index
    %6 = vector.load %arg9[%c0_5, %c0_6] : memref<16x128xf32, #tpu.memory_space<vmem>>, vector<16x128xf32>
    tpu.vector_store %arg9[%c0_5, %c0_6], %5 {strides = array<i32>} : memref<16x128xf32, #tpu.memory_space<vmem>>, vector<16x128xf32>,
    %c0_7 = arith.constant 0 : index
    %c0_8 = arith.constant 0 : index
    %7 = vector.load %arg2[%c0_7, %c0_8] : memref<32x128xf32, #tpu.memory_space<vmem>>, vector<32x128xf32>
    %cst_9 = arith.constant 0.000000e+00 : f32
    %8 = vector.broadcast %cst_9 : f32 to vector<2x32xf32>
    %cst_10 = arith.constant 0.000000e+00 : f32
    %9 = vector.broadcast %cst_10 : f32 to vector<2x32xf32>
    %c0_11 = arith.constant 0 : index
    %c0_12 = arith.constant 0 : index
    %10 = vector.load %arg9[%c0_11, %c0_12] : memref<16x128xf32, #tpu.memory_space<vmem>>, vector<2x128xf32>
    %cst_13 = arith.constant dense<0.000000e+00> : vector<2x128xf32>
    %11 = tpu.matmul %8, %7, %cst_13 {dimension_numbers = #tpu.dot_dimension_numbers<[1], [0], [0], [1], [0, 0, 1, 1], [], []>} : vector<2x32xf32>, vector<32x128xf32>, vector<2x128xf32> -> vector<2x128xf32>
    %12 = arith.addf %10, %11 : vector<2x128xf32>
    %13 = arith.negf %12 : vector<2x128xf32>
    %14 = math.exp %13 : vector<2x128xf32>
    %cst_14 = arith.constant 1.000000e+00 : f32
    %15 = vector.broadcast %cst_14 : f32 to vector<2x128xf32>
    %16 = arith.addf %15, %14 : vector<2x128xf32>
    %17 = arith.divf %15, %16 : vector<2x128xf32>
    %18 = math.tanh %12 : vector<2x128xf32>
    %19 = vector.extract_strided_slice %17 {offsets = [0, 0], sizes = [2, 32], strides = [1, 1]} : vector<2x128xf32> to vector<2x32xf32>
    %20 = vector.extract_strided_slice %17 {offsets = [0, 32], sizes = [2, 32], strides = [1, 1]} : vector<2x128xf32> to vector<2x32xf32>
    %21 = vector.extract_strided_slice %18 {offsets = [0, 64], sizes = [2, 32], strides = [1, 1]} : vector<2x128xf32> to vector<2x32xf32>
    %22 = vector.extract_strided_slice %17 {offsets = [0, 96], sizes = [2, 32], strides = [1, 1]} : vector<2x128xf32> to vector<2x32xf32>
    %23 = arith.mulf %20, %9 : vector<2x32xf32>
    %24 = arith.mulf %19, %21 : vector<2x32xf32>
    %25 = arith.addf %23, %24 : vector<2x32xf32>
    %26 = math.tanh %25 : vector<2x32xf32>
    %27 = arith.mulf %22, %26 : vector<2x32xf32>
    %c0_15 = arith.constant 0 : index
    %c0_16 = arith.constant 0 : index
    %28 = vector.load %arg10[%c0_15, %c0_16] : memref<16x32xf32, #tpu.memory_space<vmem>>, vector<2x32xf32>
    tpu.vector_store %arg10[%c0_15, %c0_16], %27 {strides = array<i32>} : memref<16x32xf32, #tpu.memory_space<vmem>>, vector<2x32xf32>,
    %c2 = arith.constant 2 : index
    %c0_17 = arith.constant 0 : index
    %29 = vector.load %arg9[%c2, %c0_17] : memref<16x128xf32, #tpu.memory_space<vmem>>, vector<2x128xf32>
    %cst_18 = arith.constant dense<0.000000e+00> : vector<2x128xf32>
    %30 = tpu.matmul %27, %7, %cst_18 {dimension_numbers = #tpu.dot_dimension_numbers<[1], [0], [0], [1], [0, 0, 1, 1], [], []>} : vector<2x32xf32>, vector<32x128xf32>, vector<2x128xf32> -> vector<2x128xf32>
    %31 = arith.addf %29, %30 : vector<2x128xf32>
    %32 = arith.negf %31 : vector<2x128xf32>
    %33 = math.exp %32 : vector<2x128xf32>
    %cst_19 = arith.constant 1.000000e+00 : f32
    %34 = vector.broadcast %cst_19 : f32 to vector<2x128xf32>
    %35 = arith.addf %34, %33 : vector<2x128xf32>
    %36 = arith.divf %34, %35 : vector<2x128xf32>
    %37 = math.tanh %31 : vector<2x128xf32>
    %38 = vector.extract_strided_slice %36 {offsets = [0, 0], sizes = [2, 32], strides = [1, 1]} : vector<2x128xf32> to vector<2x32xf32>
    %39 = vector.extract_strided_slice %36 {offsets = [0, 32], sizes = [2, 32], strides = [1, 1]} : vector<2x128xf32> to vector<2x32xf32>
    %40 = vector.extract_strided_slice %37 {offsets = [0, 64], sizes = [2, 32], strides = [1, 1]} : vector<2x128xf32> to vector<2x32xf32>
    %41 = vector.extract_strided_slice %36 {offsets = [0, 96], sizes = [2, 32], strides = [1, 1]} : vector<2x128xf32> to vector<2x32xf32>
    %42 = arith.mulf %39, %25 : vector<2x32xf32>
    %43 = arith.mulf %38, %40 : vector<2x32xf32>
    %44 = arith.addf %42, %43 : vector<2x32xf32>
    %45 = math.tanh %44 : vector<2x32xf32>
    %46 = arith.mulf %41, %45 : vector<2x32xf32>
    %c2_20 = arith.constant 2 : index
    %c0_21 = arith.constant 0 : index
    %47 = vector.load %arg10[%c2_20, %c0_21] : memref<16x32xf32, #tpu.memory_space<vmem>>, vector<2x32xf32>
    tpu.vector_store %arg10[%c2_20, %c0_21], %46 {strides = array<i32>} : memref<16x32xf32, #tpu.memory_space<vmem>>, vector<2x32xf32>,
    %c4 = arith.constant 4 : index
    %c0_22 = arith.constant 0 : index
    %48 = vector.load %arg9[%c4, %c0_22] : memref<16x128xf32, #tpu.memory_space<vmem>>, vector<2x128xf32>
    %cst_23 = arith.constant dense<0.000000e+00> : vector<2x128xf32>
    %49 = tpu.matmul %46, %7, %cst_23 {dimension_numbers = #tpu.dot_dimension_numbers<[1], [0], [0], [1], [0, 0, 1, 1], [], []>} : vector<2x32xf32>, vector<32x128xf32>, vector<2x128xf32> -> vector<2x128xf32>
    %50 = arith.addf %48, %49 : vector<2x128xf32>
    %51 = arith.negf %50 : vector<2x128xf32>
    %52 = math.exp %51 : vector<2x128xf32>
    %cst_24 = arith.constant 1.000000e+00 : f32
    %53 = vector.broadcast %cst_24 : f32 to vector<2x128xf32>
    %54 = arith.addf %53, %52 : vector<2x128xf32>
    %55 = arith.divf %53, %54 : vector<2x128xf32>
    %56 = math.tanh %50 : vector<2x128xf32>
    %57 = vector.extract_strided_slice %55 {offsets = [0, 0], sizes = [2, 32], strides = [1, 1]} : vector<2x128xf32> to vector<2x32xf32>
    %58 = vector.extract_strided_slice %55 {offsets = [0, 32], sizes = [2, 32], strides = [1, 1]} : vector<2x128xf32> to vector<2x32xf32>
    %59 = vector.extract_strided_slice %56 {offsets = [0, 64], sizes = [2, 32], strides = [1, 1]} : vector<2x128xf32> to vector<2x32xf32>
    %60 = vector.extract_strided_slice %55 {offsets = [0, 96], sizes = [2, 32], strides = [1, 1]} : vector<2x128xf32> to vector<2x32xf32>
    %61 = arith.mulf %58, %44 : vector<2x32xf32>
    %62 = arith.mulf %57, %59 : vector<2x32xf32>
    %63 = arith.addf %61, %62 : vector<2x32xf32>
    %64 = math.tanh %63 : vector<2x32xf32>
    %65 = arith.mulf %60, %64 : vector<2x32xf32>
    %c4_25 = arith.constant 4 : index
    %c0_26 = arith.constant 0 : index
    %66 = vector.load %arg10[%c4_25, %c0_26] : memref<16x32xf32, #tpu.memory_space<vmem>>, vector<2x32xf32>
    tpu.vector_store %arg10[%c4_25, %c0_26], %65 {strides = array<i32>} : memref<16x32xf32, #tpu.memory_space<vmem>>, vector<2x32xf32>,
    %c6 = arith.constant 6 : index
    %c0_27 = arith.constant 0 : index
    %67 = vector.load %arg9[%c6, %c0_27] : memref<16x128xf32, #tpu.memory_space<vmem>>, vector<2x128xf32>
    %cst_28 = arith.constant dense<0.000000e+00> : vector<2x128xf32>
    %68 = tpu.matmul %65, %7, %cst_28 {dimension_numbers = #tpu.dot_dimension_numbers<[1], [0], [0], [1], [0, 0, 1, 1], [], []>} : vector<2x32xf32>, vector<32x128xf32>, vector<2x128xf32> -> vector<2x128xf32>
    %69 = arith.addf %67, %68 : vector<2x128xf32>
    %70 = arith.negf %69 : vector<2x128xf32>
    %71 = math.exp %70 : vector<2x128xf32>
    %cst_29 = arith.constant 1.000000e+00 : f32
    %72 = vector.broadcast %cst_29 : f32 to vector<2x128xf32>
    %73 = arith.addf %72, %71 : vector<2x128xf32>
    %74 = arith.divf %72, %73 : vector<2x128xf32>
    %75 = math.tanh %69 : vector<2x128xf32>
    %76 = vector.extract_strided_slice %74 {offsets = [0, 0], sizes = [2, 32], strides = [1, 1]} : vector<2x128xf32> to vector<2x32xf32>
    %77 = vector.extract_strided_slice %74 {offsets = [0, 32], sizes = [2, 32], strides = [1, 1]} : vector<2x128xf32> to vector<2x32xf32>
    %78 = vector.extract_strided_slice %75 {offsets = [0, 64], sizes = [2, 32], strides = [1, 1]} : vector<2x128xf32> to vector<2x32xf32>
    %79 = vector.extract_strided_slice %74 {offsets = [0, 96], sizes = [2, 32], strides = [1, 1]} : vector<2x128xf32> to vector<2x32xf32>
    %80 = arith.mulf %77, %63 : vector<2x32xf32>
    %81 = arith.mulf %76, %78 : vector<2x32xf32>
    %82 = arith.addf %80, %81 : vector<2x32xf32>
    %83 = math.tanh %82 : vector<2x32xf32>
    %84 = arith.mulf %79, %83 : vector<2x32xf32>
    %c6_30 = arith.constant 6 : index
    %c0_31 = arith.constant 0 : index
    %85 = vector.load %arg10[%c6_30, %c0_31] : memref<16x32xf32, #tpu.memory_space<vmem>>, vector<2x32xf32>
    tpu.vector_store %arg10[%c6_30, %c0_31], %84 {strides = array<i32>} : memref<16x32xf32, #tpu.memory_space<vmem>>, vector<2x32xf32>,
    %c8 = arith.constant 8 : index
    %c0_32 = arith.constant 0 : index
    %86 = vector.load %arg9[%c8, %c0_32] : memref<16x128xf32, #tpu.memory_space<vmem>>, vector<2x128xf32>
    %cst_33 = arith.constant dense<0.000000e+00> : vector<2x128xf32>
    %87 = tpu.matmul %84, %7, %cst_33 {dimension_numbers = #tpu.dot_dimension_numbers<[1], [0], [0], [1], [0, 0, 1, 1], [], []>} : vector<2x32xf32>, vector<32x128xf32>, vector<2x128xf32> -> vector<2x128xf32>
    %88 = arith.addf %86, %87 : vector<2x128xf32>
    %89 = arith.negf %88 : vector<2x128xf32>
    %90 = math.exp %89 : vector<2x128xf32>
    %cst_34 = arith.constant 1.000000e+00 : f32
    %91 = vector.broadcast %cst_34 : f32 to vector<2x128xf32>
    %92 = arith.addf %91, %90 : vector<2x128xf32>
    %93 = arith.divf %91, %92 : vector<2x128xf32>
    %94 = math.tanh %88 : vector<2x128xf32>
    %95 = vector.extract_strided_slice %93 {offsets = [0, 0], sizes = [2, 32], strides = [1, 1]} : vector<2x128xf32> to vector<2x32xf32>
    %96 = vector.extract_strided_slice %93 {offsets = [0, 32], sizes = [2, 32], strides = [1, 1]} : vector<2x128xf32> to vector<2x32xf32>
    %97 = vector.extract_strided_slice %94 {offsets = [0, 64], sizes = [2, 32], strides = [1, 1]} : vector<2x128xf32> to vector<2x32xf32>
    %98 = vector.extract_strided_slice %93 {offsets = [0, 96], sizes = [2, 32], strides = [1, 1]} : vector<2x128xf32> to vector<2x32xf32>
    %99 = arith.mulf %96, %82 : vector<2x32xf32>
    %100 = arith.mulf %95, %97 : vector<2x32xf32>
    %101 = arith.addf %99, %100 : vector<2x32xf32>
    %102 = math.tanh %101 : vector<2x32xf32>
    %103 = arith.mulf %98, %102 : vector<2x32xf32>
    %c8_35 = arith.constant 8 : index
    %c0_36 = arith.constant 0 : index
    %104 = vector.load %arg10[%c8_35, %c0_36] : memref<16x32xf32, #tpu.memory_space<vmem>>, vector<2x32xf32>
    tpu.vector_store %arg10[%c8_35, %c0_36], %103 {strides = array<i32>} : memref<16x32xf32, #tpu.memory_space<vmem>>, vector<2x32xf32>,
    %c10 = arith.constant 10 : index
    %c0_37 = arith.constant 0 : index
    %105 = vector.load %arg9[%c10, %c0_37] : memref<16x128xf32, #tpu.memory_space<vmem>>, vector<2x128xf32>
    %cst_38 = arith.constant dense<0.000000e+00> : vector<2x128xf32>
    %106 = tpu.matmul %103, %7, %cst_38 {dimension_numbers = #tpu.dot_dimension_numbers<[1], [0], [0], [1], [0, 0, 1, 1], [], []>} : vector<2x32xf32>, vector<32x128xf32>, vector<2x128xf32> -> vector<2x128xf32>
    %107 = arith.addf %105, %106 : vector<2x128xf32>
    %108 = arith.negf %107 : vector<2x128xf32>
    %109 = math.exp %108 : vector<2x128xf32>
    %cst_39 = arith.constant 1.000000e+00 : f32
    %110 = vector.broadcast %cst_39 : f32 to vector<2x128xf32>
    %111 = arith.addf %110, %109 : vector<2x128xf32>
    %112 = arith.divf %110, %111 : vector<2x128xf32>
    %113 = math.tanh %107 : vector<2x128xf32>
    %114 = vector.extract_strided_slice %112 {offsets = [0, 0], sizes = [2, 32], strides = [1, 1]} : vector<2x128xf32> to vector<2x32xf32>
    %115 = vector.extract_strided_slice %112 {offsets = [0, 32], sizes = [2, 32], strides = [1, 1]} : vector<2x128xf32> to vector<2x32xf32>
    %116 = vector.extract_strided_slice %113 {offsets = [0, 64], sizes = [2, 32], strides = [1, 1]} : vector<2x128xf32> to vector<2x32xf32>
    %117 = vector.extract_strided_slice %112 {offsets = [0, 96], sizes = [2, 32], strides = [1, 1]} : vector<2x128xf32> to vector<2x32xf32>
    %118 = arith.mulf %115, %101 : vector<2x32xf32>
    %119 = arith.mulf %114, %116 : vector<2x32xf32>
    %120 = arith.addf %118, %119 : vector<2x32xf32>
    %121 = math.tanh %120 : vector<2x32xf32>
    %122 = arith.mulf %117, %121 : vector<2x32xf32>
    %c10_40 = arith.constant 10 : index
    %c0_41 = arith.constant 0 : index
    %123 = vector.load %arg10[%c10_40, %c0_41] : memref<16x32xf32, #tpu.memory_space<vmem>>, vector<2x32xf32>
    tpu.vector_store %arg10[%c10_40, %c0_41], %122 {strides = array<i32>} : memref<16x32xf32, #tpu.memory_space<vmem>>, vector<2x32xf32>,
    %c12 = arith.constant 12 : index
    %c0_42 = arith.constant 0 : index
    %124 = vector.load %arg9[%c12, %c0_42] : memref<16x128xf32, #tpu.memory_space<vmem>>, vector<2x128xf32>
    %cst_43 = arith.constant dense<0.000000e+00> : vector<2x128xf32>
    %125 = tpu.matmul %122, %7, %cst_43 {dimension_numbers = #tpu.dot_dimension_numbers<[1], [0], [0], [1], [0, 0, 1, 1], [], []>} : vector<2x32xf32>, vector<32x128xf32>, vector<2x128xf32> -> vector<2x128xf32>
    %126 = arith.addf %124, %125 : vector<2x128xf32>
    %127 = arith.negf %126 : vector<2x128xf32>
    %128 = math.exp %127 : vector<2x128xf32>
    %cst_44 = arith.constant 1.000000e+00 : f32
    %129 = vector.broadcast %cst_44 : f32 to vector<2x128xf32>
    %130 = arith.addf %129, %128 : vector<2x128xf32>
    %131 = arith.divf %129, %130 : vector<2x128xf32>
    %132 = math.tanh %126 : vector<2x128xf32>
    %133 = vector.extract_strided_slice %131 {offsets = [0, 0], sizes = [2, 32], strides = [1, 1]} : vector<2x128xf32> to vector<2x32xf32>
    %134 = vector.extract_strided_slice %131 {offsets = [0, 32], sizes = [2, 32], strides = [1, 1]} : vector<2x128xf32> to vector<2x32xf32>
    %135 = vector.extract_strided_slice %132 {offsets = [0, 64], sizes = [2, 32], strides = [1, 1]} : vector<2x128xf32> to vector<2x32xf32>
    %136 = vector.extract_strided_slice %131 {offsets = [0, 96], sizes = [2, 32], strides = [1, 1]} : vector<2x128xf32> to vector<2x32xf32>
    %137 = arith.mulf %134, %120 : vector<2x32xf32>
    %138 = arith.mulf %133, %135 : vector<2x32xf32>
    %139 = arith.addf %137, %138 : vector<2x32xf32>
    %140 = math.tanh %139 : vector<2x32xf32>
    %141 = arith.mulf %136, %140 : vector<2x32xf32>
    %c12_45 = arith.constant 12 : index
    %c0_46 = arith.constant 0 : index
    %142 = vector.load %arg10[%c12_45, %c0_46] : memref<16x32xf32, #tpu.memory_space<vmem>>, vector<2x32xf32>
    tpu.vector_store %arg10[%c12_45, %c0_46], %141 {strides = array<i32>} : memref<16x32xf32, #tpu.memory_space<vmem>>, vector<2x32xf32>,
    %c14 = arith.constant 14 : index
    %c0_47 = arith.constant 0 : index
    %143 = vector.load %arg9[%c14, %c0_47] : memref<16x128xf32, #tpu.memory_space<vmem>>, vector<2x128xf32>
    %cst_48 = arith.constant dense<0.000000e+00> : vector<2x128xf32>
    %144 = tpu.matmul %141, %7, %cst_48 {dimension_numbers = #tpu.dot_dimension_numbers<[1], [0], [0], [1], [0, 0, 1, 1], [], []>} : vector<2x32xf32>, vector<32x128xf32>, vector<2x128xf32> -> vector<2x128xf32>
    %145 = arith.addf %143, %144 : vector<2x128xf32>
    %146 = arith.negf %145 : vector<2x128xf32>
    %147 = math.exp %146 : vector<2x128xf32>
    %cst_49 = arith.constant 1.000000e+00 : f32
    %148 = vector.broadcast %cst_49 : f32 to vector<2x128xf32>
    %149 = arith.addf %148, %147 : vector<2x128xf32>
    %150 = arith.divf %148, %149 : vector<2x128xf32>
    %151 = math.tanh %145 : vector<2x128xf32>
    %152 = vector.extract_strided_slice %150 {offsets = [0, 0], sizes = [2, 32], strides = [1, 1]} : vector<2x128xf32> to vector<2x32xf32>
    %153 = vector.extract_strided_slice %150 {offsets = [0, 32], sizes = [2, 32], strides = [1, 1]} : vector<2x128xf32> to vector<2x32xf32>
    %154 = vector.extract_strided_slice %151 {offsets = [0, 64], sizes = [2, 32], strides = [1, 1]} : vector<2x128xf32> to vector<2x32xf32>
    %155 = vector.extract_strided_slice %150 {offsets = [0, 96], sizes = [2, 32], strides = [1, 1]} : vector<2x128xf32> to vector<2x32xf32>
    %156 = arith.mulf %153, %139 : vector<2x32xf32>
    %157 = arith.mulf %152, %154 : vector<2x32xf32>
    %158 = arith.addf %156, %157 : vector<2x32xf32>
    %159 = math.tanh %158 : vector<2x32xf32>
    %160 = arith.mulf %155, %159 : vector<2x32xf32>
    %c14_50 = arith.constant 14 : index
    %c0_51 = arith.constant 0 : index
    %161 = vector.load %arg10[%c14_50, %c0_51] : memref<16x32xf32, #tpu.memory_space<vmem>>, vector<2x32xf32>
    tpu.vector_store %arg10[%c14_50, %c0_51], %160 {strides = array<i32>} : memref<16x32xf32, #tpu.memory_space<vmem>>, vector<2x32xf32>,
    %c0_52 = arith.constant 0 : index
    %c0_53 = arith.constant 0 : index
    %162 = vector.load %arg10[%c0_52, %c0_53] : memref<16x32xf32, #tpu.memory_space<vmem>>, vector<16x32xf32>
    %c0_54 = arith.constant 0 : index
    %c0_55 = arith.constant 0 : index
    %163 = vector.load %arg4[%c0_54, %c0_55] : memref<32x150xf32, #tpu.memory_space<vmem>>, vector<32x150xf32>
    %cst_56 = arith.constant dense<0.000000e+00> : vector<16x150xf32>
    %164 = tpu.matmul %162, %163, %cst_56 {dimension_numbers = #tpu.dot_dimension_numbers<[1], [0], [0], [1], [0, 0, 1, 1], [], []>} : vector<16x32xf32>, vector<32x150xf32>, vector<16x150xf32> -> vector<16x150xf32>
    %165 = math.tanh %164 : vector<16x150xf32>
    %c0_57 = arith.constant 0 : index
    %c0_58 = arith.constant 0 : index
    %166 = vector.load %arg5[%c0_57, %c0_58] : memref<150x128xf32, #tpu.memory_space<vmem>>, vector<150x128xf32>
    %cst_59 = arith.constant dense<0.000000e+00> : vector<16x128xf32>
    %167 = tpu.matmul %165, %166, %cst_59 {dimension_numbers = #tpu.dot_dimension_numbers<[1], [0], [0], [1], [0, 0, 1, 1], [], []>} : vector<16x150xf32>, vector<150x128xf32>, vector<16x128xf32> -> vector<16x128xf32>
    %c0_60 = arith.constant 0 : index
    %c0_61 = arith.constant 0 : index
    %168 = vector.load %arg11[%c0_60, %c0_61] : memref<16x128xf32, #tpu.memory_space<vmem>>, vector<16x128xf32>
    tpu.vector_store %arg11[%c0_60, %c0_61], %167 {strides = array<i32>} : memref<16x128xf32, #tpu.memory_space<vmem>>, vector<16x128xf32>,
    %c0_62 = arith.constant 0 : index
    %c0_63 = arith.constant 0 : index
    %169 = vector.load %arg11[%c0_62, %c0_63] : memref<16x128xf32, #tpu.memory_space<vmem>>, vector<2x128xf32>
    %c2_64 = arith.constant 2 : index
    %c0_65 = arith.constant 0 : index
    %170 = vector.load %arg11[%c2_64, %c0_65] : memref<16x128xf32, #tpu.memory_space<vmem>>, vector<2x128xf32>
    %c4_66 = arith.constant 4 : index
    %c0_67 = arith.constant 0 : index
    %171 = vector.load %arg11[%c4_66, %c0_67] : memref<16x128xf32, #tpu.memory_space<vmem>>, vector<2x128xf32>
    %c6_68 = arith.constant 6 : index
    %c0_69 = arith.constant 0 : index
    %172 = vector.load %arg11[%c6_68, %c0_69] : memref<16x128xf32, #tpu.memory_space<vmem>>, vector<2x128xf32>
    %c8_70 = arith.constant 8 : index
    %c0_71 = arith.constant 0 : index
    %173 = vector.load %arg11[%c8_70, %c0_71] : memref<16x128xf32, #tpu.memory_space<vmem>>, vector<2x128xf32>
    %c10_72 = arith.constant 10 : index
    %c0_73 = arith.constant 0 : index
    %174 = vector.load %arg11[%c10_72, %c0_73] : memref<16x128xf32, #tpu.memory_space<vmem>>, vector<2x128xf32>
    %c12_74 = arith.constant 12 : index
    %c0_75 = arith.constant 0 : index
    %175 = vector.load %arg11[%c12_74, %c0_75] : memref<16x128xf32, #tpu.memory_space<vmem>>, vector<2x128xf32>
    %c14_76 = arith.constant 14 : index
    %c0_77 = arith.constant 0 : index
    %176 = vector.load %arg11[%c14_76, %c0_77] : memref<16x128xf32, #tpu.memory_space<vmem>>, vector<2x128xf32>
    %177 = arith.maximumf %169, %170 : vector<2x128xf32>
    %178 = arith.maximumf %177, %171 : vector<2x128xf32>
    %179 = arith.maximumf %178, %172 : vector<2x128xf32>
    %180 = arith.maximumf %179, %173 : vector<2x128xf32>
    %181 = arith.maximumf %180, %174 : vector<2x128xf32>
    %182 = arith.maximumf %181, %175 : vector<2x128xf32>
    %183 = arith.maximumf %182, %176 : vector<2x128xf32>
    %184 = arith.subf %169, %183 : vector<2x128xf32>
    %185 = math.exp %184 : vector<2x128xf32>
    %186 = arith.subf %170, %183 : vector<2x128xf32>
    %187 = math.exp %186 : vector<2x128xf32>
    %188 = arith.subf %171, %183 : vector<2x128xf32>
    %189 = math.exp %188 : vector<2x128xf32>
    %190 = arith.subf %172, %183 : vector<2x128xf32>
    %191 = math.exp %190 : vector<2x128xf32>
    %192 = arith.subf %173, %183 : vector<2x128xf32>
    %193 = math.exp %192 : vector<2x128xf32>
    %194 = arith.subf %174, %183 : vector<2x128xf32>
    %195 = math.exp %194 : vector<2x128xf32>
    %196 = arith.subf %175, %183 : vector<2x128xf32>
    %197 = math.exp %196 : vector<2x128xf32>
    %198 = arith.subf %176, %183 : vector<2x128xf32>
    %199 = math.exp %198 : vector<2x128xf32>
    %200 = arith.addf %185, %187 : vector<2x128xf32>
    %201 = arith.addf %200, %189 : vector<2x128xf32>
    %202 = arith.addf %201, %191 : vector<2x128xf32>
    %203 = arith.addf %202, %193 : vector<2x128xf32>
    %204 = arith.addf %203, %195 : vector<2x128xf32>
    %205 = arith.addf %204, %197 : vector<2x128xf32>
    %206 = arith.addf %205, %199 : vector<2x128xf32>
    %cst_78 = arith.constant 1.000000e+00 : f32
    %207 = vector.broadcast %cst_78 : f32 to vector<2x128xf32>
    %208 = arith.divf %207, %206 : vector<2x128xf32>
    %c0_79 = arith.constant 0 : index
    %c0_80 = arith.constant 0 : index
    %209 = vector.load %arg10[%c0_79, %c0_80] : memref<16x32xf32, #tpu.memory_space<vmem>>, vector<2x32xf32>
    %c2_81 = arith.constant 2 : index
    %c0_82 = arith.constant 0 : index
    %210 = vector.load %arg10[%c2_81, %c0_82] : memref<16x32xf32, #tpu.memory_space<vmem>>, vector<2x32xf32>
    %c4_83 = arith.constant 4 : index
    %c0_84 = arith.constant 0 : index
    %211 = vector.load %arg10[%c4_83, %c0_84] : memref<16x32xf32, #tpu.memory_space<vmem>>, vector<2x32xf32>
    %c6_85 = arith.constant 6 : index
    %c0_86 = arith.constant 0 : index
    %212 = vector.load %arg10[%c6_85, %c0_86] : memref<16x32xf32, #tpu.memory_space<vmem>>, vector<2x32xf32>
    %c8_87 = arith.constant 8 : index
    %c0_88 = arith.constant 0 : index
    %213 = vector.load %arg10[%c8_87, %c0_88] : memref<16x32xf32, #tpu.memory_space<vmem>>, vector<2x32xf32>
    %c10_89 = arith.constant 10 : index
    %c0_90 = arith.constant 0 : index
    %214 = vector.load %arg10[%c10_89, %c0_90] : memref<16x32xf32, #tpu.memory_space<vmem>>, vector<2x32xf32>
    %c12_91 = arith.constant 12 : index
    %c0_92 = arith.constant 0 : index
    %215 = vector.load %arg10[%c12_91, %c0_92] : memref<16x32xf32, #tpu.memory_space<vmem>>, vector<2x32xf32>
    %c14_93 = arith.constant 14 : index
    %c0_94 = arith.constant 0 : index
    %216 = vector.load %arg10[%c14_93, %c0_94] : memref<16x32xf32, #tpu.memory_space<vmem>>, vector<2x32xf32>
    %cst_95 = arith.constant 0.000000e+00 : f32
    %217 = vector.broadcast %cst_95 : f32 to vector<2x5xf32>
    %218 = vector.extract_strided_slice %185 {offsets = [0, 0], sizes = [2, 1], strides = [1, 1]} : vector<2x128xf32> to vector<2x1xf32>
    %219 = vector.broadcast %218 : vector<2x1xf32> to vector<2x32xf32>
    %220 = arith.mulf %209, %219 : vector<2x32xf32>
    %221 = vector.extract_strided_slice %187 {offsets = [0, 0], sizes = [2, 1], strides = [1, 1]} : vector<2x128xf32> to vector<2x1xf32>
    %222 = vector.broadcast %221 : vector<2x1xf32> to vector<2x32xf32>
    %223 = arith.mulf %210, %222 : vector<2x32xf32>
    %224 = arith.addf %220, %223 : vector<2x32xf32>
    %225 = vector.extract_strided_slice %189 {offsets = [0, 0], sizes = [2, 1], strides = [1, 1]} : vector<2x128xf32> to vector<2x1xf32>
    %226 = vector.broadcast %225 : vector<2x1xf32> to vector<2x32xf32>
    %227 = arith.mulf %211, %226 : vector<2x32xf32>
    %228 = arith.addf %224, %227 : vector<2x32xf32>
    %229 = vector.extract_strided_slice %191 {offsets = [0, 0], sizes = [2, 1], strides = [1, 1]} : vector<2x128xf32> to vector<2x1xf32>
    %230 = vector.broadcast %229 : vector<2x1xf32> to vector<2x32xf32>
    %231 = arith.mulf %212, %230 : vector<2x32xf32>
    %232 = arith.addf %228, %231 : vector<2x32xf32>
    %233 = vector.extract_strided_slice %193 {offsets = [0, 0], sizes = [2, 1], strides = [1, 1]} : vector<2x128xf32> to vector<2x1xf32>
    %234 = vector.broadcast %233 : vector<2x1xf32> to vector<2x32xf32>
    %235 = arith.mulf %213, %234 : vector<2x32xf32>
    %236 = arith.addf %232, %235 : vector<2x32xf32>
    %237 = vector.extract_strided_slice %195 {offsets = [0, 0], sizes = [2, 1], strides = [1, 1]} : vector<2x128xf32> to vector<2x1xf32>
    %238 = vector.broadcast %237 : vector<2x1xf32> to vector<2x32xf32>
    %239 = arith.mulf %214, %238 : vector<2x32xf32>
    %240 = arith.addf %236, %239 : vector<2x32xf32>
    %241 = vector.extract_strided_slice %197 {offsets = [0, 0], sizes = [2, 1], strides = [1, 1]} : vector<2x128xf32> to vector<2x1xf32>
    %242 = vector.broadcast %241 : vector<2x1xf32> to vector<2x32xf32>
    %243 = arith.mulf %215, %242 : vector<2x32xf32>
    %244 = arith.addf %240, %243 : vector<2x32xf32>
    %245 = vector.extract_strided_slice %199 {offsets = [0, 0], sizes = [2, 1], strides = [1, 1]} : vector<2x128xf32> to vector<2x1xf32>
    %246 = vector.broadcast %245 : vector<2x1xf32> to vector<2x32xf32>
    %247 = arith.mulf %216, %246 : vector<2x32xf32>
    %248 = arith.addf %244, %247 : vector<2x32xf32>
    %249 = vector.extract_strided_slice %208 {offsets = [0, 0], sizes = [2, 1], strides = [1, 1]} : vector<2x128xf32> to vector<2x1xf32>
    %250 = vector.broadcast %249 : vector<2x1xf32> to vector<2x32xf32>
    %251 = arith.mulf %248, %250 : vector<2x32xf32>
    %c0_96 = arith.constant 0 : index
    %c0_97 = arith.constant 0 : index
    %c0_98 = arith.constant 0 : index
    %252 = vector.load %arg6[%c0_96, %c0_97, %c0_98] : memref<10x32x5xf32, #tpu.memory_space<vmem>>, vector<1x32x5xf32>
    %253 = vector.shape_cast %252 : vector<1x32x5xf32> to vector<32x5xf32>
    %cst_99 = arith.constant dense<0.000000e+00> : vector<2x5xf32>
    %254 = tpu.matmul %251, %253, %cst_99 {dimension_numbers = #tpu.dot_dimension_numbers<[1], [0], [0], [1], [0, 0, 1, 1], [], []>} : vector<2x32xf32>, vector<32x5xf32>, vector<2x5xf32> -> vector<2x5xf32>
    %255 = arith.addf %217, %254 : vector<2x5xf32>
    %256 = vector.extract_strided_slice %185 {offsets = [0, 1], sizes = [2, 1], strides = [1, 1]} : vector<2x128xf32> to vector<2x1xf32>
    %257 = vector.broadcast %256 : vector<2x1xf32> to vector<2x32xf32>
    %258 = arith.mulf %209, %257 : vector<2x32xf32>
    %259 = vector.extract_strided_slice %187 {offsets = [0, 1], sizes = [2, 1], strides = [1, 1]} : vector<2x128xf32> to vector<2x1xf32>
    %260 = vector.broadcast %259 : vector<2x1xf32> to vector<2x32xf32>
    %261 = arith.mulf %210, %260 : vector<2x32xf32>
    %262 = arith.addf %258, %261 : vector<2x32xf32>
    %263 = vector.extract_strided_slice %189 {offsets = [0, 1], sizes = [2, 1], strides = [1, 1]} : vector<2x128xf32> to vector<2x1xf32>
    %264 = vector.broadcast %263 : vector<2x1xf32> to vector<2x32xf32>
    %265 = arith.mulf %211, %264 : vector<2x32xf32>
    %266 = arith.addf %262, %265 : vector<2x32xf32>
    %267 = vector.extract_strided_slice %191 {offsets = [0, 1], sizes = [2, 1], strides = [1, 1]} : vector<2x128xf32> to vector<2x1xf32>
    %268 = vector.broadcast %267 : vector<2x1xf32> to vector<2x32xf32>
    %269 = arith.mulf %212, %268 : vector<2x32xf32>
    %270 = arith.addf %266, %269 : vector<2x32xf32>
    %271 = vector.extract_strided_slice %193 {offsets = [0, 1], sizes = [2, 1], strides = [1, 1]} : vector<2x128xf32> to vector<2x1xf32>
    %272 = vector.broadcast %271 : vector<2x1xf32> to vector<2x32xf32>
    %273 = arith.mulf %213, %272 : vector<2x32xf32>
    %274 = arith.addf %270, %273 : vector<2x32xf32>
    %275 = vector.extract_strided_slice %195 {offsets = [0, 1], sizes = [2, 1], strides = [1, 1]} : vector<2x128xf32> to vector<2x1xf32>
    %276 = vector.broadcast %275 : vector<2x1xf32> to vector<2x32xf32>
    %277 = arith.mulf %214, %276 : vector<2x32xf32>
    %278 = arith.addf %274, %277 : vector<2x32xf32>
    %279 = vector.extract_strided_slice %197 {offsets = [0, 1], sizes = [2, 1], strides = [1, 1]} : vector<2x128xf32> to vector<2x1xf32>
    %280 = vector.broadcast %279 : vector<2x1xf32> to vector<2x32xf32>
    %281 = arith.mulf %215, %280 : vector<2x32xf32>
    %282 = arith.addf %278, %281 : vector<2x32xf32>
    %283 = vector.extract_strided_slice %199 {offsets = [0, 1], sizes = [2, 1], strides = [1, 1]} : vector<2x128xf32> to vector<2x1xf32>
    %284 = vector.broadcast %283 : vector<2x1xf32> to vector<2x32xf32>
    %285 = arith.mulf %216, %284 : vector<2x32xf32>
    %286 = arith.addf %282, %285 : vector<2x32xf32>
    %287 = vector.extract_strided_slice %208 {offsets = [0, 1], sizes = [2, 1], strides = [1, 1]} : vector<2x128xf32> to vector<2x1xf32>
    %288 = vector.broadcast %287 : vector<2x1xf32> to vector<2x32xf32>
    %289 = arith.mulf %286, %288 : vector<2x32xf32>
    %c1 = arith.constant 1 : index
    %c0_100 = arith.constant 0 : index
    %c0_101 = arith.constant 0 : index
    %290 = vector.load %arg6[%c1, %c0_100, %c0_101] : memref<10x32x5xf32, #tpu.memory_space<vmem>>, vector<1x32x5xf32>
    %291 = vector.shape_cast %290 : vector<1x32x5xf32> to vector<32x5xf32>
    %cst_102 = arith.constant dense<0.000000e+00> : vector<2x5xf32>
    %292 = tpu.matmul %289, %291, %cst_102 {dimension_numbers = #tpu.dot_dimension_numbers<[1], [0], [0], [1], [0, 0, 1, 1], [], []>} : vector<2x32xf32>, vector<32x5xf32>, vector<2x5xf32> -> vector<2x5xf32>
    %293 = arith.addf %255, %292 : vector<2x5xf32>
    %294 = vector.extract_strided_slice %185 {offsets = [0, 2], sizes = [2, 1], strides = [1, 1]} : vector<2x128xf32> to vector<2x1xf32>
    %295 = vector.broadcast %294 : vector<2x1xf32> to vector<2x32xf32>
    %296 = arith.mulf %209, %295 : vector<2x32xf32>
    %297 = vector.extract_strided_slice %187 {offsets = [0, 2], sizes = [2, 1], strides = [1, 1]} : vector<2x128xf32> to vector<2x1xf32>
    %298 = vector.broadcast %297 : vector<2x1xf32> to vector<2x32xf32>
    %299 = arith.mulf %210, %298 : vector<2x32xf32>
    %300 = arith.addf %296, %299 : vector<2x32xf32>
    %301 = vector.extract_strided_slice %189 {offsets = [0, 2], sizes = [2, 1], strides = [1, 1]} : vector<2x128xf32> to vector<2x1xf32>
    %302 = vector.broadcast %301 : vector<2x1xf32> to vector<2x32xf32>
    %303 = arith.mulf %211, %302 : vector<2x32xf32>
    %304 = arith.addf %300, %303 : vector<2x32xf32>
    %305 = vector.extract_strided_slice %191 {offsets = [0, 2], sizes = [2, 1], strides = [1, 1]} : vector<2x128xf32> to vector<2x1xf32>
    %306 = vector.broadcast %305 : vector<2x1xf32> to vector<2x32xf32>
    %307 = arith.mulf %212, %306 : vector<2x32xf32>
    %308 = arith.addf %304, %307 : vector<2x32xf32>
    %309 = vector.extract_strided_slice %193 {offsets = [0, 2], sizes = [2, 1], strides = [1, 1]} : vector<2x128xf32> to vector<2x1xf32>
    %310 = vector.broadcast %309 : vector<2x1xf32> to vector<2x32xf32>
    %311 = arith.mulf %213, %310 : vector<2x32xf32>
    %312 = arith.addf %308, %311 : vector<2x32xf32>
    %313 = vector.extract_strided_slice %195 {offsets = [0, 2], sizes = [2, 1], strides = [1, 1]} : vector<2x128xf32> to vector<2x1xf32>
    %314 = vector.broadcast %313 : vector<2x1xf32> to vector<2x32xf32>
    %315 = arith.mulf %214, %314 : vector<2x32xf32>
    %316 = arith.addf %312, %315 : vector<2x32xf32>
    %317 = vector.extract_strided_slice %197 {offsets = [0, 2], sizes = [2, 1], strides = [1, 1]} : vector<2x128xf32> to vector<2x1xf32>
    %318 = vector.broadcast %317 : vector<2x1xf32> to vector<2x32xf32>
    %319 = arith.mulf %215, %318 : vector<2x32xf32>
    %320 = arith.addf %316, %319 : vector<2x32xf32>
    %321 = vector.extract_strided_slice %199 {offsets = [0, 2], sizes = [2, 1], strides = [1, 1]} : vector<2x128xf32> to vector<2x1xf32>
    %322 = vector.broadcast %321 : vector<2x1xf32> to vector<2x32xf32>
    %323 = arith.mulf %216, %322 : vector<2x32xf32>
    %324 = arith.addf %320, %323 : vector<2x32xf32>
    %325 = vector.extract_strided_slice %208 {offsets = [0, 2], sizes = [2, 1], strides = [1, 1]} : vector<2x128xf32> to vector<2x1xf32>
    %326 = vector.broadcast %325 : vector<2x1xf32> to vector<2x32xf32>
    %327 = arith.mulf %324, %326 : vector<2x32xf32>
    %c2_103 = arith.constant 2 : index
    %c0_104 = arith.constant 0 : index
    %c0_105 = arith.constant 0 : index
    %328 = vector.load %arg6[%c2_103, %c0_104, %c0_105] : memref<10x32x5xf32, #tpu.memory_space<vmem>>, vector<1x32x5xf32>
    %329 = vector.shape_cast %328 : vector<1x32x5xf32> to vector<32x5xf32>
    %cst_106 = arith.constant dense<0.000000e+00> : vector<2x5xf32>
    %330 = tpu.matmul %327, %329, %cst_106 {dimension_numbers = #tpu.dot_dimension_numbers<[1], [0], [0], [1], [0, 0, 1, 1], [], []>} : vector<2x32xf32>, vector<32x5xf32>, vector<2x5xf32> -> vector<2x5xf32>
    %331 = arith.addf %293, %330 : vector<2x5xf32>
    %332 = vector.extract_strided_slice %185 {offsets = [0, 3], sizes = [2, 1], strides = [1, 1]} : vector<2x128xf32> to vector<2x1xf32>
    %333 = vector.broadcast %332 : vector<2x1xf32> to vector<2x32xf32>
    %334 = arith.mulf %209, %333 : vector<2x32xf32>
    %335 = vector.extract_strided_slice %187 {offsets = [0, 3], sizes = [2, 1], strides = [1, 1]} : vector<2x128xf32> to vector<2x1xf32>
    %336 = vector.broadcast %335 : vector<2x1xf32> to vector<2x32xf32>
    %337 = arith.mulf %210, %336 : vector<2x32xf32>
    %338 = arith.addf %334, %337 : vector<2x32xf32>
    %339 = vector.extract_strided_slice %189 {offsets = [0, 3], sizes = [2, 1], strides = [1, 1]} : vector<2x128xf32> to vector<2x1xf32>
    %340 = vector.broadcast %339 : vector<2x1xf32> to vector<2x32xf32>
    %341 = arith.mulf %211, %340 : vector<2x32xf32>
    %342 = arith.addf %338, %341 : vector<2x32xf32>
    %343 = vector.extract_strided_slice %191 {offsets = [0, 3], sizes = [2, 1], strides = [1, 1]} : vector<2x128xf32> to vector<2x1xf32>
    %344 = vector.broadcast %343 : vector<2x1xf32> to vector<2x32xf32>
    %345 = arith.mulf %212, %344 : vector<2x32xf32>
    %346 = arith.addf %342, %345 : vector<2x32xf32>
    %347 = vector.extract_strided_slice %193 {offsets = [0, 3], sizes = [2, 1], strides = [1, 1]} : vector<2x128xf32> to vector<2x1xf32>
    %348 = vector.broadcast %347 : vector<2x1xf32> to vector<2x32xf32>
    %349 = arith.mulf %213, %348 : vector<2x32xf32>
    %350 = arith.addf %346, %349 : vector<2x32xf32>
    %351 = vector.extract_strided_slice %195 {offsets = [0, 3], sizes = [2, 1], strides = [1, 1]} : vector<2x128xf32> to vector<2x1xf32>
    %352 = vector.broadcast %351 : vector<2x1xf32> to vector<2x32xf32>
    %353 = arith.mulf %214, %352 : vector<2x32xf32>
    %354 = arith.addf %350, %353 : vector<2x32xf32>
    %355 = vector.extract_strided_slice %197 {offsets = [0, 3], sizes = [2, 1], strides = [1, 1]} : vector<2x128xf32> to vector<2x1xf32>
    %356 = vector.broadcast %355 : vector<2x1xf32> to vector<2x32xf32>
    %357 = arith.mulf %215, %356 : vector<2x32xf32>
    %358 = arith.addf %354, %357 : vector<2x32xf32>
    %359 = vector.extract_strided_slice %199 {offsets = [0, 3], sizes = [2, 1], strides = [1, 1]} : vector<2x128xf32> to vector<2x1xf32>
    %360 = vector.broadcast %359 : vector<2x1xf32> to vector<2x32xf32>
    %361 = arith.mulf %216, %360 : vector<2x32xf32>
    %362 = arith.addf %358, %361 : vector<2x32xf32>
    %363 = vector.extract_strided_slice %208 {offsets = [0, 3], sizes = [2, 1], strides = [1, 1]} : vector<2x128xf32> to vector<2x1xf32>
    %364 = vector.broadcast %363 : vector<2x1xf32> to vector<2x32xf32>
    %365 = arith.mulf %362, %364 : vector<2x32xf32>
    %c3 = arith.constant 3 : index
    %c0_107 = arith.constant 0 : index
    %c0_108 = arith.constant 0 : index
    %366 = vector.load %arg6[%c3, %c0_107, %c0_108] : memref<10x32x5xf32, #tpu.memory_space<vmem>>, vector<1x32x5xf32>
    %367 = vector.shape_cast %366 : vector<1x32x5xf32> to vector<32x5xf32>
    %cst_109 = arith.constant dense<0.000000e+00> : vector<2x5xf32>
    %368 = tpu.matmul %365, %367, %cst_109 {dimension_numbers = #tpu.dot_dimension_numbers<[1], [0], [0], [1], [0, 0, 1, 1], [], []>} : vector<2x32xf32>, vector<32x5xf32>, vector<2x5xf32> -> vector<2x5xf32>
    %369 = arith.addf %331, %368 : vector<2x5xf32>
    %370 = vector.extract_strided_slice %185 {offsets = [0, 4], sizes = [2, 1], strides = [1, 1]} : vector<2x128xf32> to vector<2x1xf32>
    %371 = vector.broadcast %370 : vector<2x1xf32> to vector<2x32xf32>
    %372 = arith.mulf %209, %371 : vector<2x32xf32>
    %373 = vector.extract_strided_slice %187 {offsets = [0, 4], sizes = [2, 1], strides = [1, 1]} : vector<2x128xf32> to vector<2x1xf32>
    %374 = vector.broadcast %373 : vector<2x1xf32> to vector<2x32xf32>
    %375 = arith.mulf %210, %374 : vector<2x32xf32>
    %376 = arith.addf %372, %375 : vector<2x32xf32>
    %377 = vector.extract_strided_slice %189 {offsets = [0, 4], sizes = [2, 1], strides = [1, 1]} : vector<2x128xf32> to vector<2x1xf32>
    %378 = vector.broadcast %377 : vector<2x1xf32> to vector<2x32xf32>
    %379 = arith.mulf %211, %378 : vector<2x32xf32>
    %380 = arith.addf %376, %379 : vector<2x32xf32>
    %381 = vector.extract_strided_slice %191 {offsets = [0, 4], sizes = [2, 1], strides = [1, 1]} : vector<2x128xf32> to vector<2x1xf32>
    %382 = vector.broadcast %381 : vector<2x1xf32> to vector<2x32xf32>
    %383 = arith.mulf %212, %382 : vector<2x32xf32>
    %384 = arith.addf %380, %383 : vector<2x32xf32>
    %385 = vector.extract_strided_slice %193 {offsets = [0, 4], sizes = [2, 1], strides = [1, 1]} : vector<2x128xf32> to vector<2x1xf32>
    %386 = vector.broadcast %385 : vector<2x1xf32> to vector<2x32xf32>
    %387 = arith.mulf %213, %386 : vector<2x32xf32>
    %388 = arith.addf %384, %387 : vector<2x32xf32>
    %389 = vector.extract_strided_slice %195 {offsets = [0, 4], sizes = [2, 1], strides = [1, 1]} : vector<2x128xf32> to vector<2x1xf32>
    %390 = vector.broadcast %389 : vector<2x1xf32> to vector<2x32xf32>
    %391 = arith.mulf %214, %390 : vector<2x32xf32>
    %392 = arith.addf %388, %391 : vector<2x32xf32>
    %393 = vector.extract_strided_slice %197 {offsets = [0, 4], sizes = [2, 1], strides = [1, 1]} : vector<2x128xf32> to vector<2x1xf32>
    %394 = vector.broadcast %393 : vector<2x1xf32> to vector<2x32xf32>
    %395 = arith.mulf %215, %394 : vector<2x32xf32>
    %396 = arith.addf %392, %395 : vector<2x32xf32>
    %397 = vector.extract_strided_slice %199 {offsets = [0, 4], sizes = [2, 1], strides = [1, 1]} : vector<2x128xf32> to vector<2x1xf32>
    %398 = vector.broadcast %397 : vector<2x1xf32> to vector<2x32xf32>
    %399 = arith.mulf %216, %398 : vector<2x32xf32>
    %400 = arith.addf %396, %399 : vector<2x32xf32>
    %401 = vector.extract_strided_slice %208 {offsets = [0, 4], sizes = [2, 1], strides = [1, 1]} : vector<2x128xf32> to vector<2x1xf32>
    %402 = vector.broadcast %401 : vector<2x1xf32> to vector<2x32xf32>
    %403 = arith.mulf %400, %402 : vector<2x32xf32>
    %c4_110 = arith.constant 4 : index
    %c0_111 = arith.constant 0 : index
    %c0_112 = arith.constant 0 : index
    %404 = vector.load %arg6[%c4_110, %c0_111, %c0_112] : memref<10x32x5xf32, #tpu.memory_space<vmem>>, vector<1x32x5xf32>
    %405 = vector.shape_cast %404 : vector<1x32x5xf32> to vector<32x5xf32>
    %cst_113 = arith.constant dense<0.000000e+00> : vector<2x5xf32>
    %406 = tpu.matmul %403, %405, %cst_113 {dimension_numbers = #tpu.dot_dimension_numbers<[1], [0], [0], [1], [0, 0, 1, 1], [], []>} : vector<2x32xf32>, vector<32x5xf32>, vector<2x5xf32> -> vector<2x5xf32>
    %407 = arith.addf %369, %406 : vector<2x5xf32>
    %408 = vector.extract_strided_slice %185 {offsets = [0, 5], sizes = [2, 1], strides = [1, 1]} : vector<2x128xf32> to vector<2x1xf32>
    %409 = vector.broadcast %408 : vector<2x1xf32> to vector<2x32xf32>
    %410 = arith.mulf %209, %409 : vector<2x32xf32>
    %411 = vector.extract_strided_slice %187 {offsets = [0, 5], sizes = [2, 1], strides = [1, 1]} : vector<2x128xf32> to vector<2x1xf32>
    %412 = vector.broadcast %411 : vector<2x1xf32> to vector<2x32xf32>
    %413 = arith.mulf %210, %412 : vector<2x32xf32>
    %414 = arith.addf %410, %413 : vector<2x32xf32>
    %415 = vector.extract_strided_slice %189 {offsets = [0, 5], sizes = [2, 1], strides = [1, 1]} : vector<2x128xf32> to vector<2x1xf32>
    %416 = vector.broadcast %415 : vector<2x1xf32> to vector<2x32xf32>
    %417 = arith.mulf %211, %416 : vector<2x32xf32>
    %418 = arith.addf %414, %417 : vector<2x32xf32>
    %419 = vector.extract_strided_slice %191 {offsets = [0, 5], sizes = [2, 1], strides = [1, 1]} : vector<2x128xf32> to vector<2x1xf32>
    %420 = vector.broadcast %419 : vector<2x1xf32> to vector<2x32xf32>
    %421 = arith.mulf %212, %420 : vector<2x32xf32>
    %422 = arith.addf %418, %421 : vector<2x32xf32>
    %423 = vector.extract_strided_slice %193 {offsets = [0, 5], sizes = [2, 1], strides = [1, 1]} : vector<2x128xf32> to vector<2x1xf32>
    %424 = vector.broadcast %423 : vector<2x1xf32> to vector<2x32xf32>
    %425 = arith.mulf %213, %424 : vector<2x32xf32>
    %426 = arith.addf %422, %425 : vector<2x32xf32>
    %427 = vector.extract_strided_slice %195 {offsets = [0, 5], sizes = [2, 1], strides = [1, 1]} : vector<2x128xf32> to vector<2x1xf32>
    %428 = vector.broadcast %427 : vector<2x1xf32> to vector<2x32xf32>
    %429 = arith.mulf %214, %428 : vector<2x32xf32>
    %430 = arith.addf %426, %429 : vector<2x32xf32>
    %431 = vector.extract_strided_slice %197 {offsets = [0, 5], sizes = [2, 1], strides = [1, 1]} : vector<2x128xf32> to vector<2x1xf32>
    %432 = vector.broadcast %431 : vector<2x1xf32> to vector<2x32xf32>
    %433 = arith.mulf %215, %432 : vector<2x32xf32>
    %434 = arith.addf %430, %433 : vector<2x32xf32>
    %435 = vector.extract_strided_slice %199 {offsets = [0, 5], sizes = [2, 1], strides = [1, 1]} : vector<2x128xf32> to vector<2x1xf32>
    %436 = vector.broadcast %435 : vector<2x1xf32> to vector<2x32xf32>
    %437 = arith.mulf %216, %436 : vector<2x32xf32>
    %438 = arith.addf %434, %437 : vector<2x32xf32>
    %439 = vector.extract_strided_slice %208 {offsets = [0, 5], sizes = [2, 1], strides = [1, 1]} : vector<2x128xf32> to vector<2x1xf32>
    %440 = vector.broadcast %439 : vector<2x1xf32> to vector<2x32xf32>
    %441 = arith.mulf %438, %440 : vector<2x32xf32>
    %c5 = arith.constant 5 : index
    %c0_114 = arith.constant 0 : index
    %c0_115 = arith.constant 0 : index
    %442 = vector.load %arg6[%c5, %c0_114, %c0_115] : memref<10x32x5xf32, #tpu.memory_space<vmem>>, vector<1x32x5xf32>
    %443 = vector.shape_cast %442 : vector<1x32x5xf32> to vector<32x5xf32>
    %cst_116 = arith.constant dense<0.000000e+00> : vector<2x5xf32>
    %444 = tpu.matmul %441, %443, %cst_116 {dimension_numbers = #tpu.dot_dimension_numbers<[1], [0], [0], [1], [0, 0, 1, 1], [], []>} : vector<2x32xf32>, vector<32x5xf32>, vector<2x5xf32> -> vector<2x5xf32>
    %445 = arith.addf %407, %444 : vector<2x5xf32>
    %446 = vector.extract_strided_slice %185 {offsets = [0, 6], sizes = [2, 1], strides = [1, 1]} : vector<2x128xf32> to vector<2x1xf32>
    %447 = vector.broadcast %446 : vector<2x1xf32> to vector<2x32xf32>
    %448 = arith.mulf %209, %447 : vector<2x32xf32>
    %449 = vector.extract_strided_slice %187 {offsets = [0, 6], sizes = [2, 1], strides = [1, 1]} : vector<2x128xf32> to vector<2x1xf32>
    %450 = vector.broadcast %449 : vector<2x1xf32> to vector<2x32xf32>
    %451 = arith.mulf %210, %450 : vector<2x32xf32>
    %452 = arith.addf %448, %451 : vector<2x32xf32>
    %453 = vector.extract_strided_slice %189 {offsets = [0, 6], sizes = [2, 1], strides = [1, 1]} : vector<2x128xf32> to vector<2x1xf32>
    %454 = vector.broadcast %453 : vector<2x1xf32> to vector<2x32xf32>
    %455 = arith.mulf %211, %454 : vector<2x32xf32>
    %456 = arith.addf %452, %455 : vector<2x32xf32>
    %457 = vector.extract_strided_slice %191 {offsets = [0, 6], sizes = [2, 1], strides = [1, 1]} : vector<2x128xf32> to vector<2x1xf32>
    %458 = vector.broadcast %457 : vector<2x1xf32> to vector<2x32xf32>
    %459 = arith.mulf %212, %458 : vector<2x32xf32>
    %460 = arith.addf %456, %459 : vector<2x32xf32>
    %461 = vector.extract_strided_slice %193 {offsets = [0, 6], sizes = [2, 1], strides = [1, 1]} : vector<2x128xf32> to vector<2x1xf32>
    %462 = vector.broadcast %461 : vector<2x1xf32> to vector<2x32xf32>
    %463 = arith.mulf %213, %462 : vector<2x32xf32>
    %464 = arith.addf %460, %463 : vector<2x32xf32>
    %465 = vector.extract_strided_slice %195 {offsets = [0, 6], sizes = [2, 1], strides = [1, 1]} : vector<2x128xf32> to vector<2x1xf32>
    %466 = vector.broadcast %465 : vector<2x1xf32> to vector<2x32xf32>
    %467 = arith.mulf %214, %466 : vector<2x32xf32>
    %468 = arith.addf %464, %467 : vector<2x32xf32>
    %469 = vector.extract_strided_slice %197 {offsets = [0, 6], sizes = [2, 1], strides = [1, 1]} : vector<2x128xf32> to vector<2x1xf32>
    %470 = vector.broadcast %469 : vector<2x1xf32> to vector<2x32xf32>
    %471 = arith.mulf %215, %470 : vector<2x32xf32>
    %472 = arith.addf %468, %471 : vector<2x32xf32>
    %473 = vector.extract_strided_slice %199 {offsets = [0, 6], sizes = [2, 1], strides = [1, 1]} : vector<2x128xf32> to vector<2x1xf32>
    %474 = vector.broadcast %473 : vector<2x1xf32> to vector<2x32xf32>
    %475 = arith.mulf %216, %474 : vector<2x32xf32>
    %476 = arith.addf %472, %475 : vector<2x32xf32>
    %477 = vector.extract_strided_slice %208 {offsets = [0, 6], sizes = [2, 1], strides = [1, 1]} : vector<2x128xf32> to vector<2x1xf32>
    %478 = vector.broadcast %477 : vector<2x1xf32> to vector<2x32xf32>
    %479 = arith.mulf %476, %478 : vector<2x32xf32>
    %c6_117 = arith.constant 6 : index
    %c0_118 = arith.constant 0 : index
    %c0_119 = arith.constant 0 : index
    %480 = vector.load %arg6[%c6_117, %c0_118, %c0_119] : memref<10x32x5xf32, #tpu.memory_space<vmem>>, vector<1x32x5xf32>
    %481 = vector.shape_cast %480 : vector<1x32x5xf32> to vector<32x5xf32>
    %cst_120 = arith.constant dense<0.000000e+00> : vector<2x5xf32>
    %482 = tpu.matmul %479, %481, %cst_120 {dimension_numbers = #tpu.dot_dimension_numbers<[1], [0], [0], [1], [0, 0, 1, 1], [], []>} : vector<2x32xf32>, vector<32x5xf32>, vector<2x5xf32> -> vector<2x5xf32>
    %483 = arith.addf %445, %482 : vector<2x5xf32>
    %484 = vector.extract_strided_slice %185 {offsets = [0, 7], sizes = [2, 1], strides = [1, 1]} : vector<2x128xf32> to vector<2x1xf32>
    %485 = vector.broadcast %484 : vector<2x1xf32> to vector<2x32xf32>
    %486 = arith.mulf %209, %485 : vector<2x32xf32>
    %487 = vector.extract_strided_slice %187 {offsets = [0, 7], sizes = [2, 1], strides = [1, 1]} : vector<2x128xf32> to vector<2x1xf32>
    %488 = vector.broadcast %487 : vector<2x1xf32> to vector<2x32xf32>
    %489 = arith.mulf %210, %488 : vector<2x32xf32>
    %490 = arith.addf %486, %489 : vector<2x32xf32>
    %491 = vector.extract_strided_slice %189 {offsets = [0, 7], sizes = [2, 1], strides = [1, 1]} : vector<2x128xf32> to vector<2x1xf32>
    %492 = vector.broadcast %491 : vector<2x1xf32> to vector<2x32xf32>
    %493 = arith.mulf %211, %492 : vector<2x32xf32>
    %494 = arith.addf %490, %493 : vector<2x32xf32>
    %495 = vector.extract_strided_slice %191 {offsets = [0, 7], sizes = [2, 1], strides = [1, 1]} : vector<2x128xf32> to vector<2x1xf32>
    %496 = vector.broadcast %495 : vector<2x1xf32> to vector<2x32xf32>
    %497 = arith.mulf %212, %496 : vector<2x32xf32>
    %498 = arith.addf %494, %497 : vector<2x32xf32>
    %499 = vector.extract_strided_slice %193 {offsets = [0, 7], sizes = [2, 1], strides = [1, 1]} : vector<2x128xf32> to vector<2x1xf32>
    %500 = vector.broadcast %499 : vector<2x1xf32> to vector<2x32xf32>
    %501 = arith.mulf %213, %500 : vector<2x32xf32>
    %502 = arith.addf %498, %501 : vector<2x32xf32>
    %503 = vector.extract_strided_slice %195 {offsets = [0, 7], sizes = [2, 1], strides = [1, 1]} : vector<2x128xf32> to vector<2x1xf32>
    %504 = vector.broadcast %503 : vector<2x1xf32> to vector<2x32xf32>
    %505 = arith.mulf %214, %504 : vector<2x32xf32>
    %506 = arith.addf %502, %505 : vector<2x32xf32>
    %507 = vector.extract_strided_slice %197 {offsets = [0, 7], sizes = [2, 1], strides = [1, 1]} : vector<2x128xf32> to vector<2x1xf32>
    %508 = vector.broadcast %507 : vector<2x1xf32> to vector<2x32xf32>
    %509 = arith.mulf %215, %508 : vector<2x32xf32>
    %510 = arith.addf %506, %509 : vector<2x32xf32>
    %511 = vector.extract_strided_slice %199 {offsets = [0, 7], sizes = [2, 1], strides = [1, 1]} : vector<2x128xf32> to vector<2x1xf32>
    %512 = vector.broadcast %511 : vector<2x1xf32> to vector<2x32xf32>
    %513 = arith.mulf %216, %512 : vector<2x32xf32>
    %514 = arith.addf %510, %513 : vector<2x32xf32>
    %515 = vector.extract_strided_slice %208 {offsets = [0, 7], sizes = [2, 1], strides = [1, 1]} : vector<2x128xf32> to vector<2x1xf32>
    %516 = vector.broadcast %515 : vector<2x1xf32> to vector<2x32xf32>
    %517 = arith.mulf %514, %516 : vector<2x32xf32>
    %c7 = arith.constant 7 : index
    %c0_121 = arith.constant 0 : index
    %c0_122 = arith.constant 0 : index
    %518 = vector.load %arg6[%c7, %c0_121, %c0_122] : memref<10x32x5xf32, #tpu.memory_space<vmem>>, vector<1x32x5xf32>
    %519 = vector.shape_cast %518 : vector<1x32x5xf32> to vector<32x5xf32>
    %cst_123 = arith.constant dense<0.000000e+00> : vector<2x5xf32>
    %520 = tpu.matmul %517, %519, %cst_123 {dimension_numbers = #tpu.dot_dimension_numbers<[1], [0], [0], [1], [0, 0, 1, 1], [], []>} : vector<2x32xf32>, vector<32x5xf32>, vector<2x5xf32> -> vector<2x5xf32>
    %521 = arith.addf %483, %520 : vector<2x5xf32>
    %522 = vector.extract_strided_slice %185 {offsets = [0, 8], sizes = [2, 1], strides = [1, 1]} : vector<2x128xf32> to vector<2x1xf32>
    %523 = vector.broadcast %522 : vector<2x1xf32> to vector<2x32xf32>
    %524 = arith.mulf %209, %523 : vector<2x32xf32>
    %525 = vector.extract_strided_slice %187 {offsets = [0, 8], sizes = [2, 1], strides = [1, 1]} : vector<2x128xf32> to vector<2x1xf32>
    %526 = vector.broadcast %525 : vector<2x1xf32> to vector<2x32xf32>
    %527 = arith.mulf %210, %526 : vector<2x32xf32>
    %528 = arith.addf %524, %527 : vector<2x32xf32>
    %529 = vector.extract_strided_slice %189 {offsets = [0, 8], sizes = [2, 1], strides = [1, 1]} : vector<2x128xf32> to vector<2x1xf32>
    %530 = vector.broadcast %529 : vector<2x1xf32> to vector<2x32xf32>
    %531 = arith.mulf %211, %530 : vector<2x32xf32>
    %532 = arith.addf %528, %531 : vector<2x32xf32>
    %533 = vector.extract_strided_slice %191 {offsets = [0, 8], sizes = [2, 1], strides = [1, 1]} : vector<2x128xf32> to vector<2x1xf32>
    %534 = vector.broadcast %533 : vector<2x1xf32> to vector<2x32xf32>
    %535 = arith.mulf %212, %534 : vector<2x32xf32>
    %536 = arith.addf %532, %535 : vector<2x32xf32>
    %537 = vector.extract_strided_slice %193 {offsets = [0, 8], sizes = [2, 1], strides = [1, 1]} : vector<2x128xf32> to vector<2x1xf32>
    %538 = vector.broadcast %537 : vector<2x1xf32> to vector<2x32xf32>
    %539 = arith.mulf %213, %538 : vector<2x32xf32>
    %540 = arith.addf %536, %539 : vector<2x32xf32>
    %541 = vector.extract_strided_slice %195 {offsets = [0, 8], sizes = [2, 1], strides = [1, 1]} : vector<2x128xf32> to vector<2x1xf32>
    %542 = vector.broadcast %541 : vector<2x1xf32> to vector<2x32xf32>
    %543 = arith.mulf %214, %542 : vector<2x32xf32>
    %544 = arith.addf %540, %543 : vector<2x32xf32>
    %545 = vector.extract_strided_slice %197 {offsets = [0, 8], sizes = [2, 1], strides = [1, 1]} : vector<2x128xf32> to vector<2x1xf32>
    %546 = vector.broadcast %545 : vector<2x1xf32> to vector<2x32xf32>
    %547 = arith.mulf %215, %546 : vector<2x32xf32>
    %548 = arith.addf %544, %547 : vector<2x32xf32>
    %549 = vector.extract_strided_slice %199 {offsets = [0, 8], sizes = [2, 1], strides = [1, 1]} : vector<2x128xf32> to vector<2x1xf32>
    %550 = vector.broadcast %549 : vector<2x1xf32> to vector<2x32xf32>
    %551 = arith.mulf %216, %550 : vector<2x32xf32>
    %552 = arith.addf %548, %551 : vector<2x32xf32>
    %553 = vector.extract_strided_slice %208 {offsets = [0, 8], sizes = [2, 1], strides = [1, 1]} : vector<2x128xf32> to vector<2x1xf32>
    %554 = vector.broadcast %553 : vector<2x1xf32> to vector<2x32xf32>
    %555 = arith.mulf %552, %554 : vector<2x32xf32>
    %c8_124 = arith.constant 8 : index
    %c0_125 = arith.constant 0 : index
    %c0_126 = arith.constant 0 : index
    %556 = vector.load %arg6[%c8_124, %c0_125, %c0_126] : memref<10x32x5xf32, #tpu.memory_space<vmem>>, vector<1x32x5xf32>
    %557 = vector.shape_cast %556 : vector<1x32x5xf32> to vector<32x5xf32>
    %cst_127 = arith.constant dense<0.000000e+00> : vector<2x5xf32>
    %558 = tpu.matmul %555, %557, %cst_127 {dimension_numbers = #tpu.dot_dimension_numbers<[1], [0], [0], [1], [0, 0, 1, 1], [], []>} : vector<2x32xf32>, vector<32x5xf32>, vector<2x5xf32> -> vector<2x5xf32>
    %559 = arith.addf %521, %558 : vector<2x5xf32>
    %560 = vector.extract_strided_slice %185 {offsets = [0, 9], sizes = [2, 1], strides = [1, 1]} : vector<2x128xf32> to vector<2x1xf32>
    %561 = vector.broadcast %560 : vector<2x1xf32> to vector<2x32xf32>
    %562 = arith.mulf %209, %561 : vector<2x32xf32>
    %563 = vector.extract_strided_slice %187 {offsets = [0, 9], sizes = [2, 1], strides = [1, 1]} : vector<2x128xf32> to vector<2x1xf32>
    %564 = vector.broadcast %563 : vector<2x1xf32> to vector<2x32xf32>
    %565 = arith.mulf %210, %564 : vector<2x32xf32>
    %566 = arith.addf %562, %565 : vector<2x32xf32>
    %567 = vector.extract_strided_slice %189 {offsets = [0, 9], sizes = [2, 1], strides = [1, 1]} : vector<2x128xf32> to vector<2x1xf32>
    %568 = vector.broadcast %567 : vector<2x1xf32> to vector<2x32xf32>
    %569 = arith.mulf %211, %568 : vector<2x32xf32>
    %570 = arith.addf %566, %569 : vector<2x32xf32>
    %571 = vector.extract_strided_slice %191 {offsets = [0, 9], sizes = [2, 1], strides = [1, 1]} : vector<2x128xf32> to vector<2x1xf32>
    %572 = vector.broadcast %571 : vector<2x1xf32> to vector<2x32xf32>
    %573 = arith.mulf %212, %572 : vector<2x32xf32>
    %574 = arith.addf %570, %573 : vector<2x32xf32>
    %575 = vector.extract_strided_slice %193 {offsets = [0, 9], sizes = [2, 1], strides = [1, 1]} : vector<2x128xf32> to vector<2x1xf32>
    %576 = vector.broadcast %575 : vector<2x1xf32> to vector<2x32xf32>
    %577 = arith.mulf %213, %576 : vector<2x32xf32>
    %578 = arith.addf %574, %577 : vector<2x32xf32>
    %579 = vector.extract_strided_slice %195 {offsets = [0, 9], sizes = [2, 1], strides = [1, 1]} : vector<2x128xf32> to vector<2x1xf32>
    %580 = vector.broadcast %579 : vector<2x1xf32> to vector<2x32xf32>
    %581 = arith.mulf %214, %580 : vector<2x32xf32>
    %582 = arith.addf %578, %581 : vector<2x32xf32>
    %583 = vector.extract_strided_slice %197 {offsets = [0, 9], sizes = [2, 1], strides = [1, 1]} : vector<2x128xf32> to vector<2x1xf32>
    %584 = vector.broadcast %583 : vector<2x1xf32> to vector<2x32xf32>
    %585 = arith.mulf %215, %584 : vector<2x32xf32>
    %586 = arith.addf %582, %585 : vector<2x32xf32>
    %587 = vector.extract_strided_slice %199 {offsets = [0, 9], sizes = [2, 1], strides = [1, 1]} : vector<2x128xf32> to vector<2x1xf32>
    %588 = vector.broadcast %587 : vector<2x1xf32> to vector<2x32xf32>
    %589 = arith.mulf %216, %588 : vector<2x32xf32>
    %590 = arith.addf %586, %589 : vector<2x32xf32>
    %591 = vector.extract_strided_slice %208 {offsets = [0, 9], sizes = [2, 1], strides = [1, 1]} : vector<2x128xf32> to vector<2x1xf32>
    %592 = vector.broadcast %591 : vector<2x1xf32> to vector<2x32xf32>
    %593 = arith.mulf %590, %592 : vector<2x32xf32>
    %c9 = arith.constant 9 : index
    %c0_128 = arith.constant 0 : index
    %c0_129 = arith.constant 0 : index
    %594 = vector.load %arg6[%c9, %c0_128, %c0_129] : memref<10x32x5xf32, #tpu.memory_space<vmem>>, vector<1x32x5xf32>
    %595 = vector.shape_cast %594 : vector<1x32x5xf32> to vector<32x5xf32>
    %cst_130 = arith.constant dense<0.000000e+00> : vector<2x5xf32>
    %596 = tpu.matmul %593, %595, %cst_130 {dimension_numbers = #tpu.dot_dimension_numbers<[1], [0], [0], [1], [0, 0, 1, 1], [], []>} : vector<2x32xf32>, vector<32x5xf32>, vector<2x5xf32> -> vector<2x5xf32>
    %597 = arith.addf %559, %596 : vector<2x5xf32>
    %c0_131 = arith.constant 0 : index
    %c0_132 = arith.constant 0 : index
    %598 = vector.load %arg7[%c0_131, %c0_132] : memref<1x5xf32, #tpu.memory_space<vmem>>, vector<1x5xf32>
    %599 = vector.broadcast %598 : vector<1x5xf32> to vector<2x5xf32>
    %600 = arith.addf %597, %599 : vector<2x5xf32>
    %c0_133 = arith.constant 0 : index
    %c0_134 = arith.constant 0 : index
    %601 = vector.load %arg8[%c0_133, %c0_134] : memref<2x5xf32, #tpu.memory_space<vmem>>, vector<2x5xf32>
    tpu.vector_store %arg8[%c0_133, %c0_134], %600 {strides = array<i32>} : memref<2x5xf32, #tpu.memory_space<vmem>>, vector<2x5xf32>,
    return
  }
}

</mosaic_0001>

<llo_original>
// kernel: forward.1
$region0: #{forward.1}
  #allocation0 [shape = 'u32[]', space=smem, size = 0x4, offset = 0x4, fixed_abs, tag = 'smem constant byte address 0x4 - core index']
  #allocation1 [shape = 'u32[144,128]{1,0:T(1,128)}', space=vmem, size = 0x12000, scoped, tag = 'internal scratch']
  #allocation2 [shape = 'f32[16,128]{1,0:T(8,128)}', space=vmem, size = 0x2000, scoped, tag = 'scratch operand']
  #allocation3 [shape = 'f32[16,32]{1,0:T(8,128)}', space=vmem, size = 0x2000, scoped, tag = 'scratch operand']
  #allocation4 [shape = 'f32[16,128]{1,0:T(8,128)}', space=vmem, size = 0x2000, scoped, tag = 'scratch operand']
  %s0 = inlined_call_operand.vmem [shape: f32[16,16], index: 0, kind: input, shape index: {}]
  %s1 = inlined_call_operand.vmem [shape: f32[16,128], index: 1, kind: input, shape index: {}]
  %s2 = inlined_call_operand.vmem [shape: f32[32,128], index: 2, kind: input, shape index: {}]
  %s3 = inlined_call_operand.vmem [shape: f32[1,128], index: 3, kind: input, shape index: {}]
  %s4 = inlined_call_operand.vmem [shape: f32[32,150], index: 4, kind: input, shape index: {}]
  %s5 = inlined_call_operand.vmem [shape: f32[150,128], index: 5, kind: input, shape index: {}]
  %s6 = inlined_call_operand.vmem [shape: f32[10,32,5], index: 6, kind: input, shape index: {}]
  %s7 = inlined_call_operand.vmem [shape: f32[1,5], index: 7, kind: input, shape index: {}]
  %s8 = inlined_call_operand.hbm [shape: f32[2,5], index: 8, kind: output, shape index: {}]
  %s9 = sld [smem:[#allocation0]]
  $region42: #{forward.1} parent=0
    _
  %s11 = ssub.s32 1, %s9
  %s12 = scalar_select 0, %s11, %s9
  $region1: #{forward.1} parent=0
    #allocation5 [shape = 'u8[1024]{0}', space=vmem, size = 0x400, scoped, tag = 'output window, operand 0, single buffered']
    #allocation6 [shape = 's32[1]{0}', space=sflag, size = 0x4, scoped, tag = 'scoped memory for forward.1']
    %13 = vsyncpa [#allocation6], 0
    // Predicated region
    $region2: #{forward.1} parent=1 // pred_check
      _
    $region3: #{forward.1} parent=1 // pred_check_branch
      %15 = sbr.rel (0) target = $region5
    $region4: #{forward.1} parent=1 // pred_region
      _
    $region5: #{forward.1} parent=1 // pred_fallthru
      _
    // Predicated region
    $region6: #{forward.1} parent=1 // pred_check
      _
    $region7: #{forward.1} parent=1 // pred_check_branch
      %17 = sbr.rel (0) target = $region9
    $region8: #{forward.1} parent=1 // pred_region
      _
    $region9: #{forward.1} parent=1 // pred_fallthru
      _
    // Predicated region
    $region10: #{forward.1} parent=1 // pred_check
      _
    $region11: #{forward.1} parent=1 // pred_check_branch
      %19 = sbr.rel (0) target = $region13
    $region12: #{forward.1} parent=1 // pred_region
      _
    $region13: #{forward.1} parent=1 // pred_fallthru
      _
    // Predicated region
    $region14: #{forward.1} parent=1 // pred_check
      _
    $region15: #{forward.1} parent=1 // pred_check_branch
      %21 = sbr.rel (0) target = $region17
    $region16: #{forward.1} parent=1 // pred_region
      _
    $region17: #{forward.1} parent=1 // pred_fallthru
      _
    // Predicated region
    $region18: #{forward.1} parent=1 // pred_check
      _
    $region19: #{forward.1} parent=1 // pred_check_branch
      %23 = sbr.rel (0) target = $region21
    $region20: #{forward.1} parent=1 // pred_region
      _
    $region21: #{forward.1} parent=1 // pred_fallthru
      _
    // Predicated region
    $region22: #{forward.1} parent=1 // pred_check
      _
    $region23: #{forward.1} parent=1 // pred_check_branch
      %25 = sbr.rel (0) target = $region25
    $region24: #{forward.1} parent=1 // pred_region
      _
    $region25: #{forward.1} parent=1 // pred_fallthru
      _
    // Predicated region
    $region26: #{forward.1} parent=1 // pred_check
      _
    $region27: #{forward.1} parent=1 // pred_check_branch
      %27 = sbr.rel (0) target = $region29
    $region28: #{forward.1} parent=1 // pred_region
      _
    $region29: #{forward.1} parent=1 // pred_fallthru
      _
    // Predicated region
    $region30: #{forward.1} parent=1 // pred_check
      _
    $region31: #{forward.1} parent=1 // pred_check_branch
      %29 = sbr.rel (0) target = $region33
    $region32: #{forward.1} parent=1 // pred_region
      _
    $region33: #{forward.1} parent=1 // pred_fallthru
      _
    %v30 = vld [vmem:[%s0] sm:$0xff]
    %v31 = vld [vmem:[%s0 + $0x8] sm:$0xff]
    %v32 = vld [vmem:[%s1] sm:$0xff]
    %v33 = vld [vmem:[%s1 + $0x8] sm:$0xff]
    %v34 = vld [vmem:[%s3] sm:$0x1]
    %v36 = vlaneseq
    %v37 = vshrl.u32 %v36, 7
    %v38 = vsub.s32 0, %v37
    %v39 = vrot.slane %v34, %v38
    %vm41 = vcmask 130048
    %v43 = vsel %vm41, %v30, 0
    %v46 = vsel %vm41, %v31, 0
    %48 = vmatprep.subr.mxu0 0.0
    %49 = vmatpush1.msra.mxu0 0.0
    %50 = vmatprep.subr.mxu0 0.0
    %51 = vmatpush1.msra.mxu0 0.0
    %52 = vmatprep.subr.mxu0 0.0
    %53 = vmatpush1.msra.mxu0 0.0
    %54 = vmatprep.subr.mxu0 0.0
    %55 = vmatpush1.msra.mxu0 0.0
    %56 = vmatprep.subr.mxu0 0.0
    %57 = vmatpush1.msra.mxu0 0.0
    %58 = vmatprep.subr.mxu0 0.0
    %59 = vmatpush1.msra.mxu0 0.0
    %60 = vmatprep.subr.mxu0 0.0
    %61 = vmatpush1.msra.mxu0 0.0
    %62 = vmatprep.subr.mxu0 0.0
    %63 = vmatpush1.msra.mxu0 0.0
    %64 = vmatprep.subr.mxu0 0.0
    %65 = vmatpush1.msra.mxu0 0.0
    %66 = vmatprep.subr.mxu0 0.0
    %67 = vmatpush1.msra.mxu0 0.0
    %68 = vmatprep.subr.mxu0 0.0
    %69 = vmatpush1.msra.mxu0 0.0
    %70 = vmatprep.subr.mxu0 0.0
    %71 = vmatpush1.msra.mxu0 0.0
    %72 = vmatprep.subr.mxu0 0.0
    %73 = vmatpush1.msra.mxu0 0.0
    %74 = vmatprep.subr.mxu0 0.0
    %75 = vmatpush1.msra.mxu0 0.0
    %76 = vmatprep.subr.mxu0 0.0
    %77 = vmatpush1.msra.mxu0 %v33
    %78 = vmatprep.subr.mxu0 0.0
    %79 = vmatpush1.msra.mxu0 %v32
    %80 = vmatprep.subr.mxu0 0.0
    %81 = vmatpush2.msra.mxu0 0.0
    %82 = vmatprep.subr.mxu0 0.0
    %83 = vmatpush2.msra.mxu0 0.0
    %84 = vmatprep.subr.mxu0 0.0
    %85 = vmatpush2.msra.mxu0 0.0
    %86 = vmatprep.subr.mxu0 0.0
    %87 = vmatpush2.msra.mxu0 0.0
    %88 = vmatprep.subr.mxu0 0.0
    %89 = vmatpush2.msra.mxu0 0.0
    %90 = vmatprep.subr.mxu0 0.0
    %91 = vmatpush2.msra.mxu0 0.0
    %92 = vmatprep.subr.mxu0 0.0
    %93 = vmatpush2.msra.mxu0 0.0
    %94 = vmatprep.subr.mxu0 0.0
    %95 = vmatpush2.msra.mxu0 0.0
    %96 = vmatprep.subr.mxu0 0.0
    %97 = vmatpush2.msra.mxu0 0.0
    %98 = vmatprep.subr.mxu0 0.0
    %99 = vmatpush2.msra.mxu0 0.0
    %100 = vmatprep.subr.mxu0 0.0
    %101 = vmatpush2.msra.mxu0 0.0
    %102 = vmatprep.subr.mxu0 0.0
    %103 = vmatpush2.msra.mxu0 0.0
    %104 = vmatprep.subr.mxu0 0.0
    %105 = vmatpush2.msra.mxu0 0.0
    %106 = vmatprep.subr.mxu0 0.0
    %107 = vmatpush2.msra.mxu0 0.0
    %108 = vmatprep.subr.mxu0 0.0
    %109 = vmatpush2.msra.mxu0 0.0
    %110 = vmatprep.subr.mxu0 0.0
    %111 = vmatpush2.msra.mxu0 0.0
    %112 = vmatprep.mubr.f32.mxu0 0.0
    %113 = vmatmul.mubr.f32.gmra.mxu0 %v43
    %v114 = vpop.f32.mrf.mxu0
    %v115 = vadd.f32 %v39, %v114
    %v116 = vpop.f32.mrf.mxu0
    %117 = vmatprep.mubr.f32.mxu0 0.0
    %118 = vmatmul.mubr.f32.gmra.mxu0 %v46
    %v119 = vpop.f32.mrf.mxu0
    %v120 = vadd.f32 %v39, %v119
    %v121 = vpop.f32.mrf.mxu0
    %122 = vdwg.mxu0
    %123 = vst [vmem:[#allocation2] sm:$0xff] %v115
    %124 = vst [vmem:[#allocation2 + $0x8] sm:$0xff] %v120
    %v125 = vld [vmem:[%s2] sm:$0xff]
    %v126 = vld [vmem:[%s2 + $0x8] sm:$0xff]
    %v127 = vld [vmem:[%s2 + $0x10] sm:$0xff]
    %v128 = vld [vmem:[%s2 + $0x18] sm:$0xff]
    %v129 = vld [vmem:[#allocation2] sm:$0x3]
    %vm130 = vcmask 261120
    %v132 = vsel %vm130, 0.0, 0
    %134 = vmatprep.subr.mxu0 0.0
    %135 = vmatpush1.msra.mxu0 0.0
    %136 = vmatprep.subr.mxu0 0.0
    %137 = vmatpush1.msra.mxu0 0.0
    %138 = vmatprep.subr.mxu0 0.0
    %139 = vmatpush1.msra.mxu0 0.0
    %140 = vmatprep.subr.mxu0 0.0
    %141 = vmatpush1.msra.mxu0 0.0
    %142 = vmatprep.subr.mxu0 0.0
    %143 = vmatpush1.msra.mxu0 0.0
    %144 = vmatprep.subr.mxu0 0.0
    %145 = vmatpush1.msra.mxu0 0.0
    %146 = vmatprep.subr.mxu0 0.0
    %147 = vmatpush1.msra.mxu0 0.0
    %148 = vmatprep.subr.mxu0 0.0
    %149 = vmatpush1.msra.mxu0 0.0
    %150 = vmatprep.subr.mxu0 0.0
    %151 = vmatpush1.msra.mxu0 0.0
    %152 = vmatprep.subr.mxu0 0.0
    %153 = vmatpush1.msra.mxu0 0.0
    %154 = vmatprep.subr.mxu0 0.0
    %155 = vmatpush1.msra.mxu0 0.0
    %156 = vmatprep.subr.mxu0 0.0
    %157 = vmatpush1.msra.mxu0 0.0
    %158 = vmatprep.subr.mxu0 0.0
    %159 = vmatpush1.msra.mxu0 %v128
    %160 = vmatprep.subr.mxu0 0.0
    %161 = vmatpush1.msra.mxu0 %v127
    %162 = vmatprep.subr.mxu0 0.0
    %163 = vmatpush1.msra.mxu0 %v126
    %164 = vmatprep.subr.mxu0 0.0
    %165 = vmatpush1.msra.mxu0 %v125
    %166 = vmatprep.subr.mxu0 0.0
    %167 = vmatpush2.msra.mxu0 0.0
    %168 = vmatprep.subr.mxu0 0.0
    %169 = vmatpush2.msra.mxu0 0.0
    %170 = vmatprep.subr.mxu0 0.0
    %171 = vmatpush2.msra.mxu0 0.0
    %172 = vmatprep.subr.mxu0 0.0
    %173 = vmatpush2.msra.mxu0 0.0
    %174 = vmatprep.subr.mxu0 0.0
    %175 = vmatpush2.msra.mxu0 0.0
    %176 = vmatprep.subr.mxu0 0.0
    %177 = vmatpush2.msra.mxu0 0.0
    %178 = vmatprep.subr.mxu0 0.0
    %179 = vmatpush2.msra.mxu0 0.0
    %180 = vmatprep.subr.mxu0 0.0
    %181 = vmatpush2.msra.mxu0 0.0
    %182 = vmatprep.subr.mxu0 0.0
    %183 = vmatpush2.msra.mxu0 0.0
    %184 = vmatprep.subr.mxu0 0.0
    %185 = vmatpush2.msra.mxu0 0.0
    %186 = vmatprep.subr.mxu0 0.0
    %187 = vmatpush2.msra.mxu0 0.0
    %188 = vmatprep.subr.mxu0 0.0
    %189 = vmatpush2.msra.mxu0 0.0
    %190 = vmatprep.subr.mxu0 0.0
    %191 = vmatpush2.msra.mxu0 0.0
    %192 = vmatprep.subr.mxu0 0.0
    %193 = vmatpush2.msra.mxu0 0.0
    %194 = vmatprep.subr.mxu0 0.0
    %195 = vmatpush2.msra.mxu0 0.0
    %196 = vmatprep.subr.mxu0 0.0
    %197 = vmatpush2.msra.mxu0 0.0
    %198 = vmatprep.mubr.f32.mxu0 0.0
    %199 = vmatmul.mubr.f32.gmra.mxu0 %v132
    %v200 = vpop.f32.mrf.mxu0
    %v201 = vadd.f32 0.0, %v200
    %v202 = vpop.f32.mrf.mxu0
    %203 = vdwg.mxu0
    %v204 = vadd.f32 %v129, %v201
    %v205 = vxor.u32 %v204, 2147483648
    %v206 = vmul.f32 %v205, 1.442695
    %v207 = vpow.pop %v206
    %v208 = vadd.f32 %v207, 1.0
    %v209 = vrcp.pop %v208
    %v210 = vmul.f32 1.0, %v209
    %v211 = vtanh.pop %v204
    %v212 = vmul.f32 %v210, 0.0
    %214 = vrot.lane.b32.xlu0 %v211, 64
    %v215 = vpop.permute.xlu0 %214
    %v217 = vmul.f32 %v210, %v215
    %219 = vrot.lane.b32.xlu0 %v217, 32
    %v220 = vpop.permute.xlu0 %219
    %v222 = vadd.f32 %v212, %v220
    %v223 = vtanh.pop %v222
    %225 = vrot.lane.b32.xlu0 %v223, 64
    %v226 = vpop.permute.xlu0 %225
    %v228 = vmul.f32 %v210, %v226
    %230 = vrot.lane.b32.xlu0 %v228, 32
    %v231 = vpop.permute.xlu0 %230
    %vm233 = vcmask 254976
    %234 = vst.msk [vmem:[#allocation3] sm:$0x3] %vm233, %v231
    %v235 = vld [vmem:[#allocation2 + $0x2] sm:$0x3]
    %v236 = vsel %vm130, %v231, 0
    %238 = vmatprep.subr.mxu0 0.0
    %239 = vmatpush1.msra.mxu0 0.0
    %240 = vmatprep.subr.mxu0 0.0
    %241 = vmatpush1.msra.mxu0 0.0
    %242 = vmatprep.subr.mxu0 0.0
    %243 = vmatpush1.msra.mxu0 0.0
    %244 = vmatprep.subr.mxu0 0.0
    %245 = vmatpush1.msra.mxu0 0.0
    %246 = vmatprep.subr.mxu0 0.0
    %247 = vmatpush1.msra.mxu0 0.0
    %248 = vmatprep.subr.mxu0 0.0
    %249 = vmatpush1.msra.mxu0 0.0
    %250 = vmatprep.subr.mxu0 0.0
    %251 = vmatpush1.msra.mxu0 0.0
    %252 = vmatprep.subr.mxu0 0.0
    %253 = vmatpush1.msra.mxu0 0.0
    %254 = vmatprep.subr.mxu0 0.0
    %255 = vmatpush1.msra.mxu0 0.0
    %256 = vmatprep.subr.mxu0 0.0
    %257 = vmatpush1.msra.mxu0 0.0
    %258 = vmatprep.subr.mxu0 0.0
    %259 = vmatpush1.msra.mxu0 0.0
    %260 = vmatprep.subr.mxu0 0.0
    %261 = vmatpush1.msra.mxu0 0.0
    %262 = vmatprep.subr.mxu0 0.0
    %263 = vmatpush1.msra.mxu0 %v128
    %264 = vmatprep.subr.mxu0 0.0
    %265 = vmatpush1.msra.mxu0 %v127
    %266 = vmatprep.subr.mxu0 0.0
    %267 = vmatpush1.msra.mxu0 %v126
    %268 = vmatprep.subr.mxu0 0.0
    %269 = vmatpush1.msra.mxu0 %v125
    %270 = vmatprep.subr.mxu0 0.0
    %271 = vmatpush2.msra.mxu0 0.0
    %272 = vmatprep.subr.mxu0 0.0
    %273 = vmatpush2.msra.mxu0 0.0
    %274 = vmatprep.subr.mxu0 0.0
    %275 = vmatpush2.msra.mxu0 0.0
    %276 = vmatprep.subr.mxu0 0.0
    %277 = vmatpush2.msra.mxu0 0.0
    %278 = vmatprep.subr.mxu0 0.0
    %279 = vmatpush2.msra.mxu0 0.0
    %280 = vmatprep.subr.mxu0 0.0
    %281 = vmatpush2.msra.mxu0 0.0
    %282 = vmatprep.subr.mxu0 0.0
    %283 = vmatpush2.msra.mxu0 0.0
    %284 = vmatprep.subr.mxu0 0.0
    %285 = vmatpush2.msra.mxu0 0.0
    %286 = vmatprep.subr.mxu0 0.0
    %287 = vmatpush2.msra.mxu0 0.0
    %288 = vmatprep.subr.mxu0 0.0
    %289 = vmatpush2.msra.mxu0 0.0
    %290 = vmatprep.subr.mxu0 0.0
    %291 = vmatpush2.msra.mxu0 0.0
    %292 = vmatprep.subr.mxu0 0.0
    %293 = vmatpush2.msra.mxu0 0.0
    %294 = vmatprep.subr.mxu0 0.0
    %295 = vmatpush2.msra.mxu0 0.0
    %296 = vmatprep.subr.mxu0 0.0
    %297 = vmatpush2.msra.mxu0 0.0
    %298 = vmatprep.subr.mxu0 0.0
    %299 = vmatpush2.msra.mxu0 0.0
    %300 = vmatprep.subr.mxu0 0.0
    %301 = vmatpush2.msra.mxu0 0.0
    %302 = vmatprep.mubr.f32.mxu0 0.0
    %303 = vmatmul.mubr.f32.gmra.mxu0 %v236
    %v304 = vpop.f32.mrf.mxu0
    %v305 = vadd.f32 0.0, %v304
    %v306 = vpop.f32.mrf.mxu0
    %307 = vdwg.mxu0
    %v308 = vadd.f32 %v235, %v305
    %v309 = vxor.u32 %v308, 2147483648
    %v310 = vmul.f32 %v309, 1.442695
    %v311 = vpow.pop %v310
    %v312 = vadd.f32 %v311, 1.0
    %v313 = vrcp.pop %v312
    %v314 = vmul.f32 1.0, %v313
    %v315 = vtanh.pop %v308
    %v316 = vmul.f32 %v314, %v222
    %318 = vrot.lane.b32.xlu0 %v315, 64
    %v319 = vpop.permute.xlu0 %318
    %v321 = vmul.f32 %v314, %v319
    %323 = vrot.lane.b32.xlu0 %v321, 32
    %v324 = vpop.permute.xlu0 %323
    %v326 = vadd.f32 %v316, %v324
    %v327 = vtanh.pop %v326
    %329 = vrot.lane.b32.xlu0 %v327, 64
    %v330 = vpop.permute.xlu0 %329
    %v332 = vmul.f32 %v314, %v330
    %334 = vrot.lane.b32.xlu0 %v332, 32
    %v335 = vpop.permute.xlu0 %334
    %337 = vst.msk [vmem:[#allocation3 + $0x2] sm:$0x3] %vm233, %v335
    %v338 = vld [vmem:[#allocation2 + $0x4] sm:$0x3]
    %v339 = vsel %vm130, %v335, 0
    %341 = vmatprep.subr.mxu0 0.0
    %342 = vmatpush1.msra.mxu0 0.0
    %343 = vmatprep.subr.mxu0 0.0
    %344 = vmatpush1.msra.mxu0 0.0
    %345 = vmatprep.subr.mxu0 0.0
    %346 = vmatpush1.msra.mxu0 0.0
    %347 = vmatprep.subr.mxu0 0.0
    %348 = vmatpush1.msra.mxu0 0.0
    %349 = vmatprep.subr.mxu0 0.0
    %350 = vmatpush1.msra.mxu0 0.0
    %351 = vmatprep.subr.mxu0 0.0
    %352 = vmatpush1.msra.mxu0 0.0
    %353 = vmatprep.subr.mxu0 0.0
    %354 = vmatpush1.msra.mxu0 0.0
    %355 = vmatprep.subr.mxu0 0.0
    %356 = vmatpush1.msra.mxu0 0.0
    %357 = vmatprep.subr.mxu0 0.0
    %358 = vmatpush1.msra.mxu0 0.0
    %359 = vmatprep.subr.mxu0 0.0
    %360 = vmatpush1.msra.mxu0 0.0
    %361 = vmatprep.subr.mxu0 0.0
    %362 = vmatpush1.msra.mxu0 0.0
    %363 = vmatprep.subr.mxu0 0.0
    %364 = vmatpush1.msra.mxu0 0.0
    %365 = vmatprep.subr.mxu0 0.0
    %366 = vmatpush1.msra.mxu0 %v128
    %367 = vmatprep.subr.mxu0 0.0
    %368 = vmatpush1.msra.mxu0 %v127
    %369 = vmatprep.subr.mxu0 0.0
    %370 = vmatpush1.msra.mxu0 %v126
    %371 = vmatprep.subr.mxu0 0.0
    %372 = vmatpush1.msra.mxu0 %v125
    %373 = vmatprep.subr.mxu0 0.0
    %374 = vmatpush2.msra.mxu0 0.0
    %375 = vmatprep.subr.mxu0 0.0
    %376 = vmatpush2.msra.mxu0 0.0
    %377 = vmatprep.subr.mxu0 0.0
    %378 = vmatpush2.msra.mxu0 0.0
    %379 = vmatprep.subr.mxu0 0.0
    %380 = vmatpush2.msra.mxu0 0.0
    %381 = vmatprep.subr.mxu0 0.0
    %382 = vmatpush2.msra.mxu0 0.0
    %383 = vmatprep.subr.mxu0 0.0
    %384 = vmatpush2.msra.mxu0 0.0
    %385 = vmatprep.subr.mxu0 0.0
    %386 = vmatpush2.msra.mxu0 0.0
    %387 = vmatprep.subr.mxu0 0.0
    %388 = vmatpush2.msra.mxu0 0.0
    %389 = vmatprep.subr.mxu0 0.0
    %390 = vmatpush2.msra.mxu0 0.0
    %391 = vmatprep.subr.mxu0 0.0
    %392 = vmatpush2.msra.mxu0 0.0
    %393 = vmatprep.subr.mxu0 0.0
    %394 = vmatpush2.msra.mxu0 0.0
    %395 = vmatprep.subr.mxu0 0.0
    %396 = vmatpush2.msra.mxu0 0.0
    %397 = vmatprep.subr.mxu0 0.0
    %398 = vmatpush2.msra.mxu0 0.0
    %399 = vmatprep.subr.mxu0 0.0
    %400 = vmatpush2.msra.mxu0 0.0
    %401 = vmatprep.subr.mxu0 0.0
    %402 = vmatpush2.msra.mxu0 0.0
    %403 = vmatprep.subr.mxu0 0.0
    %404 = vmatpush2.msra.mxu0 0.0
    %405 = vmatprep.mubr.f32.mxu0 0.0
    %406 = vmatmul.mubr.f32.gmra.mxu0 %v339
    %v407 = vpop.f32.mrf.mxu0
    %v408 = vadd.f32 0.0, %v407
    %v409 = vpop.f32.mrf.mxu0
    %410 = vdwg.mxu0
    %v411 = vadd.f32 %v338, %v408
    %v412 = vxor.u32 %v411, 2147483648
    %v413 = vmul.f32 %v412, 1.442695
    %v414 = vpow.pop %v413
    %v415 = vadd.f32 %v414, 1.0
    %v416 = vrcp.pop %v415
    %v417 = vmul.f32 1.0, %v416
    %v418 = vtanh.pop %v411
    %v419 = vmul.f32 %v417, %v326
    %421 = vrot.lane.b32.xlu0 %v418, 64
    %v422 = vpop.permute.xlu0 %421
    %v424 = vmul.f32 %v417, %v422
    %426 = vrot.lane.b32.xlu0 %v424, 32
    %v427 = vpop.permute.xlu0 %426
    %v429 = vadd.f32 %v419, %v427
    %v430 = vtanh.pop %v429
    %432 = vrot.lane.b32.xlu0 %v430, 64
    %v433 = vpop.permute.xlu0 %432
    %v435 = vmul.f32 %v417, %v433
    %437 = vrot.lane.b32.xlu0 %v435, 32
    %v438 = vpop.permute.xlu0 %437
    %440 = vst.msk [vmem:[#allocation3 + $0x4] sm:$0x3] %vm233, %v438
    %v441 = vld [vmem:[#allocation2 + $0x6] sm:$0x3]
    %v442 = vsel %vm130, %v438, 0
    %444 = vmatprep.subr.mxu0 0.0
    %445 = vmatpush1.msra.mxu0 0.0
    %446 = vmatprep.subr.mxu0 0.0
    %447 = vmatpush1.msra.mxu0 0.0
    %448 = vmatprep.subr.mxu0 0.0
    %449 = vmatpush1.msra.mxu0 0.0
    %450 = vmatprep.subr.mxu0 0.0
    %451 = vmatpush1.msra.mxu0 0.0
    %452 = vmatprep.subr.mxu0 0.0
    %453 = vmatpush1.msra.mxu0 0.0
    %454 = vmatprep.subr.mxu0 0.0
    %455 = vmatpush1.msra.mxu0 0.0
    %456 = vmatprep.subr.mxu0 0.0
    %457 = vmatpush1.msra.mxu0 0.0
    %458 = vmatprep.subr.mxu0 0.0
    %459 = vmatpush1.msra.mxu0 0.0
    %460 = vmatprep.subr.mxu0 0.0
    %461 = vmatpush1.msra.mxu0 0.0
    %462 = vmatprep.subr.mxu0 0.0
    %463 = vmatpush1.msra.mxu0 0.0
    %464 = vmatprep.subr.mxu0 0.0
    %465 = vmatpush1.msra.mxu0 0.0
    %466 = vmatprep.subr.mxu0 0.0
    %467 = vmatpush1.msra.mxu0 0.0
    %468 = vmatprep.subr.mxu0 0.0
    %469 = vmatpush1.msra.mxu0 %v128
    %470 = vmatprep.subr.mxu0 0.0
    %471 = vmatpush1.msra.mxu0 %v127
    %472 = vmatprep.subr.mxu0 0.0
    %473 = vmatpush1.msra.mxu0 %v126
    %474 = vmatprep.subr.mxu0 0.0
    %475 = vmatpush1.msra.mxu0 %v125
    %476 = vmatprep.subr.mxu0 0.0
    %477 = vmatpush2.msra.mxu0 0.0
    %478 = vmatprep.subr.mxu0 0.0
    %479 = vmatpush2.msra.mxu0 0.0
    %480 = vmatprep.subr.mxu0 0.0
    %481 = vmatpush2.msra.mxu0 0.0
    %482 = vmatprep.subr.mxu0 0.0
    %483 = vmatpush2.msra.mxu0 0.0
    %484 = vmatprep.subr.mxu0 0.0
    %485 = vmatpush2.msra.mxu0 0.0
    %486 = vmatprep.subr.mxu0 0.0
    %487 = vmatpush2.msra.mxu0 0.0
    %488 = vmatprep.subr.mxu0 0.0
    %489 = vmatpush2.msra.mxu0 0.0
    %490 = vmatprep.subr.mxu0 0.0
    %491 = vmatpush2.msra.mxu0 0.0
    %492 = vmatprep.subr.mxu0 0.0
    %493 = vmatpush2.msra.mxu0 0.0
    %494 = vmatprep.subr.mxu0 0.0
    %495 = vmatpush2.msra.mxu0 0.0
    %496 = vmatprep.subr.mxu0 0.0
    %497 = vmatpush2.msra.mxu0 0.0
    %498 = vmatprep.subr.mxu0 0.0
    %499 = vmatpush2.msra.mxu0 0.0
    %500 = vmatprep.subr.mxu0 0.0
    %501 = vmatpush2.msra.mxu0 0.0
    %502 = vmatprep.subr.mxu0 0.0
    %503 = vmatpush2.msra.mxu0 0.0
    %504 = vmatprep.subr.mxu0 0.0
    %505 = vmatpush2.msra.mxu0 0.0
    %506 = vmatprep.subr.mxu0 0.0
    %507 = vmatpush2.msra.mxu0 0.0
    %508 = vmatprep.mubr.f32.mxu0 0.0
    %509 = vmatmul.mubr.f32.gmra.mxu0 %v442
    %v510 = vpop.f32.mrf.mxu0
    %v511 = vadd.f32 0.0, %v510
    %v512 = vpop.f32.mrf.mxu0
    %513 = vdwg.mxu0
    %v514 = vadd.f32 %v441, %v511
    %v515 = vxor.u32 %v514, 2147483648
    %v516 = vmul.f32 %v515, 1.442695
    %v517 = vpow.pop %v516
    %v518 = vadd.f32 %v517, 1.0
    %v519 = vrcp.pop %v518
    %v520 = vmul.f32 1.0, %v519
    %v521 = vtanh.pop %v514
    %v522 = vmul.f32 %v520, %v429
    %524 = vrot.lane.b32.xlu0 %v521, 64
    %v525 = vpop.permute.xlu0 %524
    %v527 = vmul.f32 %v520, %v525
    %529 = vrot.lane.b32.xlu0 %v527, 32
    %v530 = vpop.permute.xlu0 %529
    %v532 = vadd.f32 %v522, %v530
    %v533 = vtanh.pop %v532
    %535 = vrot.lane.b32.xlu0 %v533, 64
    %v536 = vpop.permute.xlu0 %535
    %v538 = vmul.f32 %v520, %v536
    %540 = vrot.lane.b32.xlu0 %v538, 32
    %v541 = vpop.permute.xlu0 %540
    %543 = vst.msk [vmem:[#allocation3 + $0x6] sm:$0x3] %vm233, %v541
    %v544 = vld [vmem:[#allocation2 + $0x8] sm:$0x3]
    %v545 = vsel %vm130, %v541, 0
    %547 = vmatprep.subr.mxu0 0.0
    %548 = vmatpush1.msra.mxu0 0.0
    %549 = vmatprep.subr.mxu0 0.0
    %550 = vmatpush1.msra.mxu0 0.0
    %551 = vmatprep.subr.mxu0 0.0
    %552 = vmatpush1.msra.mxu0 0.0
    %553 = vmatprep.subr.mxu0 0.0
    %554 = vmatpush1.msra.mxu0 0.0
    %555 = vmatprep.subr.mxu0 0.0
    %556 = vmatpush1.msra.mxu0 0.0
    %557 = vmatprep.subr.mxu0 0.0
    %558 = vmatpush1.msra.mxu0 0.0
    %559 = vmatprep.subr.mxu0 0.0
    %560 = vmatpush1.msra.mxu0 0.0
    %561 = vmatprep.subr.mxu0 0.0
    %562 = vmatpush1.msra.mxu0 0.0
    %563 = vmatprep.subr.mxu0 0.0
    %564 = vmatpush1.msra.mxu0 0.0
    %565 = vmatprep.subr.mxu0 0.0
    %566 = vmatpush1.msra.mxu0 0.0
    %567 = vmatprep.subr.mxu0 0.0
    %568 = vmatpush1.msra.mxu0 0.0
    %569 = vmatprep.subr.mxu0 0.0
    %570 = vmatpush1.msra.mxu0 0.0
    %571 = vmatprep.subr.mxu0 0.0
    %572 = vmatpush1.msra.mxu0 %v128
    %573 = vmatprep.subr.mxu0 0.0
    %574 = vmatpush1.msra.mxu0 %v127
    %575 = vmatprep.subr.mxu0 0.0
    %576 = vmatpush1.msra.mxu0 %v126
    %577 = vmatprep.subr.mxu0 0.0
    %578 = vmatpush1.msra.mxu0 %v125
    %579 = vmatprep.subr.mxu0 0.0
    %580 = vmatpush2.msra.mxu0 0.0
    %581 = vmatprep.subr.mxu0 0.0
    %582 = vmatpush2.msra.mxu0 0.0
    %583 = vmatprep.subr.mxu0 0.0
    %584 = vmatpush2.msra.mxu0 0.0
    %585 = vmatprep.subr.mxu0 0.0
    %586 = vmatpush2.msra.mxu0 0.0
    %587 = vmatprep.subr.mxu0 0.0
    %588 = vmatpush2.msra.mxu0 0.0
    %589 = vmatprep.subr.mxu0 0.0
    %590 = vmatpush2.msra.mxu0 0.0
    %591 = vmatprep.subr.mxu0 0.0
    %592 = vmatpush2.msra.mxu0 0.0
    %593 = vmatprep.subr.mxu0 0.0
    %594 = vmatpush2.msra.mxu0 0.0
    %595 = vmatprep.subr.mxu0 0.0
    %596 = vmatpush2.msra.mxu0 0.0
    %597 = vmatprep.subr.mxu0 0.0
    %598 = vmatpush2.msra.mxu0 0.0
    %599 = vmatprep.subr.mxu0 0.0
    %600 = vmatpush2.msra.mxu0 0.0
    %601 = vmatprep.subr.mxu0 0.0
    %602 = vmatpush2.msra.mxu0 0.0
    %603 = vmatprep.subr.mxu0 0.0
    %604 = vmatpush2.msra.mxu0 0.0
    %605 = vmatprep.subr.mxu0 0.0
    %606 = vmatpush2.msra.mxu0 0.0
    %607 = vmatprep.subr.mxu0 0.0
    %608 = vmatpush2.msra.mxu0 0.0
    %609 = vmatprep.subr.mxu0 0.0
    %610 = vmatpush2.msra.mxu0 0.0
    %611 = vmatprep.mubr.f32.mxu0 0.0
    %612 = vmatmul.mubr.f32.gmra.mxu0 %v545
    %v613 = vpop.f32.mrf.mxu0
    %v614 = vadd.f32 0.0, %v613
    %v615 = vpop.f32.mrf.mxu0
    %616 = vdwg.mxu0
    %v617 = vadd.f32 %v544, %v614
    %v618 = vxor.u32 %v617, 2147483648
    %v619 = vmul.f32 %v618, 1.442695
    %v620 = vpow.pop %v619
    %v621 = vadd.f32 %v620, 1.0
    %v622 = vrcp.pop %v621
    %v623 = vmul.f32 1.0, %v622
    %v624 = vtanh.pop %v617
    %v625 = vmul.f32 %v623, %v532
    %627 = vrot.lane.b32.xlu0 %v624, 64
    %v628 = vpop.permute.xlu0 %627
    %v630 = vmul.f32 %v623, %v628
    %632 = vrot.lane.b32.xlu0 %v630, 32
    %v633 = vpop.permute.xlu0 %632
    %v635 = vadd.f32 %v625, %v633
    %v636 = vtanh.pop %v635
    %638 = vrot.lane.b32.xlu0 %v636, 64
    %v639 = vpop.permute.xlu0 %638
    %v641 = vmul.f32 %v623, %v639
    %643 = vrot.lane.b32.xlu0 %v641, 32
    %v644 = vpop.permute.xlu0 %643
    %646 = vst.msk [vmem:[#allocation3 + $0x8] sm:$0x3] %vm233, %v644
    %v647 = vld [vmem:[#allocation2 + $0xa] sm:$0x3]
    %v648 = vsel %vm130, %v644, 0
    %650 = vmatprep.subr.mxu0 0.0
    %651 = vmatpush1.msra.mxu0 0.0
    %652 = vmatprep.subr.mxu0 0.0
    %653 = vmatpush1.msra.mxu0 0.0
    %654 = vmatprep.subr.mxu0 0.0
    %655 = vmatpush1.msra.mxu0 0.0
    %656 = vmatprep.subr.mxu0 0.0
    %657 = vmatpush1.msra.mxu0 0.0
    %658 = vmatprep.subr.mxu0 0.0
    %659 = vmatpush1.msra.mxu0 0.0
    %660 = vmatprep.subr.mxu0 0.0
    %661 = vmatpush1.msra.mxu0 0.0
    %662 = vmatprep.subr.mxu0 0.0
    %663 = vmatpush1.msra.mxu0 0.0
    %664 = vmatprep.subr.mxu0 0.0
    %665 = vmatpush1.msra.mxu0 0.0
    %666 = vmatprep.subr.mxu0 0.0
    %667 = vmatpush1.msra.mxu0 0.0
    %668 = vmatprep.subr.mxu0 0.0
    %669 = vmatpush1.msra.mxu0 0.0
    %670 = vmatprep.subr.mxu0 0.0
    %671 = vmatpush1.msra.mxu0 0.0
    %672 = vmatprep.subr.mxu0 0.0
    %673 = vmatpush1.msra.mxu0 0.0
    %674 = vmatprep.subr.mxu0 0.0
    %675 = vmatpush1.msra.mxu0 %v128
    %676 = vmatprep.subr.mxu0 0.0
    %677 = vmatpush1.msra.mxu0 %v127
    %678 = vmatprep.subr.mxu0 0.0
    %679 = vmatpush1.msra.mxu0 %v126
    %680 = vmatprep.subr.mxu0 0.0
    %681 = vmatpush1.msra.mxu0 %v125
    %682 = vmatprep.subr.mxu0 0.0
    %683 = vmatpush2.msra.mxu0 0.0
    %684 = vmatprep.subr.mxu0 0.0
    %685 = vmatpush2.msra.mxu0 0.0
    %686 = vmatprep.subr.mxu0 0.0
    %687 = vmatpush2.msra.mxu0 0.0
    %688 = vmatprep.subr.mxu0 0.0
    %689 = vmatpush2.msra.mxu0 0.0
    %690 = vmatprep.subr.mxu0 0.0
    %691 = vmatpush2.msra.mxu0 0.0
    %692 = vmatprep.subr.mxu0 0.0
    %693 = vmatpush2.msra.mxu0 0.0
    %694 = vmatprep.subr.mxu0 0.0
    %695 = vmatpush2.msra.mxu0 0.0
    %696 = vmatprep.subr.mxu0 0.0
    %697 = vmatpush2.msra.mxu0 0.0
    %698 = vmatprep.subr.mxu0 0.0
    %699 = vmatpush2.msra.mxu0 0.0
    %700 = vmatprep.subr.mxu0 0.0
    %701 = vmatpush2.msra.mxu0 0.0
    %702 = vmatprep.subr.mxu0 0.0
    %703 = vmatpush2.msra.mxu0 0.0
    %704 = vmatprep.subr.mxu0 0.0
    %705 = vmatpush2.msra.mxu0 0.0
    %706 = vmatprep.subr.mxu0 0.0
    %707 = vmatpush2.msra.mxu0 0.0
    %708 = vmatprep.subr.mxu0 0.0
    %709 = vmatpush2.msra.mxu0 0.0
    %710 = vmatprep.subr.mxu0 0.0
    %711 = vmatpush2.msra.mxu0 0.0
    %712 = vmatprep.subr.mxu0 0.0
    %713 = vmatpush2.msra.mxu0 0.0
    %714 = vmatprep.mubr.f32.mxu0 0.0
    %715 = vmatmul.mubr.f32.gmra.mxu0 %v648
    %v716 = vpop.f32.mrf.mxu0
    %v717 = vadd.f32 0.0, %v716
    %v718 = vpop.f32.mrf.mxu0
    %719 = vdwg.mxu0
    %v720 = vadd.f32 %v647, %v717
    %v721 = vxor.u32 %v720, 2147483648
    %v722 = vmul.f32 %v721, 1.442695
    %v723 = vpow.pop %v722
    %v724 = vadd.f32 %v723, 1.0
    %v725 = vrcp.pop %v724
    %v726 = vmul.f32 1.0, %v725
    %v727 = vtanh.pop %v720
    %v728 = vmul.f32 %v726, %v635
    %730 = vrot.lane.b32.xlu0 %v727, 64
    %v731 = vpop.permute.xlu0 %730
    %v733 = vmul.f32 %v726, %v731
    %735 = vrot.lane.b32.xlu0 %v733, 32
    %v736 = vpop.permute.xlu0 %735
    %v738 = vadd.f32 %v728, %v736
    %v739 = vtanh.pop %v738
    %741 = vrot.lane.b32.xlu0 %v739, 64
    %v742 = vpop.permute.xlu0 %741
    %v744 = vmul.f32 %v726, %v742
    %746 = vrot.lane.b32.xlu0 %v744, 32
    %v747 = vpop.permute.xlu0 %746
    %749 = vst.msk [vmem:[#allocation3 + $0xa] sm:$0x3] %vm233, %v747
    %v750 = vld [vmem:[#allocation2 + $0xc] sm:$0x3]
    %v751 = vsel %vm130, %v747, 0
    %753 = vmatprep.subr.mxu0 0.0
    %754 = vmatpush1.msra.mxu0 0.0
    %755 = vmatprep.subr.mxu0 0.0
    %756 = vmatpush1.msra.mxu0 0.0
    %757 = vmatprep.subr.mxu0 0.0
    %758 = vmatpush1.msra.mxu0 0.0
    %759 = vmatprep.subr.mxu0 0.0
    %760 = vmatpush1.msra.mxu0 0.0
    %761 = vmatprep.subr.mxu0 0.0
    %762 = vmatpush1.msra.mxu0 0.0
    %763 = vmatprep.subr.mxu0 0.0
    %764 = vmatpush1.msra.mxu0 0.0
    %765 = vmatprep.subr.mxu0 0.0
    %766 = vmatpush1.msra.mxu0 0.0
    %767 = vmatprep.subr.mxu0 0.0
    %768 = vmatpush1.msra.mxu0 0.0
    %769 = vmatprep.subr.mxu0 0.0
    %770 = vmatpush1.msra.mxu0 0.0
    %771 = vmatprep.subr.mxu0 0.0
    %772 = vmatpush1.msra.mxu0 0.0
    %773 = vmatprep.subr.mxu0 0.0
    %774 = vmatpush1.msra.mxu0 0.0
    %775 = vmatprep.subr.mxu0 0.0
    %776 = vmatpush1.msra.mxu0 0.0
    %777 = vmatprep.subr.mxu0 0.0
    %778 = vmatpush1.msra.mxu0 %v128
    %779 = vmatprep.subr.mxu0 0.0
    %780 = vmatpush1.msra.mxu0 %v127
    %781 = vmatprep.subr.mxu0 0.0
    %782 = vmatpush1.msra.mxu0 %v126
    %783 = vmatprep.subr.mxu0 0.0
    %784 = vmatpush1.msra.mxu0 %v125
    %785 = vmatprep.subr.mxu0 0.0
    %786 = vmatpush2.msra.mxu0 0.0
    %787 = vmatprep.subr.mxu0 0.0
    %788 = vmatpush2.msra.mxu0 0.0
    %789 = vmatprep.subr.mxu0 0.0
    %790 = vmatpush2.msra.mxu0 0.0
    %791 = vmatprep.subr.mxu0 0.0
    %792 = vmatpush2.msra.mxu0 0.0
    %793 = vmatprep.subr.mxu0 0.0
    %794 = vmatpush2.msra.mxu0 0.0
    %795 = vmatprep.subr.mxu0 0.0
    %796 = vmatpush2.msra.mxu0 0.0
    %797 = vmatprep.subr.mxu0 0.0
    %798 = vmatpush2.msra.mxu0 0.0
    %799 = vmatprep.subr.mxu0 0.0
    %800 = vmatpush2.msra.mxu0 0.0
    %801 = vmatprep.subr.mxu0 0.0
    %802 = vmatpush2.msra.mxu0 0.0
    %803 = vmatprep.subr.mxu0 0.0
    %804 = vmatpush2.msra.mxu0 0.0
    %805 = vmatprep.subr.mxu0 0.0
    %806 = vmatpush2.msra.mxu0 0.0
    %807 = vmatprep.subr.mxu0 0.0
    %808 = vmatpush2.msra.mxu0 0.0
    %809 = vmatprep.subr.mxu0 0.0
    %810 = vmatpush2.msra.mxu0 0.0
    %811 = vmatprep.subr.mxu0 0.0
    %812 = vmatpush2.msra.mxu0 0.0
    %813 = vmatprep.subr.mxu0 0.0
    %814 = vmatpush2.msra.mxu0 0.0
    %815 = vmatprep.subr.mxu0 0.0
    %816 = vmatpush2.msra.mxu0 0.0
    %817 = vmatprep.mubr.f32.mxu0 0.0
    %818 = vmatmul.mubr.f32.gmra.mxu0 %v751
    %v819 = vpop.f32.mrf.mxu0
    %v820 = vadd.f32 0.0, %v819
    %v821 = vpop.f32.mrf.mxu0
    %822 = vdwg.mxu0
    %v823 = vadd.f32 %v750, %v820
    %v824 = vxor.u32 %v823, 2147483648
    %v825 = vmul.f32 %v824, 1.442695
    %v826 = vpow.pop %v825
    %v827 = vadd.f32 %v826, 1.0
    %v828 = vrcp.pop %v827
    %v829 = vmul.f32 1.0, %v828
    %v830 = vtanh.pop %v823
    %v831 = vmul.f32 %v829, %v738
    %833 = vrot.lane.b32.xlu0 %v830, 64
    %v834 = vpop.permute.xlu0 %833
    %v836 = vmul.f32 %v829, %v834
    %838 = vrot.lane.b32.xlu0 %v836, 32
    %v839 = vpop.permute.xlu0 %838
    %v841 = vadd.f32 %v831, %v839
    %v842 = vtanh.pop %v841
    %844 = vrot.lane.b32.xlu0 %v842, 64
    %v845 = vpop.permute.xlu0 %844
    %v847 = vmul.f32 %v829, %v845
    %849 = vrot.lane.b32.xlu0 %v847, 32
    %v850 = vpop.permute.xlu0 %849
    %852 = vst.msk [vmem:[#allocation3 + $0xc] sm:$0x3] %vm233, %v850
    %v853 = vld [vmem:[#allocation2 + $0xe] sm:$0x3]
    %v854 = vsel %vm130, %v850, 0
    %856 = vmatprep.subr.mxu0 0.0
    %857 = vmatpush1.msra.mxu0 0.0
    %858 = vmatprep.subr.mxu0 0.0
    %859 = vmatpush1.msra.mxu0 0.0
    %860 = vmatprep.subr.mxu0 0.0
    %861 = vmatpush1.msra.mxu0 0.0
    %862 = vmatprep.subr.mxu0 0.0
    %863 = vmatpush1.msra.mxu0 0.0
    %864 = vmatprep.subr.mxu0 0.0
    %865 = vmatpush1.msra.mxu0 0.0
    %866 = vmatprep.subr.mxu0 0.0
    %867 = vmatpush1.msra.mxu0 0.0
    %868 = vmatprep.subr.mxu0 0.0
    %869 = vmatpush1.msra.mxu0 0.0
    %870 = vmatprep.subr.mxu0 0.0
    %871 = vmatpush1.msra.mxu0 0.0
    %872 = vmatprep.subr.mxu0 0.0
    %873 = vmatpush1.msra.mxu0 0.0
    %874 = vmatprep.subr.mxu0 0.0
    %875 = vmatpush1.msra.mxu0 0.0
    %876 = vmatprep.subr.mxu0 0.0
    %877 = vmatpush1.msra.mxu0 0.0
    %878 = vmatprep.subr.mxu0 0.0
    %879 = vmatpush1.msra.mxu0 0.0
    %880 = vmatprep.subr.mxu0 0.0
    %881 = vmatpush1.msra.mxu0 %v128
    %882 = vmatprep.subr.mxu0 0.0
    %883 = vmatpush1.msra.mxu0 %v127
    %884 = vmatprep.subr.mxu0 0.0
    %885 = vmatpush1.msra.mxu0 %v126
    %886 = vmatprep.subr.mxu0 0.0
    %887 = vmatpush1.msra.mxu0 %v125
    %888 = vmatprep.subr.mxu0 0.0
    %889 = vmatpush2.msra.mxu0 0.0
    %890 = vmatprep.subr.mxu0 0.0
    %891 = vmatpush2.msra.mxu0 0.0
    %892 = vmatprep.subr.mxu0 0.0
    %893 = vmatpush2.msra.mxu0 0.0
    %894 = vmatprep.subr.mxu0 0.0
    %895 = vmatpush2.msra.mxu0 0.0
    %896 = vmatprep.subr.mxu0 0.0
    %897 = vmatpush2.msra.mxu0 0.0
    %898 = vmatprep.subr.mxu0 0.0
    %899 = vmatpush2.msra.mxu0 0.0
    %900 = vmatprep.subr.mxu0 0.0
    %901 = vmatpush2.msra.mxu0 0.0
    %902 = vmatprep.subr.mxu0 0.0
    %903 = vmatpush2.msra.mxu0 0.0
    %904 = vmatprep.subr.mxu0 0.0
    %905 = vmatpush2.msra.mxu0 0.0
    %906 = vmatprep.subr.mxu0 0.0
    %907 = vmatpush2.msra.mxu0 0.0
    %908 = vmatprep.subr.mxu0 0.0
    %909 = vmatpush2.msra.mxu0 0.0
    %910 = vmatprep.subr.mxu0 0.0
    %911 = vmatpush2.msra.mxu0 0.0
    %912 = vmatprep.subr.mxu0 0.0
    %913 = vmatpush2.msra.mxu0 0.0
    %914 = vmatprep.subr.mxu0 0.0
    %915 = vmatpush2.msra.mxu0 0.0
    %916 = vmatprep.subr.mxu0 0.0
    %917 = vmatpush2.msra.mxu0 0.0
    %918 = vmatprep.subr.mxu0 0.0
    %919 = vmatpush2.msra.mxu0 0.0
    %920 = vmatprep.mubr.f32.mxu0 0.0
    %921 = vmatmul.mubr.f32.gmra.mxu0 %v854
    %v922 = vpop.f32.mrf.mxu0
    %v923 = vadd.f32 0.0, %v922
    %v924 = vpop.f32.mrf.mxu0
    %925 = vdwg.mxu0
    %v926 = vadd.f32 %v853, %v923
    %v927 = vxor.u32 %v926, 2147483648
    %v928 = vmul.f32 %v927, 1.442695
    %v929 = vpow.pop %v928
    %v930 = vadd.f32 %v929, 1.0
    %v931 = vrcp.pop %v930
    %v932 = vmul.f32 1.0, %v931
    %v933 = vtanh.pop %v926
    %v934 = vmul.f32 %v932, %v841
    %936 = vrot.lane.b32.xlu0 %v933, 64
    %v937 = vpop.permute.xlu0 %936
    %v939 = vmul.f32 %v932, %v937
    %941 = vrot.lane.b32.xlu0 %v939, 32
    %v942 = vpop.permute.xlu0 %941
    %v944 = vadd.f32 %v934, %v942
    %v945 = vtanh.pop %v944
    %947 = vrot.lane.b32.xlu0 %v945, 64
    %v948 = vpop.permute.xlu0 %947
    %v950 = vmul.f32 %v932, %v948
    %952 = vrot.lane.b32.xlu0 %v950, 32
    %v953 = vpop.permute.xlu0 %952
    %955 = vst.msk [vmem:[#allocation3 + $0xe] sm:$0x3] %vm233, %v953
    %v956 = vld [vmem:[#allocation3] sm:$0xff]
    %v957 = vld [vmem:[#allocation3 + $0x8] sm:$0xff]
    %v958 = vld [vmem:[%s4] sm:$0xff]
    %v959 = vld [vmem:[%s4 + $0x8] sm:$0xff]
    %v960 = vld [vmem:[%s4 + $0x10] sm:$0xff]
    %v961 = vld [vmem:[%s4 + $0x18] sm:$0xff]
    %v962 = vld [vmem:[%s4 + $0x20] sm:$0xff]
    %v963 = vld [vmem:[%s4 + $0x28] sm:$0xff]
    %v964 = vld [vmem:[%s4 + $0x30] sm:$0xff]
    %v965 = vld [vmem:[%s4 + $0x38] sm:$0xff]
    %v967 = vsel %vm130, %v956, 0
    %v970 = vsel %vm130, %v957, 0
    %972 = vmatprep.subr.mxu0 0.0
    %973 = vmatpush1.msra.mxu0 0.0
    %974 = vmatprep.subr.mxu0 0.0
    %975 = vmatpush1.msra.mxu0 0.0
    %976 = vmatprep.subr.mxu0 0.0
    %977 = vmatpush1.msra.mxu0 0.0
    %978 = vmatprep.subr.mxu0 0.0
    %979 = vmatpush1.msra.mxu0 0.0
    %980 = vmatprep.subr.mxu0 0.0
    %981 = vmatpush1.msra.mxu0 0.0
    %982 = vmatprep.subr.mxu0 0.0
    %983 = vmatpush1.msra.mxu0 0.0
    %984 = vmatprep.subr.mxu0 0.0
    %985 = vmatpush1.msra.mxu0 0.0
    %986 = vmatprep.subr.mxu0 0.0
    %987 = vmatpush1.msra.mxu0 0.0
    %988 = vmatprep.subr.mxu0 0.0
    %989 = vmatpush1.msra.mxu0 0.0
    %990 = vmatprep.subr.mxu0 0.0
    %991 = vmatpush1.msra.mxu0 0.0
    %992 = vmatprep.subr.mxu0 0.0
    %993 = vmatpush1.msra.mxu0 0.0
    %994 = vmatprep.subr.mxu0 0.0
    %995 = vmatpush1.msra.mxu0 0.0
    %996 = vmatprep.subr.mxu0 %v965
    %997 = vmatpush1.msra.mxu0 %v964
    %998 = vmatprep.subr.mxu0 %v963
    %999 = vmatpush1.msra.mxu0 %v962
    %1000 = vmatprep.subr.mxu0 %v961
    %1001 = vmatpush1.msra.mxu0 %v960
    %1002 = vmatprep.subr.mxu0 %v959
    %1003 = vmatpush1.msra.mxu0 %v958
    %1004 = vmatprep.subr.mxu0 0.0
    %1005 = vmatpush2.msra.mxu0 0.0
    %1006 = vmatprep.subr.mxu0 0.0
    %1007 = vmatpush2.msra.mxu0 0.0
    %1008 = vmatprep.subr.mxu0 0.0
    %1009 = vmatpush2.msra.mxu0 0.0
    %1010 = vmatprep.subr.mxu0 0.0
    %1011 = vmatpush2.msra.mxu0 0.0
    %1012 = vmatprep.subr.mxu0 0.0
    %1013 = vmatpush2.msra.mxu0 0.0
    %1014 = vmatprep.subr.mxu0 0.0
    %1015 = vmatpush2.msra.mxu0 0.0
    %1016 = vmatprep.subr.mxu0 0.0
    %1017 = vmatpush2.msra.mxu0 0.0
    %1018 = vmatprep.subr.mxu0 0.0
    %1019 = vmatpush2.msra.mxu0 0.0
    %1020 = vmatprep.subr.mxu0 0.0
    %1021 = vmatpush2.msra.mxu0 0.0
    %1022 = vmatprep.subr.mxu0 0.0
    %1023 = vmatpush2.msra.mxu0 0.0
    %1024 = vmatprep.subr.mxu0 0.0
    %1025 = vmatpush2.msra.mxu0 0.0
    %1026 = vmatprep.subr.mxu0 0.0
    %1027 = vmatpush2.msra.mxu0 0.0
    %1028 = vmatprep.subr.mxu0 0.0
    %1029 = vmatpush2.msra.mxu0 0.0
    %1030 = vmatprep.subr.mxu0 0.0
    %1031 = vmatpush2.msra.mxu0 0.0
    %1032 = vmatprep.subr.mxu0 0.0
    %1033 = vmatpush2.msra.mxu0 0.0
    %1034 = vmatprep.subr.mxu0 0.0
    %1035 = vmatpush2.msra.mxu0 0.0
    %1036 = vmatprep.mubr.f32.mxu0 0.0
    %1037 = vmatmul.mubr.f32.gmra.mxu0 %v967
    %v1038 = vpop.f32.mrf.mxu0
    %v1039 = vadd.f32 0.0, %v1038
    %v1040 = vpop.f32.mrf.mxu0
    %v1041 = vadd.f32 0.0, %v1040
    %1042 = vmatprep.mubr.f32.mxu0 0.0
    %1043 = vmatmul.mubr.f32.gmra.mxu0 %v970
    %v1044 = vpop.f32.mrf.mxu0
    %v1045 = vadd.f32 0.0, %v1044
    %v1046 = vpop.f32.mrf.mxu0
    %v1047 = vadd.f32 0.0, %v1046
    %1048 = vdwg.mxu0
    %v1049 = vtanh.pop %v1039
    %v1050 = vtanh.pop %v1041
    %v1051 = vtanh.pop %v1045
    %v1052 = vtanh.pop %v1047
    %v1053 = vld [vmem:[%s5] sm:$0xff]
    %v1054 = vld [vmem:[%s5 + $0x8] sm:$0xff]
    %v1055 = vld [vmem:[%s5 + $0x10] sm:$0xff]
    %v1056 = vld [vmem:[%s5 + $0x18] sm:$0xff]
    %v1057 = vld [vmem:[%s5 + $0x20] sm:$0xff]
    %v1058 = vld [vmem:[%s5 + $0x28] sm:$0xff]
    %v1059 = vld [vmem:[%s5 + $0x30] sm:$0xff]
    %v1060 = vld [vmem:[%s5 + $0x38] sm:$0xff]
    %v1061 = vld [vmem:[%s5 + $0x40] sm:$0xff]
    %v1062 = vld [vmem:[%s5 + $0x48] sm:$0xff]
    %v1063 = vld [vmem:[%s5 + $0x50] sm:$0xff]
    %v1064 = vld [vmem:[%s5 + $0x58] sm:$0xff]
    %v1065 = vld [vmem:[%s5 + $0x60] sm:$0xff]
    %v1066 = vld [vmem:[%s5 + $0x68] sm:$0xff]
    %v1067 = vld [vmem:[%s5 + $0x70] sm:$0xff]
    %v1068 = vld [vmem:[%s5 + $0x78] sm:$0xff]
    %v1069 = vld [vmem:[%s5 + $0x80] sm:$0xff]
    %v1070 = vld [vmem:[%s5 + $0x88] sm:$0xff]
    %v1071 = vld [vmem:[%s5 + $0x90] sm:$0x3f]
    %vm1072 = vcmask 179200
    %v1074 = vsel %vm1072, %v1050, 0
    %v1077 = vsel %vm1072, %v1052, 0
    %vm1079 = vcmask 1045504
    %v1081 = vsel %vm1079, %v1071, 0
    %1083 = vmatprep.subr.mxu0 0.0
    %1084 = vmatpush1.msra.mxu0 %v1068
    %1085 = vmatprep.subr.mxu0 0.0
    %1086 = vmatpush1.msra.mxu0 %v1067
    %1087 = vmatprep.subr.mxu0 0.0
    %1088 = vmatpush1.msra.mxu0 %v1066
    %1089 = vmatprep.subr.mxu0 0.0
    %1090 = vmatpush1.msra.mxu0 %v1065
    %1091 = vmatprep.subr.mxu0 0.0
    %1092 = vmatpush1.msra.mxu0 %v1064
    %1093 = vmatprep.subr.mxu0 0.0
    %1094 = vmatpush1.msra.mxu0 %v1063
    %1095 = vmatprep.subr.mxu0 0.0
    %1096 = vmatpush1.msra.mxu0 %v1062
    %1097 = vmatprep.subr.mxu0 0.0
    %1098 = vmatpush1.msra.mxu0 %v1061
    %1099 = vmatprep.subr.mxu0 0.0
    %1100 = vmatpush1.msra.mxu0 %v1060
    %1101 = vmatprep.subr.mxu0 0.0
    %1102 = vmatpush1.msra.mxu0 %v1059
    %1103 = vmatprep.subr.mxu0 0.0
    %1104 = vmatpush1.msra.mxu0 %v1058
    %1105 = vmatprep.subr.mxu0 0.0
    %1106 = vmatpush1.msra.mxu0 %v1057
    %1107 = vmatprep.subr.mxu0 0.0
    %1108 = vmatpush1.msra.mxu0 %v1056
    %1109 = vmatprep.subr.mxu0 0.0
    %1110 = vmatpush1.msra.mxu0 %v1055
    %1111 = vmatprep.subr.mxu0 0.0
    %1112 = vmatpush1.msra.mxu0 %v1054
    %1113 = vmatprep.subr.mxu0 0.0
    %1114 = vmatpush1.msra.mxu0 %v1053
    %1115 = vmatprep.subr.mxu0 0.0
    %1116 = vmatpush2.msra.mxu0 0.0
    %1117 = vmatprep.subr.mxu0 0.0
    %1118 = vmatpush2.msra.mxu0 0.0
    %1119 = vmatprep.subr.mxu0 0.0
    %1120 = vmatpush2.msra.mxu0 0.0
    %1121 = vmatprep.subr.mxu0 0.0
    %1122 = vmatpush2.msra.mxu0 0.0
    %1123 = vmatprep.subr.mxu0 0.0
    %1124 = vmatpush2.msra.mxu0 0.0
    %1125 = vmatprep.subr.mxu0 0.0
    %1126 = vmatpush2.msra.mxu0 0.0
    %1127 = vmatprep.subr.mxu0 0.0
    %1128 = vmatpush2.msra.mxu0 0.0
    %1129 = vmatprep.subr.mxu0 0.0
    %1130 = vmatpush2.msra.mxu0 0.0
    %1131 = vmatprep.subr.mxu0 0.0
    %1132 = vmatpush2.msra.mxu0 0.0
    %1133 = vmatprep.subr.mxu0 0.0
    %1134 = vmatpush2.msra.mxu0 0.0
    %1135 = vmatprep.subr.mxu0 0.0
    %1136 = vmatpush2.msra.mxu0 0.0
    %1137 = vmatprep.subr.mxu0 0.0
    %1138 = vmatpush2.msra.mxu0 0.0
    %1139 = vmatprep.subr.mxu0 0.0
    %1140 = vmatpush2.msra.mxu0 0.0
    %1141 = vmatprep.subr.mxu0 0.0
    %1142 = vmatpush2.msra.mxu0 %v1081
    %1143 = vmatprep.subr.mxu0 0.0
    %1144 = vmatpush2.msra.mxu0 %v1070
    %1145 = vmatprep.subr.mxu0 0.0
    %1146 = vmatpush2.msra.mxu0 %v1069
    %1147 = vmatprep.mubr.f32.mxu0 %v1074
    %1148 = vmatmul.mubr.f32.gmra.mxu0 %v1049
    %v1149 = vpop.f32.mrf.mxu0
    %v1150 = vadd.f32 0.0, %v1149
    %v1151 = vpop.f32.mrf.mxu0
    %1152 = vmatprep.mubr.f32.mxu0 %v1077
    %1153 = vmatmul.mubr.f32.gmra.mxu0 %v1051
    %v1154 = vpop.f32.mrf.mxu0
    %v1155 = vadd.f32 0.0, %v1154
    %v1156 = vpop.f32.mrf.mxu0
    %1157 = vdwg.mxu0
    %1158 = vst [vmem:[#allocation4] sm:$0xff] %v1150
    %1159 = vst [vmem:[#allocation4 + $0x8] sm:$0xff] %v1155
    %v1160 = vld [vmem:[#allocation4] sm:$0x3]
    %v1161 = vld [vmem:[#allocation4 + $0x2] sm:$0x3]
    %v1162 = vld [vmem:[#allocation4 + $0x4] sm:$0x3]
    %v1163 = vld [vmem:[#allocation4 + $0x6] sm:$0x3]
    %v1164 = vld [vmem:[#allocation4 + $0x8] sm:$0x3]
    %v1165 = vld [vmem:[#allocation4 + $0xa] sm:$0x3]
    %v1166 = vld [vmem:[#allocation4 + $0xc] sm:$0x3]
    %v1167 = vld [vmem:[#allocation4 + $0xe] sm:$0x3]
    %v1168 = vmax.f32 %v1160, %v1161
    %v1169 = vmax.f32 %v1168, %v1162
    %v1170 = vmax.f32 %v1169, %v1163
    %v1171 = vmax.f32 %v1170, %v1164
    %v1172 = vmax.f32 %v1171, %v1165
    %v1173 = vmax.f32 %v1172, %v1166
    %v1174 = vmax.f32 %v1173, %v1167
    %v1175 = vsub.f32 %v1160, %v1174
    %v1176 = vmul.f32 %v1175, 1.442695
    %v1177 = vpow.pop %v1176
    %v1178 = vsub.f32 %v1161, %v1174
    %v1179 = vmul.f32 %v1178, 1.442695
    %v1180 = vpow.pop %v1179
    %v1181 = vsub.f32 %v1162, %v1174
    %v1182 = vmul.f32 %v1181, 1.442695
    %v1183 = vpow.pop %v1182
    %v1184 = vsub.f32 %v1163, %v1174
    %v1185 = vmul.f32 %v1184, 1.442695
    %v1186 = vpow.pop %v1185
    %v1187 = vsub.f32 %v1164, %v1174
    %v1188 = vmul.f32 %v1187, 1.442695
    %v1189 = vpow.pop %v1188
    %v1190 = vsub.f32 %v1165, %v1174
    %v1191 = vmul.f32 %v1190, 1.442695
    %v1192 = vpow.pop %v1191
    %v1193 = vsub.f32 %v1166, %v1174
    %v1194 = vmul.f32 %v1193, 1.442695
    %v1195 = vpow.pop %v1194
    %v1196 = vsub.f32 %v1167, %v1174
    %v1197 = vmul.f32 %v1196, 1.442695
    %v1198 = vpow.pop %v1197
    %v1199 = vadd.f32 %v1177, %v1180
    %v1200 = vadd.f32 %v1199, %v1183
    %v1201 = vadd.f32 %v1200, %v1186
    %v1202 = vadd.f32 %v1201, %v1189
    %v1203 = vadd.f32 %v1202, %v1192
    %v1204 = vadd.f32 %v1203, %v1195
    %v1205 = vadd.f32 %v1204, %v1198
    %v1206 = vrcp.pop %v1205
    %v1207 = vmul.f32 1.0, %v1206
    %v1208 = vld [vmem:[#allocation3] sm:$0x3]
    %v1209 = vld [vmem:[#allocation3 + $0x2] sm:$0x3]
    %v1210 = vld [vmem:[#allocation3 + $0x4] sm:$0x3]
    %v1211 = vld [vmem:[#allocation3 + $0x6] sm:$0x3]
    %v1212 = vld [vmem:[#allocation3 + $0x8] sm:$0x3]
    %v1213 = vld [vmem:[#allocation3 + $0xa] sm:$0x3]
    %v1214 = vld [vmem:[#allocation3 + $0xc] sm:$0x3]
    %v1215 = vld [vmem:[#allocation3 + $0xe] sm:$0x3]
    %1217 = vset.pattern.permute.xlu0 0
    %1218 = vperm.xlu0 %1217, %v1177
    %v1219 = vpop.permute.xlu0 %1218
    %v1221 = vmul.f32 %v1208, %v1219
    %1223 = vset.pattern.permute.xlu0 0
    %1224 = vperm.xlu0 %1223, %v1180
    %v1225 = vpop.permute.xlu0 %1224
    %v1227 = vmul.f32 %v1209, %v1225
    %v1228 = vadd.f32 %v1221, %v1227
    %1230 = vset.pattern.permute.xlu0 0
    %1231 = vperm.xlu0 %1230, %v1183
    %v1232 = vpop.permute.xlu0 %1231
    %v1234 = vmul.f32 %v1210, %v1232
    %v1235 = vadd.f32 %v1228, %v1234
    %1237 = vset.pattern.permute.xlu0 0
    %1238 = vperm.xlu0 %1237, %v1186
    %v1239 = vpop.permute.xlu0 %1238
    %v1241 = vmul.f32 %v1211, %v1239
    %v1242 = vadd.f32 %v1235, %v1241
    %1244 = vset.pattern.permute.xlu0 0
    %1245 = vperm.xlu0 %1244, %v1189
    %v1246 = vpop.permute.xlu0 %1245
    %v1248 = vmul.f32 %v1212, %v1246
    %v1249 = vadd.f32 %v1242, %v1248
    %1251 = vset.pattern.permute.xlu0 0
    %1252 = vperm.xlu0 %1251, %v1192
    %v1253 = vpop.permute.xlu0 %1252
    %v1255 = vmul.f32 %v1213, %v1253
    %v1256 = vadd.f32 %v1249, %v1255
    %1258 = vset.pattern.permute.xlu0 0
    %1259 = vperm.xlu0 %1258, %v1195
    %v1260 = vpop.permute.xlu0 %1259
    %v1262 = vmul.f32 %v1214, %v1260
    %v1263 = vadd.f32 %v1256, %v1262
    %1265 = vset.pattern.permute.xlu0 0
    %1266 = vperm.xlu0 %1265, %v1198
    %v1267 = vpop.permute.xlu0 %1266
    %v1269 = vmul.f32 %v1215, %v1267
    %v1270 = vadd.f32 %v1263, %v1269
    %1272 = vset.pattern.permute.xlu0 0
    %1273 = vperm.xlu0 %1272, %v1207
    %v1274 = vpop.permute.xlu0 %1273
    %v1276 = vmul.f32 %v1270, %v1274
    %v1277 = vld [vmem:[%s6] sm:$0xff]
    %v1278 = vld [vmem:[%s6 + $0x8] sm:$0xff]
    %v1279 = vld [vmem:[%s6 + $0x10] sm:$0xff]
    %v1280 = vld [vmem:[%s6 + $0x18] sm:$0xff]
    %1281 = vset.pattern.permute.xlu0 1
    %1282 = vperm.xlu0 %1281, %v1177
    %v1283 = vpop.permute.xlu0 %1282
    %v1285 = vmul.f32 %v1208, %v1283
    %1286 = vset.pattern.permute.xlu0 1
    %1287 = vperm.xlu0 %1286, %v1180
    %v1288 = vpop.permute.xlu0 %1287
    %v1290 = vmul.f32 %v1209, %v1288
    %v1291 = vadd.f32 %v1285, %v1290
    %1292 = vset.pattern.permute.xlu0 1
    %1293 = vperm.xlu0 %1292, %v1183
    %v1294 = vpop.permute.xlu0 %1293
    %v1296 = vmul.f32 %v1210, %v1294
    %v1297 = vadd.f32 %v1291, %v1296
    %1298 = vset.pattern.permute.xlu0 1
    %1299 = vperm.xlu0 %1298, %v1186
    %v1300 = vpop.permute.xlu0 %1299
    %v1302 = vmul.f32 %v1211, %v1300
    %v1303 = vadd.f32 %v1297, %v1302
    %1304 = vset.pattern.permute.xlu0 1
    %1305 = vperm.xlu0 %1304, %v1189
    %v1306 = vpop.permute.xlu0 %1305
    %v1308 = vmul.f32 %v1212, %v1306
    %v1309 = vadd.f32 %v1303, %v1308
    %1310 = vset.pattern.permute.xlu0 1
    %1311 = vperm.xlu0 %1310, %v1192
    %v1312 = vpop.permute.xlu0 %1311
    %v1314 = vmul.f32 %v1213, %v1312
    %v1315 = vadd.f32 %v1309, %v1314
    %1316 = vset.pattern.permute.xlu0 1
    %1317 = vperm.xlu0 %1316, %v1195
    %v1318 = vpop.permute.xlu0 %1317
    %v1320 = vmul.f32 %v1214, %v1318
    %v1321 = vadd.f32 %v1315, %v1320
    %1322 = vset.pattern.permute.xlu0 1
    %1323 = vperm.xlu0 %1322, %v1198
    %v1324 = vpop.permute.xlu0 %1323
    %v1326 = vmul.f32 %v1215, %v1324
    %v1327 = vadd.f32 %v1321, %v1326
    %1328 = vset.pattern.permute.xlu0 1
    %1329 = vperm.xlu0 %1328, %v1207
    %v1330 = vpop.permute.xlu0 %1329
    %v1332 = vmul.f32 %v1327, %v1330
    %s1333 = scalar_lea.vmem %s6, 32
    %v1334 = vld [vmem:[%s1333] sm:$0xff]
    %v1335 = vld [vmem:[%s1333 + $0x8] sm:$0xff]
    %v1336 = vld [vmem:[%s1333 + $0x10] sm:$0xff]
    %v1337 = vld [vmem:[%s1333 + $0x18] sm:$0xff]
    %v1339 = vsel %vm130, %v1332, 0
    %1341 = vmatprep.subr.mxu0 0.0
    %1342 = vmatpush1.msra.mxu0 0.0
    %1343 = vmatprep.subr.mxu0 0.0
    %1344 = vmatpush1.msra.mxu0 0.0
    %1345 = vmatprep.subr.mxu0 0.0
    %1346 = vmatpush1.msra.mxu0 0.0
    %1347 = vmatprep.subr.mxu0 0.0
    %1348 = vmatpush1.msra.mxu0 0.0
    %1349 = vmatprep.subr.mxu0 0.0
    %1350 = vmatpush1.msra.mxu0 0.0
    %1351 = vmatprep.subr.mxu0 0.0
    %1352 = vmatpush1.msra.mxu0 0.0
    %1353 = vmatprep.subr.mxu0 0.0
    %1354 = vmatpush1.msra.mxu0 0.0
    %1355 = vmatprep.subr.mxu0 0.0
    %1356 = vmatpush1.msra.mxu0 0.0
    %1357 = vmatprep.subr.mxu0 0.0
    %1358 = vmatpush1.msra.mxu0 0.0
    %1359 = vmatprep.subr.mxu0 0.0
    %1360 = vmatpush1.msra.mxu0 0.0
    %1361 = vmatprep.subr.mxu0 0.0
    %1362 = vmatpush1.msra.mxu0 0.0
    %1363 = vmatprep.subr.mxu0 0.0
    %1364 = vmatpush1.msra.mxu0 0.0
    %1365 = vmatprep.subr.mxu0 0.0
    %1366 = vmatpush1.msra.mxu0 %v1337
    %1367 = vmatprep.subr.mxu0 0.0
    %1368 = vmatpush1.msra.mxu0 %v1336
    %1369 = vmatprep.subr.mxu0 0.0
    %1370 = vmatpush1.msra.mxu0 %v1335
    %1371 = vmatprep.subr.mxu0 0.0
    %1372 = vmatpush1.msra.mxu0 %v1334
    %1373 = vmatprep.subr.mxu0 0.0
    %1374 = vmatpush2.msra.mxu0 0.0
    %1375 = vmatprep.subr.mxu0 0.0
    %1376 = vmatpush2.msra.mxu0 0.0
    %1377 = vmatprep.subr.mxu0 0.0
    %1378 = vmatpush2.msra.mxu0 0.0
    %1379 = vmatprep.subr.mxu0 0.0
    %1380 = vmatpush2.msra.mxu0 0.0
    %1381 = vmatprep.subr.mxu0 0.0
    %1382 = vmatpush2.msra.mxu0 0.0
    %1383 = vmatprep.subr.mxu0 0.0
    %1384 = vmatpush2.msra.mxu0 0.0
    %1385 = vmatprep.subr.mxu0 0.0
    %1386 = vmatpush2.msra.mxu0 0.0
    %1387 = vmatprep.subr.mxu0 0.0
    %1388 = vmatpush2.msra.mxu0 0.0
    %1389 = vmatprep.subr.mxu0 0.0
    %1390 = vmatpush2.msra.mxu0 0.0
    %1391 = vmatprep.subr.mxu0 0.0
    %1392 = vmatpush2.msra.mxu0 0.0
    %1393 = vmatprep.subr.mxu0 0.0
    %1394 = vmatpush2.msra.mxu0 0.0
    %1395 = vmatprep.subr.mxu0 0.0
    %1396 = vmatpush2.msra.mxu0 0.0
    %1397 = vmatprep.subr.mxu0 0.0
    %1398 = vmatpush2.msra.mxu0 0.0
    %1399 = vmatprep.subr.mxu0 0.0
    %1400 = vmatpush2.msra.mxu0 0.0
    %1401 = vmatprep.subr.mxu0 0.0
    %1402 = vmatpush2.msra.mxu0 0.0
    %1403 = vmatprep.subr.mxu0 0.0
    %1404 = vmatpush2.msra.mxu0 0.0
    %1405 = vmatprep.mubr.f32.mxu0 0.0
    %1406 = vmatmul.mubr.f32.gmra.mxu0 %v1339
    %v1407 = vpop.f32.mrf.mxu0
    %v1408 = vadd.f32 0.0, %v1407
    %v1409 = vpop.f32.mrf.mxu0
    %1410 = vdwg.mxu0
    %v1412 = vsel %vm130, %v1276, 0
    %1414 = vmatprep.subr.mxu0 0.0
    %1415 = vmatpush1.msra.mxu0 0.0
    %1416 = vmatprep.subr.mxu0 0.0
    %1417 = vmatpush1.msra.mxu0 0.0
    %1418 = vmatprep.subr.mxu0 0.0
    %1419 = vmatpush1.msra.mxu0 0.0
    %1420 = vmatprep.subr.mxu0 0.0
    %1421 = vmatpush1.msra.mxu0 0.0
    %1422 = vmatprep.subr.mxu0 0.0
    %1423 = vmatpush1.msra.mxu0 0.0
    %1424 = vmatprep.subr.mxu0 0.0
    %1425 = vmatpush1.msra.mxu0 0.0
    %1426 = vmatprep.subr.mxu0 0.0
    %1427 = vmatpush1.msra.mxu0 0.0
    %1428 = vmatprep.subr.mxu0 0.0
    %1429 = vmatpush1.msra.mxu0 0.0
    %1430 = vmatprep.subr.mxu0 0.0
    %1431 = vmatpush1.msra.mxu0 0.0
    %1432 = vmatprep.subr.mxu0 0.0
    %1433 = vmatpush1.msra.mxu0 0.0
    %1434 = vmatprep.subr.mxu0 0.0
    %1435 = vmatpush1.msra.mxu0 0.0
    %1436 = vmatprep.subr.mxu0 0.0
    %1437 = vmatpush1.msra.mxu0 0.0
    %1438 = vmatprep.subr.mxu0 0.0
    %1439 = vmatpush1.msra.mxu0 %v1280
    %1440 = vmatprep.subr.mxu0 0.0
    %1441 = vmatpush1.msra.mxu0 %v1279
    %1442 = vmatprep.subr.mxu0 0.0
    %1443 = vmatpush1.msra.mxu0 %v1278
    %1444 = vmatprep.subr.mxu0 0.0
    %1445 = vmatpush1.msra.mxu0 %v1277
    %1446 = vmatprep.subr.mxu0 0.0
    %1447 = vmatpush2.msra.mxu0 0.0
    %1448 = vmatprep.subr.mxu0 0.0
    %1449 = vmatpush2.msra.mxu0 0.0
    %1450 = vmatprep.subr.mxu0 0.0
    %1451 = vmatpush2.msra.mxu0 0.0
    %1452 = vmatprep.subr.mxu0 0.0
    %1453 = vmatpush2.msra.mxu0 0.0
    %1454 = vmatprep.subr.mxu0 0.0
    %1455 = vmatpush2.msra.mxu0 0.0
    %1456 = vmatprep.subr.mxu0 0.0
    %1457 = vmatpush2.msra.mxu0 0.0
    %1458 = vmatprep.subr.mxu0 0.0
    %1459 = vmatpush2.msra.mxu0 0.0
    %1460 = vmatprep.subr.mxu0 0.0
    %1461 = vmatpush2.msra.mxu0 0.0
    %1462 = vmatprep.subr.mxu0 0.0
    %1463 = vmatpush2.msra.mxu0 0.0
    %1464 = vmatprep.subr.mxu0 0.0
    %1465 = vmatpush2.msra.mxu0 0.0
    %1466 = vmatprep.subr.mxu0 0.0
    %1467 = vmatpush2.msra.mxu0 0.0
    %1468 = vmatprep.subr.mxu0 0.0
    %1469 = vmatpush2.msra.mxu0 0.0
    %1470 = vmatprep.subr.mxu0 0.0
    %1471 = vmatpush2.msra.mxu0 0.0
    %1472 = vmatprep.subr.mxu0 0.0
    %1473 = vmatpush2.msra.mxu0 0.0
    %1474 = vmatprep.subr.mxu0 0.0
    %1475 = vmatpush2.msra.mxu0 0.0
    %1476 = vmatprep.subr.mxu0 0.0
    %1477 = vmatpush2.msra.mxu0 0.0
    %1478 = vmatprep.mubr.f32.mxu0 0.0
    %1479 = vmatmul.mubr.f32.gmra.mxu0 %v1412
    %v1480 = vpop.f32.mrf.mxu0
    %v1481 = vadd.f32 %v1408, %v1480
    %v1482 = vpop.f32.mrf.mxu0
    %1483 = vdwg.mxu0
    %1484 = vset.pattern.permute.xlu0 2
    %1485 = vperm.xlu0 %1484, %v1177
    %v1486 = vpop.permute.xlu0 %1485
    %v1488 = vmul.f32 %v1208, %v1486
    %1489 = vset.pattern.permute.xlu0 2
    %1490 = vperm.xlu0 %1489, %v1180
    %v1491 = vpop.permute.xlu0 %1490
    %v1493 = vmul.f32 %v1209, %v1491
    %v1494 = vadd.f32 %v1488, %v1493
    %1495 = vset.pattern.permute.xlu0 2
    %1496 = vperm.xlu0 %1495, %v1183
    %v1497 = vpop.permute.xlu0 %1496
    %v1499 = vmul.f32 %v1210, %v1497
    %v1500 = vadd.f32 %v1494, %v1499
    %1501 = vset.pattern.permute.xlu0 2
    %1502 = vperm.xlu0 %1501, %v1186
    %v1503 = vpop.permute.xlu0 %1502
    %v1505 = vmul.f32 %v1211, %v1503
    %v1506 = vadd.f32 %v1500, %v1505
    %1507 = vset.pattern.permute.xlu0 2
    %1508 = vperm.xlu0 %1507, %v1189
    %v1509 = vpop.permute.xlu0 %1508
    %v1511 = vmul.f32 %v1212, %v1509
    %v1512 = vadd.f32 %v1506, %v1511
    %1513 = vset.pattern.permute.xlu0 2
    %1514 = vperm.xlu0 %1513, %v1192
    %v1515 = vpop.permute.xlu0 %1514
    %v1517 = vmul.f32 %v1213, %v1515
    %v1518 = vadd.f32 %v1512, %v1517
    %1519 = vset.pattern.permute.xlu0 2
    %1520 = vperm.xlu0 %1519, %v1195
    %v1521 = vpop.permute.xlu0 %1520
    %v1523 = vmul.f32 %v1214, %v1521
    %v1524 = vadd.f32 %v1518, %v1523
    %1525 = vset.pattern.permute.xlu0 2
    %1526 = vperm.xlu0 %1525, %v1198
    %v1527 = vpop.permute.xlu0 %1526
    %v1529 = vmul.f32 %v1215, %v1527
    %v1530 = vadd.f32 %v1524, %v1529
    %1531 = vset.pattern.permute.xlu0 2
    %1532 = vperm.xlu0 %1531, %v1207
    %v1533 = vpop.permute.xlu0 %1532
    %v1535 = vmul.f32 %v1530, %v1533
    %s1536 = scalar_lea.vmem %s6, 64
    %v1537 = vld [vmem:[%s1536] sm:$0xff]
    %v1538 = vld [vmem:[%s1536 + $0x8] sm:$0xff]
    %v1539 = vld [vmem:[%s1536 + $0x10] sm:$0xff]
    %v1540 = vld [vmem:[%s1536 + $0x18] sm:$0xff]
    %v1542 = vsel %vm130, %v1535, 0
    %1544 = vmatprep.subr.mxu0 0.0
    %1545 = vmatpush1.msra.mxu0 0.0
    %1546 = vmatprep.subr.mxu0 0.0
    %1547 = vmatpush1.msra.mxu0 0.0
    %1548 = vmatprep.subr.mxu0 0.0
    %1549 = vmatpush1.msra.mxu0 0.0
    %1550 = vmatprep.subr.mxu0 0.0
    %1551 = vmatpush1.msra.mxu0 0.0
    %1552 = vmatprep.subr.mxu0 0.0
    %1553 = vmatpush1.msra.mxu0 0.0
    %1554 = vmatprep.subr.mxu0 0.0
    %1555 = vmatpush1.msra.mxu0 0.0
    %1556 = vmatprep.subr.mxu0 0.0
    %1557 = vmatpush1.msra.mxu0 0.0
    %1558 = vmatprep.subr.mxu0 0.0
    %1559 = vmatpush1.msra.mxu0 0.0
    %1560 = vmatprep.subr.mxu0 0.0
    %1561 = vmatpush1.msra.mxu0 0.0
    %1562 = vmatprep.subr.mxu0 0.0
    %1563 = vmatpush1.msra.mxu0 0.0
    %1564 = vmatprep.subr.mxu0 0.0
    %1565 = vmatpush1.msra.mxu0 0.0
    %1566 = vmatprep.subr.mxu0 0.0
    %1567 = vmatpush1.msra.mxu0 0.0
    %1568 = vmatprep.subr.mxu0 0.0
    %1569 = vmatpush1.msra.mxu0 %v1540
    %1570 = vmatprep.subr.mxu0 0.0
    %1571 = vmatpush1.msra.mxu0 %v1539
    %1572 = vmatprep.subr.mxu0 0.0
    %1573 = vmatpush1.msra.mxu0 %v1538
    %1574 = vmatprep.subr.mxu0 0.0
    %1575 = vmatpush1.msra.mxu0 %v1537
    %1576 = vmatprep.subr.mxu0 0.0
    %1577 = vmatpush2.msra.mxu0 0.0
    %1578 = vmatprep.subr.mxu0 0.0
    %1579 = vmatpush2.msra.mxu0 0.0
    %1580 = vmatprep.subr.mxu0 0.0
    %1581 = vmatpush2.msra.mxu0 0.0
    %1582 = vmatprep.subr.mxu0 0.0
    %1583 = vmatpush2.msra.mxu0 0.0
    %1584 = vmatprep.subr.mxu0 0.0
    %1585 = vmatpush2.msra.mxu0 0.0
    %1586 = vmatprep.subr.mxu0 0.0
    %1587 = vmatpush2.msra.mxu0 0.0
    %1588 = vmatprep.subr.mxu0 0.0
    %1589 = vmatpush2.msra.mxu0 0.0
    %1590 = vmatprep.subr.mxu0 0.0
    %1591 = vmatpush2.msra.mxu0 0.0
    %1592 = vmatprep.subr.mxu0 0.0
    %1593 = vmatpush2.msra.mxu0 0.0
    %1594 = vmatprep.subr.mxu0 0.0
    %1595 = vmatpush2.msra.mxu0 0.0
    %1596 = vmatprep.subr.mxu0 0.0
    %1597 = vmatpush2.msra.mxu0 0.0
    %1598 = vmatprep.subr.mxu0 0.0
    %1599 = vmatpush2.msra.mxu0 0.0
    %1600 = vmatprep.subr.mxu0 0.0
    %1601 = vmatpush2.msra.mxu0 0.0
    %1602 = vmatprep.subr.mxu0 0.0
    %1603 = vmatpush2.msra.mxu0 0.0
    %1604 = vmatprep.subr.mxu0 0.0
    %1605 = vmatpush2.msra.mxu0 0.0
    %1606 = vmatprep.subr.mxu0 0.0
    %1607 = vmatpush2.msra.mxu0 0.0
    %1608 = vmatprep.mubr.f32.mxu0 0.0
    %1609 = vmatmul.mubr.f32.gmra.mxu0 %v1542
    %v1610 = vpop.f32.mrf.mxu0
    %v1611 = vadd.f32 0.0, %v1610
    %v1612 = vpop.f32.mrf.mxu0
    %1613 = vdwg.mxu0
    %v1614 = vadd.f32 %v1481, %v1611
    %1615 = vset.pattern.permute.xlu0 3
    %1616 = vperm.xlu0 %1615, %v1177
    %v1617 = vpop.permute.xlu0 %1616
    %v1619 = vmul.f32 %v1208, %v1617
    %1620 = vset.pattern.permute.xlu0 3
    %1621 = vperm.xlu0 %1620, %v1180
    %v1622 = vpop.permute.xlu0 %1621
    %v1624 = vmul.f32 %v1209, %v1622
    %v1625 = vadd.f32 %v1619, %v1624
    %1626 = vset.pattern.permute.xlu0 3
    %1627 = vperm.xlu0 %1626, %v1183
    %v1628 = vpop.permute.xlu0 %1627
    %v1630 = vmul.f32 %v1210, %v1628
    %v1631 = vadd.f32 %v1625, %v1630
    %1632 = vset.pattern.permute.xlu0 3
    %1633 = vperm.xlu0 %1632, %v1186
    %v1634 = vpop.permute.xlu0 %1633
    %v1636 = vmul.f32 %v1211, %v1634
    %v1637 = vadd.f32 %v1631, %v1636
    %1638 = vset.pattern.permute.xlu0 3
    %1639 = vperm.xlu0 %1638, %v1189
    %v1640 = vpop.permute.xlu0 %1639
    %v1642 = vmul.f32 %v1212, %v1640
    %v1643 = vadd.f32 %v1637, %v1642
    %1644 = vset.pattern.permute.xlu0 3
    %1645 = vperm.xlu0 %1644, %v1192
    %v1646 = vpop.permute.xlu0 %1645
    %v1648 = vmul.f32 %v1213, %v1646
    %v1649 = vadd.f32 %v1643, %v1648
    %1650 = vset.pattern.permute.xlu0 3
    %1651 = vperm.xlu0 %1650, %v1195
    %v1652 = vpop.permute.xlu0 %1651
    %v1654 = vmul.f32 %v1214, %v1652
    %v1655 = vadd.f32 %v1649, %v1654
    %1656 = vset.pattern.permute.xlu0 3
    %1657 = vperm.xlu0 %1656, %v1198
    %v1658 = vpop.permute.xlu0 %1657
    %v1660 = vmul.f32 %v1215, %v1658
    %v1661 = vadd.f32 %v1655, %v1660
    %1662 = vset.pattern.permute.xlu0 3
    %1663 = vperm.xlu0 %1662, %v1207
    %v1664 = vpop.permute.xlu0 %1663
    %v1666 = vmul.f32 %v1661, %v1664
    %s1667 = scalar_lea.vmem %s6, 96
    %v1668 = vld [vmem:[%s1667] sm:$0xff]
    %v1669 = vld [vmem:[%s1667 + $0x8] sm:$0xff]
    %v1670 = vld [vmem:[%s1667 + $0x10] sm:$0xff]
    %v1671 = vld [vmem:[%s1667 + $0x18] sm:$0xff]
    %v1673 = vsel %vm130, %v1666, 0
    %1675 = vmatprep.subr.mxu0 0.0
    %1676 = vmatpush1.msra.mxu0 0.0
    %1677 = vmatprep.subr.mxu0 0.0
    %1678 = vmatpush1.msra.mxu0 0.0
    %1679 = vmatprep.subr.mxu0 0.0
    %1680 = vmatpush1.msra.mxu0 0.0
    %1681 = vmatprep.subr.mxu0 0.0
    %1682 = vmatpush1.msra.mxu0 0.0
    %1683 = vmatprep.subr.mxu0 0.0
    %1684 = vmatpush1.msra.mxu0 0.0
    %1685 = vmatprep.subr.mxu0 0.0
    %1686 = vmatpush1.msra.mxu0 0.0
    %1687 = vmatprep.subr.mxu0 0.0
    %1688 = vmatpush1.msra.mxu0 0.0
    %1689 = vmatprep.subr.mxu0 0.0
    %1690 = vmatpush1.msra.mxu0 0.0
    %1691 = vmatprep.subr.mxu0 0.0
    %1692 = vmatpush1.msra.mxu0 0.0
    %1693 = vmatprep.subr.mxu0 0.0
    %1694 = vmatpush1.msra.mxu0 0.0
    %1695 = vmatprep.subr.mxu0 0.0
    %1696 = vmatpush1.msra.mxu0 0.0
    %1697 = vmatprep.subr.mxu0 0.0
    %1698 = vmatpush1.msra.mxu0 0.0
    %1699 = vmatprep.subr.mxu0 0.0
    %1700 = vmatpush1.msra.mxu0 %v1671
    %1701 = vmatprep.subr.mxu0 0.0
    %1702 = vmatpush1.msra.mxu0 %v1670
    %1703 = vmatprep.subr.mxu0 0.0
    %1704 = vmatpush1.msra.mxu0 %v1669
    %1705 = vmatprep.subr.mxu0 0.0
    %1706 = vmatpush1.msra.mxu0 %v1668
    %1707 = vmatprep.subr.mxu0 0.0
    %1708 = vmatpush2.msra.mxu0 0.0
    %1709 = vmatprep.subr.mxu0 0.0
    %1710 = vmatpush2.msra.mxu0 0.0
    %1711 = vmatprep.subr.mxu0 0.0
    %1712 = vmatpush2.msra.mxu0 0.0
    %1713 = vmatprep.subr.mxu0 0.0
    %1714 = vmatpush2.msra.mxu0 0.0
    %1715 = vmatprep.subr.mxu0 0.0
    %1716 = vmatpush2.msra.mxu0 0.0
    %1717 = vmatprep.subr.mxu0 0.0
    %1718 = vmatpush2.msra.mxu0 0.0
    %1719 = vmatprep.subr.mxu0 0.0
    %1720 = vmatpush2.msra.mxu0 0.0
    %1721 = vmatprep.subr.mxu0 0.0
    %1722 = vmatpush2.msra.mxu0 0.0
    %1723 = vmatprep.subr.mxu0 0.0
    %1724 = vmatpush2.msra.mxu0 0.0
    %1725 = vmatprep.subr.mxu0 0.0
    %1726 = vmatpush2.msra.mxu0 0.0
    %1727 = vmatprep.subr.mxu0 0.0
    %1728 = vmatpush2.msra.mxu0 0.0
    %1729 = vmatprep.subr.mxu0 0.0
    %1730 = vmatpush2.msra.mxu0 0.0
    %1731 = vmatprep.subr.mxu0 0.0
    %1732 = vmatpush2.msra.mxu0 0.0
    %1733 = vmatprep.subr.mxu0 0.0
    %1734 = vmatpush2.msra.mxu0 0.0
    %1735 = vmatprep.subr.mxu0 0.0
    %1736 = vmatpush2.msra.mxu0 0.0
    %1737 = vmatprep.subr.mxu0 0.0
    %1738 = vmatpush2.msra.mxu0 0.0
    %1739 = vmatprep.mubr.f32.mxu0 0.0
    %1740 = vmatmul.mubr.f32.gmra.mxu0 %v1673
    %v1741 = vpop.f32.mrf.mxu0
    %v1742 = vadd.f32 0.0, %v1741
    %v1743 = vpop.f32.mrf.mxu0
    %1744 = vdwg.mxu0
    %v1745 = vadd.f32 %v1614, %v1742
    %1746 = vset.pattern.permute.xlu0 4
    %1747 = vperm.xlu0 %1746, %v1177
    %v1748 = vpop.permute.xlu0 %1747
    %v1750 = vmul.f32 %v1208, %v1748
    %1751 = vset.pattern.permute.xlu0 4
    %1752 = vperm.xlu0 %1751, %v1180
    %v1753 = vpop.permute.xlu0 %1752
    %v1755 = vmul.f32 %v1209, %v1753
    %v1756 = vadd.f32 %v1750, %v1755
    %1757 = vset.pattern.permute.xlu0 4
    %1758 = vperm.xlu0 %1757, %v1183
    %v1759 = vpop.permute.xlu0 %1758
    %v1761 = vmul.f32 %v1210, %v1759
    %v1762 = vadd.f32 %v1756, %v1761
    %1763 = vset.pattern.permute.xlu0 4
    %1764 = vperm.xlu0 %1763, %v1186
    %v1765 = vpop.permute.xlu0 %1764
    %v1767 = vmul.f32 %v1211, %v1765
    %v1768 = vadd.f32 %v1762, %v1767
    %1769 = vset.pattern.permute.xlu0 4
    %1770 = vperm.xlu0 %1769, %v1189
    %v1771 = vpop.permute.xlu0 %1770
    %v1773 = vmul.f32 %v1212, %v1771
    %v1774 = vadd.f32 %v1768, %v1773
    %1775 = vset.pattern.permute.xlu0 4
    %1776 = vperm.xlu0 %1775, %v1192
    %v1777 = vpop.permute.xlu0 %1776
    %v1779 = vmul.f32 %v1213, %v1777
    %v1780 = vadd.f32 %v1774, %v1779
    %1781 = vset.pattern.permute.xlu0 4
    %1782 = vperm.xlu0 %1781, %v1195
    %v1783 = vpop.permute.xlu0 %1782
    %v1785 = vmul.f32 %v1214, %v1783
    %v1786 = vadd.f32 %v1780, %v1785
    %1787 = vset.pattern.permute.xlu0 4
    %1788 = vperm.xlu0 %1787, %v1198
    %v1789 = vpop.permute.xlu0 %1788
    %v1791 = vmul.f32 %v1215, %v1789
    %v1792 = vadd.f32 %v1786, %v1791
    %1793 = vset.pattern.permute.xlu0 4
    %1794 = vperm.xlu0 %1793, %v1207
    %v1795 = vpop.permute.xlu0 %1794
    %v1797 = vmul.f32 %v1792, %v1795
    %s1798 = scalar_lea.vmem %s6, 128
    %v1799 = vld [vmem:[%s1798] sm:$0xff]
    %v1800 = vld [vmem:[%s1798 + $0x8] sm:$0xff]
    %v1801 = vld [vmem:[%s1798 + $0x10] sm:$0xff]
    %v1802 = vld [vmem:[%s1798 + $0x18] sm:$0xff]
    %v1804 = vsel %vm130, %v1797, 0
    %1806 = vmatprep.subr.mxu0 0.0
    %1807 = vmatpush1.msra.mxu0 0.0
    %1808 = vmatprep.subr.mxu0 0.0
    %1809 = vmatpush1.msra.mxu0 0.0
    %1810 = vmatprep.subr.mxu0 0.0
    %1811 = vmatpush1.msra.mxu0 0.0
    %1812 = vmatprep.subr.mxu0 0.0
    %1813 = vmatpush1.msra.mxu0 0.0
    %1814 = vmatprep.subr.mxu0 0.0
    %1815 = vmatpush1.msra.mxu0 0.0
    %1816 = vmatprep.subr.mxu0 0.0
    %1817 = vmatpush1.msra.mxu0 0.0
    %1818 = vmatprep.subr.mxu0 0.0
    %1819 = vmatpush1.msra.mxu0 0.0
    %1820 = vmatprep.subr.mxu0 0.0
    %1821 = vmatpush1.msra.mxu0 0.0
    %1822 = vmatprep.subr.mxu0 0.0
    %1823 = vmatpush1.msra.mxu0 0.0
    %1824 = vmatprep.subr.mxu0 0.0
    %1825 = vmatpush1.msra.mxu0 0.0
    %1826 = vmatprep.subr.mxu0 0.0
    %1827 = vmatpush1.msra.mxu0 0.0
    %1828 = vmatprep.subr.mxu0 0.0
    %1829 = vmatpush1.msra.mxu0 0.0
    %1830 = vmatprep.subr.mxu0 0.0
    %1831 = vmatpush1.msra.mxu0 %v1802
    %1832 = vmatprep.subr.mxu0 0.0
    %1833 = vmatpush1.msra.mxu0 %v1801
    %1834 = vmatprep.subr.mxu0 0.0
    %1835 = vmatpush1.msra.mxu0 %v1800
    %1836 = vmatprep.subr.mxu0 0.0
    %1837 = vmatpush1.msra.mxu0 %v1799
    %1838 = vmatprep.subr.mxu0 0.0
    %1839 = vmatpush2.msra.mxu0 0.0
    %1840 = vmatprep.subr.mxu0 0.0
    %1841 = vmatpush2.msra.mxu0 0.0
    %1842 = vmatprep.subr.mxu0 0.0
    %1843 = vmatpush2.msra.mxu0 0.0
    %1844 = vmatprep.subr.mxu0 0.0
    %1845 = vmatpush2.msra.mxu0 0.0
    %1846 = vmatprep.subr.mxu0 0.0
    %1847 = vmatpush2.msra.mxu0 0.0
    %1848 = vmatprep.subr.mxu0 0.0
    %1849 = vmatpush2.msra.mxu0 0.0
    %1850 = vmatprep.subr.mxu0 0.0
    %1851 = vmatpush2.msra.mxu0 0.0
    %1852 = vmatprep.subr.mxu0 0.0
    %1853 = vmatpush2.msra.mxu0 0.0
    %1854 = vmatprep.subr.mxu0 0.0
    %1855 = vmatpush2.msra.mxu0 0.0
    %1856 = vmatprep.subr.mxu0 0.0
    %1857 = vmatpush2.msra.mxu0 0.0
    %1858 = vmatprep.subr.mxu0 0.0
    %1859 = vmatpush2.msra.mxu0 0.0
    %1860 = vmatprep.subr.mxu0 0.0
    %1861 = vmatpush2.msra.mxu0 0.0
    %1862 = vmatprep.subr.mxu0 0.0
    %1863 = vmatpush2.msra.mxu0 0.0
    %1864 = vmatprep.subr.mxu0 0.0
    %1865 = vmatpush2.msra.mxu0 0.0
    %1866 = vmatprep.subr.mxu0 0.0
    %1867 = vmatpush2.msra.mxu0 0.0
    %1868 = vmatprep.subr.mxu0 0.0
    %1869 = vmatpush2.msra.mxu0 0.0
    %1870 = vmatprep.mubr.f32.mxu0 0.0
    %1871 = vmatmul.mubr.f32.gmra.mxu0 %v1804
    %v1872 = vpop.f32.mrf.mxu0
    %v1873 = vadd.f32 0.0, %v1872
    %v1874 = vpop.f32.mrf.mxu0
    %1875 = vdwg.mxu0
    %v1876 = vadd.f32 %v1745, %v1873
    %1877 = vset.pattern.permute.xlu0 5
    %1878 = vperm.xlu0 %1877, %v1177
    %v1879 = vpop.permute.xlu0 %1878
    %v1881 = vmul.f32 %v1208, %v1879
    %1882 = vset.pattern.permute.xlu0 5
    %1883 = vperm.xlu0 %1882, %v1180
    %v1884 = vpop.permute.xlu0 %1883
    %v1886 = vmul.f32 %v1209, %v1884
    %v1887 = vadd.f32 %v1881, %v1886
    %1888 = vset.pattern.permute.xlu0 5
    %1889 = vperm.xlu0 %1888, %v1183
    %v1890 = vpop.permute.xlu0 %1889
    %v1892 = vmul.f32 %v1210, %v1890
    %v1893 = vadd.f32 %v1887, %v1892
    %1894 = vset.pattern.permute.xlu0 5
    %1895 = vperm.xlu0 %1894, %v1186
    %v1896 = vpop.permute.xlu0 %1895
    %v1898 = vmul.f32 %v1211, %v1896
    %v1899 = vadd.f32 %v1893, %v1898
    %1900 = vset.pattern.permute.xlu0 5
    %1901 = vperm.xlu0 %1900, %v1189
    %v1902 = vpop.permute.xlu0 %1901
    %v1904 = vmul.f32 %v1212, %v1902
    %v1905 = vadd.f32 %v1899, %v1904
    %1906 = vset.pattern.permute.xlu0 5
    %1907 = vperm.xlu0 %1906, %v1192
    %v1908 = vpop.permute.xlu0 %1907
    %v1910 = vmul.f32 %v1213, %v1908
    %v1911 = vadd.f32 %v1905, %v1910
    %1912 = vset.pattern.permute.xlu0 5
    %1913 = vperm.xlu0 %1912, %v1195
    %v1914 = vpop.permute.xlu0 %1913
    %v1916 = vmul.f32 %v1214, %v1914
    %v1917 = vadd.f32 %v1911, %v1916
    %1918 = vset.pattern.permute.xlu0 5
    %1919 = vperm.xlu0 %1918, %v1198
    %v1920 = vpop.permute.xlu0 %1919
    %v1922 = vmul.f32 %v1215, %v1920
    %v1923 = vadd.f32 %v1917, %v1922
    %1924 = vset.pattern.permute.xlu0 5
    %1925 = vperm.xlu0 %1924, %v1207
    %v1926 = vpop.permute.xlu0 %1925
    %v1928 = vmul.f32 %v1923, %v1926
    %s1929 = scalar_lea.vmem %s6, 160
    %v1930 = vld [vmem:[%s1929] sm:$0xff]
    %v1931 = vld [vmem:[%s1929 + $0x8] sm:$0xff]
    %v1932 = vld [vmem:[%s1929 + $0x10] sm:$0xff]
    %v1933 = vld [vmem:[%s1929 + $0x18] sm:$0xff]
    %v1935 = vsel %vm130, %v1928, 0
    %1937 = vmatprep.subr.mxu0 0.0
    %1938 = vmatpush1.msra.mxu0 0.0
    %1939 = vmatprep.subr.mxu0 0.0
    %1940 = vmatpush1.msra.mxu0 0.0
    %1941 = vmatprep.subr.mxu0 0.0
    %1942 = vmatpush1.msra.mxu0 0.0
    %1943 = vmatprep.subr.mxu0 0.0
    %1944 = vmatpush1.msra.mxu0 0.0
    %1945 = vmatprep.subr.mxu0 0.0
    %1946 = vmatpush1.msra.mxu0 0.0
    %1947 = vmatprep.subr.mxu0 0.0
    %1948 = vmatpush1.msra.mxu0 0.0
    %1949 = vmatprep.subr.mxu0 0.0
    %1950 = vmatpush1.msra.mxu0 0.0
    %1951 = vmatprep.subr.mxu0 0.0
    %1952 = vmatpush1.msra.mxu0 0.0
    %1953 = vmatprep.subr.mxu0 0.0
    %1954 = vmatpush1.msra.mxu0 0.0
    %1955 = vmatprep.subr.mxu0 0.0
    %1956 = vmatpush1.msra.mxu0 0.0
    %1957 = vmatprep.subr.mxu0 0.0
    %1958 = vmatpush1.msra.mxu0 0.0
    %1959 = vmatprep.subr.mxu0 0.0
    %1960 = vmatpush1.msra.mxu0 0.0
    %1961 = vmatprep.subr.mxu0 0.0
    %1962 = vmatpush1.msra.mxu0 %v1933
    %1963 = vmatprep.subr.mxu0 0.0
    %1964 = vmatpush1.msra.mxu0 %v1932
    %1965 = vmatprep.subr.mxu0 0.0
    %1966 = vmatpush1.msra.mxu0 %v1931
    %1967 = vmatprep.subr.mxu0 0.0
    %1968 = vmatpush1.msra.mxu0 %v1930
    %1969 = vmatprep.subr.mxu0 0.0
    %1970 = vmatpush2.msra.mxu0 0.0
    %1971 = vmatprep.subr.mxu0 0.0
    %1972 = vmatpush2.msra.mxu0 0.0
    %1973 = vmatprep.subr.mxu0 0.0
    %1974 = vmatpush2.msra.mxu0 0.0
    %1975 = vmatprep.subr.mxu0 0.0
    %1976 = vmatpush2.msra.mxu0 0.0
    %1977 = vmatprep.subr.mxu0 0.0
    %1978 = vmatpush2.msra.mxu0 0.0
    %1979 = vmatprep.subr.mxu0 0.0
    %1980 = vmatpush2.msra.mxu0 0.0
    %1981 = vmatprep.subr.mxu0 0.0
    %1982 = vmatpush2.msra.mxu0 0.0
    %1983 = vmatprep.subr.mxu0 0.0
    %1984 = vmatpush2.msra.mxu0 0.0
    %1985 = vmatprep.subr.mxu0 0.0
    %1986 = vmatpush2.msra.mxu0 0.0
    %1987 = vmatprep.subr.mxu0 0.0
    %1988 = vmatpush2.msra.mxu0 0.0
    %1989 = vmatprep.subr.mxu0 0.0
    %1990 = vmatpush2.msra.mxu0 0.0
    %1991 = vmatprep.subr.mxu0 0.0
    %1992 = vmatpush2.msra.mxu0 0.0
    %1993 = vmatprep.subr.mxu0 0.0
    %1994 = vmatpush2.msra.mxu0 0.0
    %1995 = vmatprep.subr.mxu0 0.0
    %1996 = vmatpush2.msra.mxu0 0.0
    %1997 = vmatprep.subr.mxu0 0.0
    %1998 = vmatpush2.msra.mxu0 0.0
    %1999 = vmatprep.subr.mxu0 0.0
    %2000 = vmatpush2.msra.mxu0 0.0
    %2001 = vmatprep.mubr.f32.mxu0 0.0
    %2002 = vmatmul.mubr.f32.gmra.mxu0 %v1935
    %v2003 = vpop.f32.mrf.mxu0
    %v2004 = vadd.f32 0.0, %v2003
    %v2005 = vpop.f32.mrf.mxu0
    %2006 = vdwg.mxu0
    %v2007 = vadd.f32 %v1876, %v2004
    %2008 = vset.pattern.permute.xlu0 6
    %2009 = vperm.xlu0 %2008, %v1177
    %v2010 = vpop.permute.xlu0 %2009
    %v2012 = vmul.f32 %v1208, %v2010
    %2013 = vset.pattern.permute.xlu0 6
    %2014 = vperm.xlu0 %2013, %v1180
    %v2015 = vpop.permute.xlu0 %2014
    %v2017 = vmul.f32 %v1209, %v2015
    %v2018 = vadd.f32 %v2012, %v2017
    %2019 = vset.pattern.permute.xlu0 6
    %2020 = vperm.xlu0 %2019, %v1183
    %v2021 = vpop.permute.xlu0 %2020
    %v2023 = vmul.f32 %v1210, %v2021
    %v2024 = vadd.f32 %v2018, %v2023
    %2025 = vset.pattern.permute.xlu0 6
    %2026 = vperm.xlu0 %2025, %v1186
    %v2027 = vpop.permute.xlu0 %2026
    %v2029 = vmul.f32 %v1211, %v2027
    %v2030 = vadd.f32 %v2024, %v2029
    %2031 = vset.pattern.permute.xlu0 6
    %2032 = vperm.xlu0 %2031, %v1189
    %v2033 = vpop.permute.xlu0 %2032
    %v2035 = vmul.f32 %v1212, %v2033
    %v2036 = vadd.f32 %v2030, %v2035
    %2037 = vset.pattern.permute.xlu0 6
    %2038 = vperm.xlu0 %2037, %v1192
    %v2039 = vpop.permute.xlu0 %2038
    %v2041 = vmul.f32 %v1213, %v2039
    %v2042 = vadd.f32 %v2036, %v2041
    %2043 = vset.pattern.permute.xlu0 6
    %2044 = vperm.xlu0 %2043, %v1195
    %v2045 = vpop.permute.xlu0 %2044
    %v2047 = vmul.f32 %v1214, %v2045
    %v2048 = vadd.f32 %v2042, %v2047
    %2049 = vset.pattern.permute.xlu0 6
    %2050 = vperm.xlu0 %2049, %v1198
    %v2051 = vpop.permute.xlu0 %2050
    %v2053 = vmul.f32 %v1215, %v2051
    %v2054 = vadd.f32 %v2048, %v2053
    %2055 = vset.pattern.permute.xlu0 6
    %2056 = vperm.xlu0 %2055, %v1207
    %v2057 = vpop.permute.xlu0 %2056
    %v2059 = vmul.f32 %v2054, %v2057
    %s2060 = scalar_lea.vmem %s6, 192
    %v2061 = vld [vmem:[%s2060] sm:$0xff]
    %v2062 = vld [vmem:[%s2060 + $0x8] sm:$0xff]
    %v2063 = vld [vmem:[%s2060 + $0x10] sm:$0xff]
    %v2064 = vld [vmem:[%s2060 + $0x18] sm:$0xff]
    %v2066 = vsel %vm130, %v2059, 0
    %2068 = vmatprep.subr.mxu0 0.0
    %2069 = vmatpush1.msra.mxu0 0.0
    %2070 = vmatprep.subr.mxu0 0.0
    %2071 = vmatpush1.msra.mxu0 0.0
    %2072 = vmatprep.subr.mxu0 0.0
    %2073 = vmatpush1.msra.mxu0 0.0
    %2074 = vmatprep.subr.mxu0 0.0
    %2075 = vmatpush1.msra.mxu0 0.0
    %2076 = vmatprep.subr.mxu0 0.0
    %2077 = vmatpush1.msra.mxu0 0.0
    %2078 = vmatprep.subr.mxu0 0.0
    %2079 = vmatpush1.msra.mxu0 0.0
    %2080 = vmatprep.subr.mxu0 0.0
    %2081 = vmatpush1.msra.mxu0 0.0
    %2082 = vmatprep.subr.mxu0 0.0
    %2083 = vmatpush1.msra.mxu0 0.0
    %2084 = vmatprep.subr.mxu0 0.0
    %2085 = vmatpush1.msra.mxu0 0.0
    %2086 = vmatprep.subr.mxu0 0.0
    %2087 = vmatpush1.msra.mxu0 0.0
    %2088 = vmatprep.subr.mxu0 0.0
    %2089 = vmatpush1.msra.mxu0 0.0
    %2090 = vmatprep.subr.mxu0 0.0
    %2091 = vmatpush1.msra.mxu0 0.0
    %2092 = vmatprep.subr.mxu0 0.0
    %2093 = vmatpush1.msra.mxu0 %v2064
    %2094 = vmatprep.subr.mxu0 0.0
    %2095 = vmatpush1.msra.mxu0 %v2063
    %2096 = vmatprep.subr.mxu0 0.0
    %2097 = vmatpush1.msra.mxu0 %v2062
    %2098 = vmatprep.subr.mxu0 0.0
    %2099 = vmatpush1.msra.mxu0 %v2061
    %2100 = vmatprep.subr.mxu0 0.0
    %2101 = vmatpush2.msra.mxu0 0.0
    %2102 = vmatprep.subr.mxu0 0.0
    %2103 = vmatpush2.msra.mxu0 0.0
    %2104 = vmatprep.subr.mxu0 0.0
    %2105 = vmatpush2.msra.mxu0 0.0
    %2106 = vmatprep.subr.mxu0 0.0
    %2107 = vmatpush2.msra.mxu0 0.0
    %2108 = vmatprep.subr.mxu0 0.0
    %2109 = vmatpush2.msra.mxu0 0.0
    %2110 = vmatprep.subr.mxu0 0.0
    %2111 = vmatpush2.msra.mxu0 0.0
    %2112 = vmatprep.subr.mxu0 0.0
    %2113 = vmatpush2.msra.mxu0 0.0
    %2114 = vmatprep.subr.mxu0 0.0
    %2115 = vmatpush2.msra.mxu0 0.0
    %2116 = vmatprep.subr.mxu0 0.0
    %2117 = vmatpush2.msra.mxu0 0.0
    %2118 = vmatprep.subr.mxu0 0.0
    %2119 = vmatpush2.msra.mxu0 0.0
    %2120 = vmatprep.subr.mxu0 0.0
    %2121 = vmatpush2.msra.mxu0 0.0
    %2122 = vmatprep.subr.mxu0 0.0
    %2123 = vmatpush2.msra.mxu0 0.0
    %2124 = vmatprep.subr.mxu0 0.0
    %2125 = vmatpush2.msra.mxu0 0.0
    %2126 = vmatprep.subr.mxu0 0.0
    %2127 = vmatpush2.msra.mxu0 0.0
    %2128 = vmatprep.subr.mxu0 0.0
    %2129 = vmatpush2.msra.mxu0 0.0
    %2130 = vmatprep.subr.mxu0 0.0
    %2131 = vmatpush2.msra.mxu0 0.0
    %2132 = vmatprep.mubr.f32.mxu0 0.0
    %2133 = vmatmul.mubr.f32.gmra.mxu0 %v2066
    %v2134 = vpop.f32.mrf.mxu0
    %v2135 = vadd.f32 0.0, %v2134
    %v2136 = vpop.f32.mrf.mxu0
    %2137 = vdwg.mxu0
    %v2138 = vadd.f32 %v2007, %v2135
    %2139 = vset.pattern.permute.xlu0 7
    %2140 = vperm.xlu0 %2139, %v1177
    %v2141 = vpop.permute.xlu0 %2140
    %v2143 = vmul.f32 %v1208, %v2141
    %2144 = vset.pattern.permute.xlu0 7
    %2145 = vperm.xlu0 %2144, %v1180
    %v2146 = vpop.permute.xlu0 %2145
    %v2148 = vmul.f32 %v1209, %v2146
    %v2149 = vadd.f32 %v2143, %v2148
    %2150 = vset.pattern.permute.xlu0 7
    %2151 = vperm.xlu0 %2150, %v1183
    %v2152 = vpop.permute.xlu0 %2151
    %v2154 = vmul.f32 %v1210, %v2152
    %v2155 = vadd.f32 %v2149, %v2154
    %2156 = vset.pattern.permute.xlu0 7
    %2157 = vperm.xlu0 %2156, %v1186
    %v2158 = vpop.permute.xlu0 %2157
    %v2160 = vmul.f32 %v1211, %v2158
    %v2161 = vadd.f32 %v2155, %v2160
    %2162 = vset.pattern.permute.xlu0 7
    %2163 = vperm.xlu0 %2162, %v1189
    %v2164 = vpop.permute.xlu0 %2163
    %v2166 = vmul.f32 %v1212, %v2164
    %v2167 = vadd.f32 %v2161, %v2166
    %2168 = vset.pattern.permute.xlu0 7
    %2169 = vperm.xlu0 %2168, %v1192
    %v2170 = vpop.permute.xlu0 %2169
    %v2172 = vmul.f32 %v1213, %v2170
    %v2173 = vadd.f32 %v2167, %v2172
    %2174 = vset.pattern.permute.xlu0 7
    %2175 = vperm.xlu0 %2174, %v1195
    %v2176 = vpop.permute.xlu0 %2175
    %v2178 = vmul.f32 %v1214, %v2176
    %v2179 = vadd.f32 %v2173, %v2178
    %2180 = vset.pattern.permute.xlu0 7
    %2181 = vperm.xlu0 %2180, %v1198
    %v2182 = vpop.permute.xlu0 %2181
    %v2184 = vmul.f32 %v1215, %v2182
    %v2185 = vadd.f32 %v2179, %v2184
    %2186 = vset.pattern.permute.xlu0 7
    %2187 = vperm.xlu0 %2186, %v1207
    %v2188 = vpop.permute.xlu0 %2187
    %v2190 = vmul.f32 %v2185, %v2188
    %s2191 = scalar_lea.vmem %s6, 224
    %v2192 = vld [vmem:[%s2191] sm:$0xff]
    %v2193 = vld [vmem:[%s2191 + $0x8] sm:$0xff]
    %v2194 = vld [vmem:[%s2191 + $0x10] sm:$0xff]
    %v2195 = vld [vmem:[%s2191 + $0x18] sm:$0xff]
    %v2197 = vsel %vm130, %v2190, 0
    %2199 = vmatprep.subr.mxu0 0.0
    %2200 = vmatpush1.msra.mxu0 0.0
    %2201 = vmatprep.subr.mxu0 0.0
    %2202 = vmatpush1.msra.mxu0 0.0
    %2203 = vmatprep.subr.mxu0 0.0
    %2204 = vmatpush1.msra.mxu0 0.0
    %2205 = vmatprep.subr.mxu0 0.0
    %2206 = vmatpush1.msra.mxu0 0.0
    %2207 = vmatprep.subr.mxu0 0.0
    %2208 = vmatpush1.msra.mxu0 0.0
    %2209 = vmatprep.subr.mxu0 0.0
    %2210 = vmatpush1.msra.mxu0 0.0
    %2211 = vmatprep.subr.mxu0 0.0
    %2212 = vmatpush1.msra.mxu0 0.0
    %2213 = vmatprep.subr.mxu0 0.0
    %2214 = vmatpush1.msra.mxu0 0.0
    %2215 = vmatprep.subr.mxu0 0.0
    %2216 = vmatpush1.msra.mxu0 0.0
    %2217 = vmatprep.subr.mxu0 0.0
    %2218 = vmatpush1.msra.mxu0 0.0
    %2219 = vmatprep.subr.mxu0 0.0
    %2220 = vmatpush1.msra.mxu0 0.0
    %2221 = vmatprep.subr.mxu0 0.0
    %2222 = vmatpush1.msra.mxu0 0.0
    %2223 = vmatprep.subr.mxu0 0.0
    %2224 = vmatpush1.msra.mxu0 %v2195
    %2225 = vmatprep.subr.mxu0 0.0
    %2226 = vmatpush1.msra.mxu0 %v2194
    %2227 = vmatprep.subr.mxu0 0.0
    %2228 = vmatpush1.msra.mxu0 %v2193
    %2229 = vmatprep.subr.mxu0 0.0
    %2230 = vmatpush1.msra.mxu0 %v2192
    %2231 = vmatprep.subr.mxu0 0.0
    %2232 = vmatpush2.msra.mxu0 0.0
    %2233 = vmatprep.subr.mxu0 0.0
    %2234 = vmatpush2.msra.mxu0 0.0
    %2235 = vmatprep.subr.mxu0 0.0
    %2236 = vmatpush2.msra.mxu0 0.0
    %2237 = vmatprep.subr.mxu0 0.0
    %2238 = vmatpush2.msra.mxu0 0.0
    %2239 = vmatprep.subr.mxu0 0.0
    %2240 = vmatpush2.msra.mxu0 0.0
    %2241 = vmatprep.subr.mxu0 0.0
    %2242 = vmatpush2.msra.mxu0 0.0
    %2243 = vmatprep.subr.mxu0 0.0
    %2244 = vmatpush2.msra.mxu0 0.0
    %2245 = vmatprep.subr.mxu0 0.0
    %2246 = vmatpush2.msra.mxu0 0.0
    %2247 = vmatprep.subr.mxu0 0.0
    %2248 = vmatpush2.msra.mxu0 0.0
    %2249 = vmatprep.subr.mxu0 0.0
    %2250 = vmatpush2.msra.mxu0 0.0
    %2251 = vmatprep.subr.mxu0 0.0
    %2252 = vmatpush2.msra.mxu0 0.0
    %2253 = vmatprep.subr.mxu0 0.0
    %2254 = vmatpush2.msra.mxu0 0.0
    %2255 = vmatprep.subr.mxu0 0.0
    %2256 = vmatpush2.msra.mxu0 0.0
    %2257 = vmatprep.subr.mxu0 0.0
    %2258 = vmatpush2.msra.mxu0 0.0
    %2259 = vmatprep.subr.mxu0 0.0
    %2260 = vmatpush2.msra.mxu0 0.0
    %2261 = vmatprep.subr.mxu0 0.0
    %2262 = vmatpush2.msra.mxu0 0.0
    %2263 = vmatprep.mubr.f32.mxu0 0.0
    %2264 = vmatmul.mubr.f32.gmra.mxu0 %v2197
    %v2265 = vpop.f32.mrf.mxu0
    %v2266 = vadd.f32 0.0, %v2265
    %v2267 = vpop.f32.mrf.mxu0
    %2268 = vdwg.mxu0
    %v2269 = vadd.f32 %v2138, %v2266
    %2270 = vset.pattern.permute.xlu0 8
    %2271 = vperm.xlu0 %2270, %v1177
    %v2272 = vpop.permute.xlu0 %2271
    %v2274 = vmul.f32 %v1208, %v2272
    %2275 = vset.pattern.permute.xlu0 8
    %2276 = vperm.xlu0 %2275, %v1180
    %v2277 = vpop.permute.xlu0 %2276
    %v2279 = vmul.f32 %v1209, %v2277
    %v2280 = vadd.f32 %v2274, %v2279
    %2281 = vset.pattern.permute.xlu0 8
    %2282 = vperm.xlu0 %2281, %v1183
    %v2283 = vpop.permute.xlu0 %2282
    %v2285 = vmul.f32 %v1210, %v2283
    %v2286 = vadd.f32 %v2280, %v2285
    %2287 = vset.pattern.permute.xlu0 8
    %2288 = vperm.xlu0 %2287, %v1186
    %v2289 = vpop.permute.xlu0 %2288
    %v2291 = vmul.f32 %v1211, %v2289
    %v2292 = vadd.f32 %v2286, %v2291
    %2293 = vset.pattern.permute.xlu0 8
    %2294 = vperm.xlu0 %2293, %v1189
    %v2295 = vpop.permute.xlu0 %2294
    %v2297 = vmul.f32 %v1212, %v2295
    %v2298 = vadd.f32 %v2292, %v2297
    %2299 = vset.pattern.permute.xlu0 8
    %2300 = vperm.xlu0 %2299, %v1192
    %v2301 = vpop.permute.xlu0 %2300
    %v2303 = vmul.f32 %v1213, %v2301
    %v2304 = vadd.f32 %v2298, %v2303
    %2305 = vset.pattern.permute.xlu0 8
    %2306 = vperm.xlu0 %2305, %v1195
    %v2307 = vpop.permute.xlu0 %2306
    %v2309 = vmul.f32 %v1214, %v2307
    %v2310 = vadd.f32 %v2304, %v2309
    %2311 = vset.pattern.permute.xlu0 8
    %2312 = vperm.xlu0 %2311, %v1198
    %v2313 = vpop.permute.xlu0 %2312
    %v2315 = vmul.f32 %v1215, %v2313
    %v2316 = vadd.f32 %v2310, %v2315
    %2317 = vset.pattern.permute.xlu0 8
    %2318 = vperm.xlu0 %2317, %v1207
    %v2319 = vpop.permute.xlu0 %2318
    %v2321 = vmul.f32 %v2316, %v2319
    %s2322 = scalar_lea.vmem %s6, 256
    %v2323 = vld [vmem:[%s2322] sm:$0xff]
    %v2324 = vld [vmem:[%s2322 + $0x8] sm:$0xff]
    %v2325 = vld [vmem:[%s2322 + $0x10] sm:$0xff]
    %v2326 = vld [vmem:[%s2322 + $0x18] sm:$0xff]
    %v2328 = vsel %vm130, %v2321, 0
    %2330 = vmatprep.subr.mxu0 0.0
    %2331 = vmatpush1.msra.mxu0 0.0
    %2332 = vmatprep.subr.mxu0 0.0
    %2333 = vmatpush1.msra.mxu0 0.0
    %2334 = vmatprep.subr.mxu0 0.0
    %2335 = vmatpush1.msra.mxu0 0.0
    %2336 = vmatprep.subr.mxu0 0.0
    %2337 = vmatpush1.msra.mxu0 0.0
    %2338 = vmatprep.subr.mxu0 0.0
    %2339 = vmatpush1.msra.mxu0 0.0
    %2340 = vmatprep.subr.mxu0 0.0
    %2341 = vmatpush1.msra.mxu0 0.0
    %2342 = vmatprep.subr.mxu0 0.0
    %2343 = vmatpush1.msra.mxu0 0.0
    %2344 = vmatprep.subr.mxu0 0.0
    %2345 = vmatpush1.msra.mxu0 0.0
    %2346 = vmatprep.subr.mxu0 0.0
    %2347 = vmatpush1.msra.mxu0 0.0
    %2348 = vmatprep.subr.mxu0 0.0
    %2349 = vmatpush1.msra.mxu0 0.0
    %2350 = vmatprep.subr.mxu0 0.0
    %2351 = vmatpush1.msra.mxu0 0.0
    %2352 = vmatprep.subr.mxu0 0.0
    %2353 = vmatpush1.msra.mxu0 0.0
    %2354 = vmatprep.subr.mxu0 0.0
    %2355 = vmatpush1.msra.mxu0 %v2326
    %2356 = vmatprep.subr.mxu0 0.0
    %2357 = vmatpush1.msra.mxu0 %v2325
    %2358 = vmatprep.subr.mxu0 0.0
    %2359 = vmatpush1.msra.mxu0 %v2324
    %2360 = vmatprep.subr.mxu0 0.0
    %2361 = vmatpush1.msra.mxu0 %v2323
    %2362 = vmatprep.subr.mxu0 0.0
    %2363 = vmatpush2.msra.mxu0 0.0
    %2364 = vmatprep.subr.mxu0 0.0
    %2365 = vmatpush2.msra.mxu0 0.0
    %2366 = vmatprep.subr.mxu0 0.0
    %2367 = vmatpush2.msra.mxu0 0.0
    %2368 = vmatprep.subr.mxu0 0.0
    %2369 = vmatpush2.msra.mxu0 0.0
    %2370 = vmatprep.subr.mxu0 0.0
    %2371 = vmatpush2.msra.mxu0 0.0
    %2372 = vmatprep.subr.mxu0 0.0
    %2373 = vmatpush2.msra.mxu0 0.0
    %2374 = vmatprep.subr.mxu0 0.0
    %2375 = vmatpush2.msra.mxu0 0.0
    %2376 = vmatprep.subr.mxu0 0.0
    %2377 = vmatpush2.msra.mxu0 0.0
    %2378 = vmatprep.subr.mxu0 0.0
    %2379 = vmatpush2.msra.mxu0 0.0
    %2380 = vmatprep.subr.mxu0 0.0
    %2381 = vmatpush2.msra.mxu0 0.0
    %2382 = vmatprep.subr.mxu0 0.0
    %2383 = vmatpush2.msra.mxu0 0.0
    %2384 = vmatprep.subr.mxu0 0.0
    %2385 = vmatpush2.msra.mxu0 0.0
    %2386 = vmatprep.subr.mxu0 0.0
    %2387 = vmatpush2.msra.mxu0 0.0
    %2388 = vmatprep.subr.mxu0 0.0
    %2389 = vmatpush2.msra.mxu0 0.0
    %2390 = vmatprep.subr.mxu0 0.0
    %2391 = vmatpush2.msra.mxu0 0.0
    %2392 = vmatprep.subr.mxu0 0.0
    %2393 = vmatpush2.msra.mxu0 0.0
    %2394 = vmatprep.mubr.f32.mxu0 0.0
    %2395 = vmatmul.mubr.f32.gmra.mxu0 %v2328
    %v2396 = vpop.f32.mrf.mxu0
    %v2397 = vadd.f32 0.0, %v2396
    %v2398 = vpop.f32.mrf.mxu0
    %2399 = vdwg.mxu0
    %v2400 = vadd.f32 %v2269, %v2397
    %2401 = vset.pattern.permute.xlu0 9
    %2402 = vperm.xlu0 %2401, %v1177
    %v2403 = vpop.permute.xlu0 %2402
    %v2405 = vmul.f32 %v1208, %v2403
    %2406 = vset.pattern.permute.xlu0 9
    %2407 = vperm.xlu0 %2406, %v1180
    %v2408 = vpop.permute.xlu0 %2407
    %v2410 = vmul.f32 %v1209, %v2408
    %v2411 = vadd.f32 %v2405, %v2410
    %2412 = vset.pattern.permute.xlu0 9
    %2413 = vperm.xlu0 %2412, %v1183
    %v2414 = vpop.permute.xlu0 %2413
    %v2416 = vmul.f32 %v1210, %v2414
    %v2417 = vadd.f32 %v2411, %v2416
    %2418 = vset.pattern.permute.xlu0 9
    %2419 = vperm.xlu0 %2418, %v1186
    %v2420 = vpop.permute.xlu0 %2419
    %v2422 = vmul.f32 %v1211, %v2420
    %v2423 = vadd.f32 %v2417, %v2422
    %2424 = vset.pattern.permute.xlu0 9
    %2425 = vperm.xlu0 %2424, %v1189
    %v2426 = vpop.permute.xlu0 %2425
    %v2428 = vmul.f32 %v1212, %v2426
    %v2429 = vadd.f32 %v2423, %v2428
    %2430 = vset.pattern.permute.xlu0 9
    %2431 = vperm.xlu0 %2430, %v1192
    %v2432 = vpop.permute.xlu0 %2431
    %v2434 = vmul.f32 %v1213, %v2432
    %v2435 = vadd.f32 %v2429, %v2434
    %2436 = vset.pattern.permute.xlu0 9
    %2437 = vperm.xlu0 %2436, %v1195
    %v2438 = vpop.permute.xlu0 %2437
    %v2440 = vmul.f32 %v1214, %v2438
    %v2441 = vadd.f32 %v2435, %v2440
    %2442 = vset.pattern.permute.xlu0 9
    %2443 = vperm.xlu0 %2442, %v1198
    %v2444 = vpop.permute.xlu0 %2443
    %v2446 = vmul.f32 %v1215, %v2444
    %v2447 = vadd.f32 %v2441, %v2446
    %2448 = vset.pattern.permute.xlu0 9
    %2449 = vperm.xlu0 %2448, %v1207
    %v2450 = vpop.permute.xlu0 %2449
    %v2452 = vmul.f32 %v2447, %v2450
    %s2453 = scalar_lea.vmem %s6, 288
    %v2454 = vld [vmem:[%s2453] sm:$0xff]
    %v2455 = vld [vmem:[%s2453 + $0x8] sm:$0xff]
    %v2456 = vld [vmem:[%s2453 + $0x10] sm:$0xff]
    %v2457 = vld [vmem:[%s2453 + $0x18] sm:$0xff]
    %v2459 = vsel %vm130, %v2452, 0
    %2461 = vmatprep.subr.mxu0 0.0
    %2462 = vmatpush1.msra.mxu0 0.0
    %2463 = vmatprep.subr.mxu0 0.0
    %2464 = vmatpush1.msra.mxu0 0.0
    %2465 = vmatprep.subr.mxu0 0.0
    %2466 = vmatpush1.msra.mxu0 0.0
    %2467 = vmatprep.subr.mxu0 0.0
    %2468 = vmatpush1.msra.mxu0 0.0
    %2469 = vmatprep.subr.mxu0 0.0
    %2470 = vmatpush1.msra.mxu0 0.0
    %2471 = vmatprep.subr.mxu0 0.0
    %2472 = vmatpush1.msra.mxu0 0.0
    %2473 = vmatprep.subr.mxu0 0.0
    %2474 = vmatpush1.msra.mxu0 0.0
    %2475 = vmatprep.subr.mxu0 0.0
    %2476 = vmatpush1.msra.mxu0 0.0
    %2477 = vmatprep.subr.mxu0 0.0
    %2478 = vmatpush1.msra.mxu0 0.0
    %2479 = vmatprep.subr.mxu0 0.0
    %2480 = vmatpush1.msra.mxu0 0.0
    %2481 = vmatprep.subr.mxu0 0.0
    %2482 = vmatpush1.msra.mxu0 0.0
    %2483 = vmatprep.subr.mxu0 0.0
    %2484 = vmatpush1.msra.mxu0 0.0
    %2485 = vmatprep.subr.mxu0 0.0
    %2486 = vmatpush1.msra.mxu0 %v2457
    %2487 = vmatprep.subr.mxu0 0.0
    %2488 = vmatpush1.msra.mxu0 %v2456
    %2489 = vmatprep.subr.mxu0 0.0
    %2490 = vmatpush1.msra.mxu0 %v2455
    %2491 = vmatprep.subr.mxu0 0.0
    %2492 = vmatpush1.msra.mxu0 %v2454
    %2493 = vmatprep.subr.mxu0 0.0
    %2494 = vmatpush2.msra.mxu0 0.0
    %2495 = vmatprep.subr.mxu0 0.0
    %2496 = vmatpush2.msra.mxu0 0.0
    %2497 = vmatprep.subr.mxu0 0.0
    %2498 = vmatpush2.msra.mxu0 0.0
    %2499 = vmatprep.subr.mxu0 0.0
    %2500 = vmatpush2.msra.mxu0 0.0
    %2501 = vmatprep.subr.mxu0 0.0
    %2502 = vmatpush2.msra.mxu0 0.0
    %2503 = vmatprep.subr.mxu0 0.0
    %2504 = vmatpush2.msra.mxu0 0.0
    %2505 = vmatprep.subr.mxu0 0.0
    %2506 = vmatpush2.msra.mxu0 0.0
    %2507 = vmatprep.subr.mxu0 0.0
    %2508 = vmatpush2.msra.mxu0 0.0
    %2509 = vmatprep.subr.mxu0 0.0
    %2510 = vmatpush2.msra.mxu0 0.0
    %2511 = vmatprep.subr.mxu0 0.0
    %2512 = vmatpush2.msra.mxu0 0.0
    %2513 = vmatprep.subr.mxu0 0.0
    %2514 = vmatpush2.msra.mxu0 0.0
    %2515 = vmatprep.subr.mxu0 0.0
    %2516 = vmatpush2.msra.mxu0 0.0
    %2517 = vmatprep.subr.mxu0 0.0
    %2518 = vmatpush2.msra.mxu0 0.0
    %2519 = vmatprep.subr.mxu0 0.0
    %2520 = vmatpush2.msra.mxu0 0.0
    %2521 = vmatprep.subr.mxu0 0.0
    %2522 = vmatpush2.msra.mxu0 0.0
    %2523 = vmatprep.subr.mxu0 0.0
    %2524 = vmatpush2.msra.mxu0 0.0
    %2525 = vmatprep.mubr.f32.mxu0 0.0
    %2526 = vmatmul.mubr.f32.gmra.mxu0 %v2459
    %v2527 = vpop.f32.mrf.mxu0
    %v2528 = vadd.f32 0.0, %v2527
    %v2529 = vpop.f32.mrf.mxu0
    %2530 = vdwg.mxu0
    %v2531 = vadd.f32 %v2400, %v2528
    %v2532 = vld [vmem:[%s7] sm:$0x1]
    %v2534 = vlaneseq
    %v2535 = vshrl.u32 %v2534, 7
    %v2536 = vsub.s32 0, %v2535
    %v2537 = vrot.slane %v2532, %v2536
    %v2539 = vadd.f32 %v2531, %v2537
    %vm2540 = vcmask 33792
    %2541 = vst.msk [vmem:[#allocation5] sm:$0x3] %vm2540, %v2539
    // Predicated region
    $region34: #{forward.1} parent=1 // pred_check
      _
    $region35: #{forward.1} parent=1 // pred_check_branch
      %2543 = sbr.rel (0) target = $region37
    $region36: #{forward.1} parent=1 // pred_region
      %s2545 = ssub.s32 32, 32
      %2546 = vsyncadd [#allocation6], %s2545
      %s2548 = sshll.u32 [#allocation5], 4
      %s2549 = int_to_ptr.vmem [resolvable:$true] %s2548
      %2551 = dma.vmem_to_hbm [thread:$0]  %s2549, 32, %s8, [#allocation6]
    $region37: #{forward.1} parent=1 // pred_fallthru
      _
    // Predicated region
    $region38: #{forward.1} parent=1 // pred_check
      _
    $region39: #{forward.1} parent=1 // pred_check_branch
      %2553 = sbr.rel (0) target = $region41
    $region40: #{forward.1} parent=1 // pred_region
      %2554 = dma.done [#allocation6], 32
    $region41: #{forward.1} parent=1 // pred_fallthru
      _
    %2555 = vsyncpa [#allocation6], 1

</llo_original>
